<compile_context>
chip_gen: v6e
topology: v6e:2x2x1
jax: 0.10.0
libtpu: 0.0.40
codegen_flags: <defaults>
</compile_context>

<pallas_src>
import functools

import jax
import jax.numpy as jnp
from jax.experimental import pallas as pl
from jax.experimental.pallas import tpu as pltpu


# ----------------------------------------------------------------------------
# Fused SpeakerEncoder kernel: LSTM1 -> SoftDotAttention -> LSTM2, all in VMEM.
# ----------------------------------------------------------------------------
def _speaker_encoder_kernel(
        x_ref, feat_hbm,
        wih1_ref, whh1_ref, b1_ref,
        win_ref, woc_ref, woh_ref,
        wih2_ref, whh2_ref, b2_ref,
        out_ref,
        gates_scr, seq_scr, feat_scr, h_scr, c_scr, feat_sem,
        *, B, L):
    H = out_ref.shape[1]

    # Kick off the feat HBM->VMEM DMA now; it is not needed until the attention
    # block, so the transfer overlaps with the entire LSTM1 recurrence.
    feat_cp = pltpu.make_async_copy(feat_hbm, feat_scr, feat_sem)
    feat_cp.start()

    def lstm_pass(inp_bf16, wih_ref, whh_ref, b_ref):
        # Hoisted input projection: ONE lane-dense (N, in) x (in, 4H) bf16 MXU
        # matmul, bias folded in once (removed from the serial loop).
        gates_scr[...] = (
            jnp.dot(inp_bf16, wih_ref[...], preferred_element_type=jnp.float32)
            + b_ref[...])
        h_scr[...] = jnp.zeros_like(h_scr)
        c_scr[...] = jnp.zeros_like(c_scr)
        whh = whh_ref[...]                                        # (H, 4H) bf16, hoisted

        # Serial recurrence: only one fused (B,H)x(H,4H) bf16 dot per step on
        # the critical path.  L is small here, so fully unrolled.
        # TODO(synk): switch to lax.fori_loop for large production L.
        for t in range(L):
            rows = pl.ds(t * B, B)                                # static row block
            h = h_scr[...]                                        # (B, H) f32
            g_all = gates_scr[rows, :] + jnp.dot(
                h.astype(jnp.bfloat16), whh,
                preferred_element_type=jnp.float32)               # (B, 4H) f32
            i_g = jax.nn.sigmoid(g_all[:, 0 * H:1 * H])
            f_g = jax.nn.sigmoid(g_all[:, 1 * H:2 * H])
            g_g = jnp.tanh(g_all[:, 2 * H:3 * H])
            o_g = jax.nn.sigmoid(g_all[:, 3 * H:4 * H])
            c = f_g * c_scr[...] + i_g * g_g
            h_new = o_g * jnp.tanh(c)
            c_scr[...] = c
            h_scr[...] = h_new
            seq_scr[rows, :] = h_new

    # ---------------- LSTM 1 ----------------
    lstm_pass(x_ref[...], wih1_ref, whh1_ref, b1_ref)             # ctx -> seq_scr

    # ------------- SoftDotAttention over all N = L*B rows at once -------------
    h_q = seq_scr[...]                                            # (N, H) f32, time-major
    target = jnp.dot(h_q.astype(jnp.bfloat16), win_ref[...],
                     preferred_element_type=jnp.float32)          # (N, F)
    feat_cp.wait()                                                # feat now resident
    feat = feat_scr[...].astype(jnp.float32)                      # (N, V, F)
    # scores / weighted-sum on VPU + XLU (no degenerate batched matvecs).
    scores = jnp.sum(feat * target[:, None, :], axis=-1)          # (N, V)
    scores = scores - jnp.max(scores, axis=-1, keepdims=True)
    e = jnp.exp(scores)
    attn = e * pl.reciprocal(jnp.sum(e, axis=-1, keepdims=True), approx=True)
    weighted = jnp.sum(attn[:, :, None] * feat, axis=1)           # (N, F)
    h_tilde = jnp.tanh(
        jnp.dot(weighted.astype(jnp.bfloat16), woc_ref[...],
                preferred_element_type=jnp.float32)
        + jnp.dot(h_q.astype(jnp.bfloat16), woh_ref[...],
                  preferred_element_type=jnp.float32))            # (N, H)

    # ---------------- LSTM 2 (post_lstm) ----------------
    lstm_pass(h_tilde.astype(jnp.bfloat16), wih2_ref, whh2_ref, b2_ref)

    # Single bulk time-major store; batch-first transpose happens in the wrapper.
    out_ref[...] = seq_scr[...]


# ----------------------------------------------------------------------------
# Wrapper: weight prep (fused 4H gate blocks, bf16 MXU feeds) + single pallas_call
# ----------------------------------------------------------------------------
def _prep_lstm_weights(w_ih, w_hh, b_ih, b_hh):
    H4 = w_ih.shape[0]
    H = H4 // 4
    # PyTorch layout: (4H, in) with gate order i, f, g, o along dim 0.
    # Transposing gives lane-concatenated (in, 4H) blocks -> one fused matmul.
    wih = jnp.transpose(w_ih).astype(jnp.bfloat16)                # (in, 4H)
    whh = jnp.transpose(w_hh).astype(jnp.bfloat16)                # (H, 4H)
    b = (b_ih + b_hh).reshape(1, 4 * H).astype(jnp.float32)       # (1, 4H)
    return wih, whh, b


def speaker_encoder_forward(params, action_embeds, feature, lengths=None):
    """action_embeds: (B, L, F), feature: (B, L, V, F) -> (B, L, H)."""
    # TODO(synk): `lengths` is ignored (the PyTorch forward never uses it);
    # nn.Dropout layers are identity (eval mode).
    B, L, F = action_embeds.shape
    V = feature.shape[2]
    H = params['lstm1_w_hh'].shape[1]
    N = B * L

    wih1, whh1, b1 = _prep_lstm_weights(params['lstm1_w_ih'], params['lstm1_w_hh'],
                                        params['lstm1_b_ih'], params['lstm1_b_hh'])
    wih2, whh2, b2 = _prep_lstm_weights(params['lstm2_w_ih'], params['lstm2_w_hh'],
                                        params['lstm2_b_ih'], params['lstm2_b_hh'])
    win_t = jnp.transpose(params['attn_w_in']).astype(jnp.bfloat16)            # (H, F)
    woc_t = jnp.transpose(params['attn_w_out'][:, :F]).astype(jnp.bfloat16)    # (F, H)
    woh_t = jnp.transpose(params['attn_w_out'][:, F:]).astype(jnp.bfloat16)    # (H, H)

    # Time-major inputs (row n = t*B + b) in bf16: layout + downcast done by one
    # cheap XLA op each OUTSIDE the kernel; halves feat's HBM->VMEM DMA bytes.
    x_tm = jnp.transpose(action_embeds, (1, 0, 2)).reshape(N, F).astype(jnp.bfloat16)
    feat_tm = jnp.transpose(feature, (1, 0, 2, 3)).reshape(N, V, F).astype(jnp.bfloat16)

    vmem = pltpu.MemorySpace.VMEM
    in_specs = ([pl.BlockSpec(memory_space=vmem),        # x -> VMEM (auto-DMA)
                 pl.BlockSpec(memory_space=pl.ANY)]       # feat stays in HBM (manual DMA)
                + [pl.BlockSpec(memory_space=vmem)] * 9)  # weights / biases

    # TODO(synk): on v7x (2 TensorCores, 64 MiB VMEM) add a parallel batch grid
    # axis and chunk feat over N with double-buffered tiles at production sizes.
    out_tm = pl.pallas_call(
        functools.partial(_speaker_encoder_kernel, B=B, L=L),
        out_shape=jax.ShapeDtypeStruct((N, H), jnp.float32),
        in_specs=in_specs,
        out_specs=pl.BlockSpec(memory_space=vmem),
        scratch_shapes=[
            pltpu.VMEM((N, 4 * H), jnp.float32),   # fused gate input projections
            pltpu.VMEM((N, H), jnp.float32),       # per-step hidden outputs (ctx / final)
            pltpu.VMEM((N, V, F), jnp.bfloat16),   # feat landing buffer (overlapped DMA)
            pltpu.VMEM((B, H), jnp.float32),       # h state
            pltpu.VMEM((B, H), jnp.float32),       # c state
            pltpu.SemaphoreType.DMA(()),           # feat DMA completion
        ],
        compiler_params=pltpu.CompilerParams(vmem_limit_bytes=32 * 1024 * 1024),
    )(x_tm, feat_tm, wih1, whh1, b1, win_t, woc_t, woh_t, wih2, whh2, b2)

    # Batch-first (B, L, H): one cheap XLA transpose outside the kernel.
    return jnp.transpose(out_tm.reshape(L, B, H), (1, 0, 2))


# ----------------------------------------------------------------------------
# Pure-JAX f32 reference (for correctness check)
# ----------------------------------------------------------------------------
def _lstm_ref(x_bf, w_ih, w_hh, b_ih, b_hh):
    B, L, F = x_bf.shape
    H = w_hh.shape[1]

    def step(carry, x_t):
        h, c = carry
        gates = x_t @ w_ih.T + h @ w_hh.T + b_ih + b_hh
        i, f, g, o = jnp.split(gates, 4, axis=-1)
        c = jax.nn.sigmoid(f) * c + jax.nn.sigmoid(i) * jnp.tanh(g)
        h = jax.nn.sigmoid(o) * jnp.tanh(c)
        return (h, c), h

    x_tm = jnp.transpose(x_bf, (1, 0, 2))
    (_, _), hs = jax.lax.scan(step, (jnp.zeros((B, H)), jnp.zeros((B, H))), x_tm)
    return jnp.transpose(hs, (1, 0, 2))


def _forward_ref(params, action_embeds, feature):
    B, L, F = action_embeds.shape
    H = params['lstm1_w_hh'].shape[1]
    ctx = _lstm_ref(action_embeds, params['lstm1_w_ih'], params['lstm1_w_hh'],
                    params['lstm1_b_ih'], params['lstm1_b_hh'])
    h = ctx.reshape(B * L, H)
    c = feature.reshape(B * L, -1, F)
    target = h @ params['attn_w_in'].T
    scores = jnp.einsum('nvf,nf->nv', c, target)
    attn = jax.nn.softmax(scores, axis=-1)
    weighted = jnp.einsum('nv,nvf->nf', attn, c)
    h_tilde = jnp.tanh(jnp.concatenate([weighted, h], axis=1) @ params['attn_w_out'].T)
    x2 = h_tilde.reshape(B, L, H)
    return _lstm_ref(x2, params['lstm2_w_ih'], params['lstm2_w_hh'],
                     params['lstm2_b_ih'], params['lstm2_b_hh'])


# ----------------------------------------------------------------------------
# Main
# ----------------------------------------------------------------------------
if __name__ == "__main__":
    B, L, V = 2, 8, 8
    FEAT, HID = 32, 32     # feature_size, hidden_size (bidirectional=False)

    key = jax.random.PRNGKey(0)
    keys = jax.random.split(key, 12)

    def init(k, shape, scale=0.1):
        return (scale * jax.random.normal(k, shape)).astype(jnp.float32)

    params = {
        # LSTM 1: input FEAT -> hidden HID (PyTorch weight layout: (4H, in))
        'lstm1_w_ih': init(keys[0], (4 * HID, FEAT)),
        'lstm1_w_hh': init(keys[1], (4 * HID, HID)),
        'lstm1_b_ih': init(keys[2], (4 * HID,)),
        'lstm1_b_hh': init(keys[3], (4 * HID,)),
        # SoftDotAttention: linear_in (FEAT, HID), linear_out (HID, FEAT+HID)
        'attn_w_in': init(keys[4], (FEAT, HID)),
        'attn_w_out': init(keys[5], (HID, FEAT + HID)),
        # LSTM 2 (post_lstm): input HID -> hidden HID
        'lstm2_w_ih': init(keys[6], (4 * HID, HID)),
        'lstm2_w_hh': init(keys[7], (4 * HID, HID)),
        'lstm2_b_ih': init(keys[8], (4 * HID,)),
        'lstm2_b_hh': init(keys[9], (4 * HID,)),
    }

    action_embeds = init(keys[10], (B, L, FEAT), scale=1.0)
    feature = init(keys[11], (B, L, V, FEAT), scale=1.0)
    lengths = jnp.full((B,), L, dtype=jnp.int32)   # not used by forward

    fwd = jax.jit(functools.partial(speaker_encoder_forward, params))
    out = fwd(action_embeds, feature, lengths)
    out = jax.block_until_ready(out)

    assert out.shape == (B, L, HID), out.shape
    ref = jax.block_until_ready(_forward_ref(params, action_embeds, feature))
    assert jnp.all(jnp.isfinite(out))
    assert jnp.allclose(out, ref, atol=5e-2, rtol=5e-2), (
        float(jnp.max(jnp.abs(out - ref))))

    print("KERNEL_OK")
</pallas_src>

<mosaic_0001>
module attributes {stable_mosaic.version = 11 : i64} {
  func.func @_speaker_encoder_kernel(%arg0: memref<16x32xbf16, #tpu.memory_space<vmem>>, %arg1: memref<16x8x32xbf16, #tpu.memory_space<any>>, %arg2: memref<32x128xbf16, #tpu.memory_space<vmem>>, %arg3: memref<32x128xbf16, #tpu.memory_space<vmem>>, %arg4: memref<1x128xf32, #tpu.memory_space<vmem>>, %arg5: memref<32x32xbf16, #tpu.memory_space<vmem>>, %arg6: memref<32x32xbf16, #tpu.memory_space<vmem>>, %arg7: memref<32x32xbf16, #tpu.memory_space<vmem>>, %arg8: memref<32x128xbf16, #tpu.memory_space<vmem>>, %arg9: memref<32x128xbf16, #tpu.memory_space<vmem>>, %arg10: memref<1x128xf32, #tpu.memory_space<vmem>>, %arg11: memref<16x32xf32, #tpu.memory_space<vmem>>, %arg12: memref<16x128xf32, #tpu.memory_space<vmem>>, %arg13: memref<16x32xf32, #tpu.memory_space<vmem>>, %arg14: memref<16x8x32xbf16, #tpu.memory_space<vmem>>, %arg15: memref<2x32xf32, #tpu.memory_space<vmem>>, %arg16: memref<2x32xf32, #tpu.memory_space<vmem>>, %arg17: memref<!tpu.dma_semaphore, #tpu.memory_space<semaphore_mem>>) attributes {dimension_semantics = [], scalar_prefetch = 0 : i64, scratch_operands = 6 : i64, tpu.core_type = #tpu.core_type<tc>} {
    tpu.enqueue_dma source(%arg1 : memref<16x8x32xbf16, #tpu.memory_space<any>>) target(%arg14 : memref<16x8x32xbf16, #tpu.memory_space<vmem>>) target_semaphore(%arg17 : memref<!tpu.dma_semaphore, #tpu.memory_space<semaphore_mem>>)
    %c0 = arith.constant 0 : index
    %c0_0 = arith.constant 0 : index
    %0 = vector.load %arg0[%c0, %c0_0] : memref<16x32xbf16, #tpu.memory_space<vmem>>, vector<16x32xbf16>
    %c0_1 = arith.constant 0 : index
    %c0_2 = arith.constant 0 : index
    %1 = vector.load %arg2[%c0_1, %c0_2] : memref<32x128xbf16, #tpu.memory_space<vmem>>, vector<32x128xbf16>
    %cst = arith.constant dense<0.000000e+00> : vector<16x128xf32>
    %2 = tpu.matmul %0, %1, %cst {dimension_numbers = #tpu.dot_dimension_numbers<[1], [0], [0], [1], [0, 0, 1, 1], [], []>} : vector<16x32xbf16>, vector<32x128xbf16>, vector<16x128xf32> -> vector<16x128xf32>
    %c0_3 = arith.constant 0 : index
    %c0_4 = arith.constant 0 : index
    %3 = vector.load %arg4[%c0_3, %c0_4] : memref<1x128xf32, #tpu.memory_space<vmem>>, vector<1x128xf32>
    %4 = vector.broadcast %3 : vector<1x128xf32> to vector<16x128xf32>
    %5 = arith.addf %2, %4 : vector<16x128xf32>
    %c0_5 = arith.constant 0 : index
    %c0_6 = arith.constant 0 : index
    %6 = vector.load %arg12[%c0_5, %c0_6] : memref<16x128xf32, #tpu.memory_space<vmem>>, vector<16x128xf32>
    tpu.vector_store %arg12[%c0_5, %c0_6], %5 {strides = array<i32>} : memref<16x128xf32, #tpu.memory_space<vmem>>, vector<16x128xf32>,
    %cst_7 = arith.constant 0.000000e+00 : f32
    %7 = vector.broadcast %cst_7 : f32 to vector<2x32xf32>
    %c0_8 = arith.constant 0 : index
    %c0_9 = arith.constant 0 : index
    %8 = vector.load %arg15[%c0_8, %c0_9] : memref<2x32xf32, #tpu.memory_space<vmem>>, vector<2x32xf32>
    tpu.vector_store %arg15[%c0_8, %c0_9], %7 {strides = array<i32>} : memref<2x32xf32, #tpu.memory_space<vmem>>, vector<2x32xf32>,
    %cst_10 = arith.constant 0.000000e+00 : f32
    %9 = vector.broadcast %cst_10 : f32 to vector<2x32xf32>
    %c0_11 = arith.constant 0 : index
    %c0_12 = arith.constant 0 : index
    %10 = vector.load %arg16[%c0_11, %c0_12] : memref<2x32xf32, #tpu.memory_space<vmem>>, vector<2x32xf32>
    tpu.vector_store %arg16[%c0_11, %c0_12], %9 {strides = array<i32>} : memref<2x32xf32, #tpu.memory_space<vmem>>, vector<2x32xf32>,
    %c0_13 = arith.constant 0 : index
    %c0_14 = arith.constant 0 : index
    %11 = vector.load %arg3[%c0_13, %c0_14] : memref<32x128xbf16, #tpu.memory_space<vmem>>, vector<32x128xbf16>
    %c0_15 = arith.constant 0 : index
    %c0_16 = arith.constant 0 : index
    %12 = vector.load %arg15[%c0_15, %c0_16] : memref<2x32xf32, #tpu.memory_space<vmem>>, vector<2x32xf32>
    %c0_17 = arith.constant 0 : index
    %c0_18 = arith.constant 0 : index
    %13 = vector.load %arg12[%c0_17, %c0_18] : memref<16x128xf32, #tpu.memory_space<vmem>>, vector<2x128xf32>
    %14 = arith.truncf %12 : vector<2x32xf32> to vector<2x32xbf16>
    %cst_19 = arith.constant dense<0.000000e+00> : vector<2x128xf32>
    %15 = tpu.matmul %14, %11, %cst_19 {dimension_numbers = #tpu.dot_dimension_numbers<[1], [0], [0], [1], [0, 0, 1, 1], [], []>} : vector<2x32xbf16>, vector<32x128xbf16>, vector<2x128xf32> -> vector<2x128xf32>
    %16 = arith.addf %13, %15 : vector<2x128xf32>
    %17 = vector.extract_strided_slice %16 {offsets = [0, 0], sizes = [2, 32], strides = [1, 1]} : vector<2x128xf32> to vector<2x32xf32>
    %18 = arith.negf %17 : vector<2x32xf32>
    %19 = math.exp %18 : vector<2x32xf32>
    %cst_20 = arith.constant 1.000000e+00 : f32
    %20 = vector.broadcast %cst_20 : f32 to vector<2x32xf32>
    %21 = arith.addf %20, %19 : vector<2x32xf32>
    %22 = arith.divf %20, %21 : vector<2x32xf32>
    %23 = vector.extract_strided_slice %16 {offsets = [0, 32], sizes = [2, 32], strides = [1, 1]} : vector<2x128xf32> to vector<2x32xf32>
    %24 = arith.negf %23 : vector<2x32xf32>
    %25 = math.exp %24 : vector<2x32xf32>
    %cst_21 = arith.constant 1.000000e+00 : f32
    %26 = vector.broadcast %cst_21 : f32 to vector<2x32xf32>
    %27 = arith.addf %26, %25 : vector<2x32xf32>
    %28 = arith.divf %26, %27 : vector<2x32xf32>
    %29 = vector.extract_strided_slice %16 {offsets = [0, 64], sizes = [2, 32], strides = [1, 1]} : vector<2x128xf32> to vector<2x32xf32>
    %30 = math.tanh %29 : vector<2x32xf32>
    %31 = vector.extract_strided_slice %16 {offsets = [0, 96], sizes = [2, 32], strides = [1, 1]} : vector<2x128xf32> to vector<2x32xf32>
    %32 = arith.negf %31 : vector<2x32xf32>
    %33 = math.exp %32 : vector<2x32xf32>
    %cst_22 = arith.constant 1.000000e+00 : f32
    %34 = vector.broadcast %cst_22 : f32 to vector<2x32xf32>
    %35 = arith.addf %34, %33 : vector<2x32xf32>
    %36 = arith.divf %34, %35 : vector<2x32xf32>
    %c0_23 = arith.constant 0 : index
    %c0_24 = arith.constant 0 : index
    %37 = vector.load %arg16[%c0_23, %c0_24] : memref<2x32xf32, #tpu.memory_space<vmem>>, vector<2x32xf32>
    %38 = arith.mulf %28, %37 : vector<2x32xf32>
    %39 = arith.mulf %22, %30 : vector<2x32xf32>
    %40 = arith.addf %38, %39 : vector<2x32xf32>
    %41 = math.tanh %40 : vector<2x32xf32>
    %42 = arith.mulf %36, %41 : vector<2x32xf32>
    %c0_25 = arith.constant 0 : index
    %c0_26 = arith.constant 0 : index
    %43 = vector.load %arg16[%c0_25, %c0_26] : memref<2x32xf32, #tpu.memory_space<vmem>>, vector<2x32xf32>
    tpu.vector_store %arg16[%c0_25, %c0_26], %40 {strides = array<i32>} : memref<2x32xf32, #tpu.memory_space<vmem>>, vector<2x32xf32>,
    %c0_27 = arith.constant 0 : index
    %c0_28 = arith.constant 0 : index
    %44 = vector.load %arg15[%c0_27, %c0_28] : memref<2x32xf32, #tpu.memory_space<vmem>>, vector<2x32xf32>
    tpu.vector_store %arg15[%c0_27, %c0_28], %42 {strides = array<i32>} : memref<2x32xf32, #tpu.memory_space<vmem>>, vector<2x32xf32>,
    %c0_29 = arith.constant 0 : index
    %c0_30 = arith.constant 0 : index
    %45 = vector.load %arg13[%c0_29, %c0_30] : memref<16x32xf32, #tpu.memory_space<vmem>>, vector<2x32xf32>
    tpu.vector_store %arg13[%c0_29, %c0_30], %42 {strides = array<i32>} : memref<16x32xf32, #tpu.memory_space<vmem>>, vector<2x32xf32>,
    %c0_31 = arith.constant 0 : index
    %c0_32 = arith.constant 0 : index
    %46 = vector.load %arg15[%c0_31, %c0_32] : memref<2x32xf32, #tpu.memory_space<vmem>>, vector<2x32xf32>
    %c2 = arith.constant 2 : index
    %c0_33 = arith.constant 0 : index
    %47 = vector.load %arg12[%c2, %c0_33] : memref<16x128xf32, #tpu.memory_space<vmem>>, vector<2x128xf32>
    %48 = arith.truncf %46 : vector<2x32xf32> to vector<2x32xbf16>
    %cst_34 = arith.constant dense<0.000000e+00> : vector<2x128xf32>
    %49 = tpu.matmul %48, %11, %cst_34 {dimension_numbers = #tpu.dot_dimension_numbers<[1], [0], [0], [1], [0, 0, 1, 1], [], []>} : vector<2x32xbf16>, vector<32x128xbf16>, vector<2x128xf32> -> vector<2x128xf32>
    %50 = arith.addf %47, %49 : vector<2x128xf32>
    %51 = vector.extract_strided_slice %50 {offsets = [0, 0], sizes = [2, 32], strides = [1, 1]} : vector<2x128xf32> to vector<2x32xf32>
    %52 = arith.negf %51 : vector<2x32xf32>
    %53 = math.exp %52 : vector<2x32xf32>
    %cst_35 = arith.constant 1.000000e+00 : f32
    %54 = vector.broadcast %cst_35 : f32 to vector<2x32xf32>
    %55 = arith.addf %54, %53 : vector<2x32xf32>
    %56 = arith.divf %54, %55 : vector<2x32xf32>
    %57 = vector.extract_strided_slice %50 {offsets = [0, 32], sizes = [2, 32], strides = [1, 1]} : vector<2x128xf32> to vector<2x32xf32>
    %58 = arith.negf %57 : vector<2x32xf32>
    %59 = math.exp %58 : vector<2x32xf32>
    %cst_36 = arith.constant 1.000000e+00 : f32
    %60 = vector.broadcast %cst_36 : f32 to vector<2x32xf32>
    %61 = arith.addf %60, %59 : vector<2x32xf32>
    %62 = arith.divf %60, %61 : vector<2x32xf32>
    %63 = vector.extract_strided_slice %50 {offsets = [0, 64], sizes = [2, 32], strides = [1, 1]} : vector<2x128xf32> to vector<2x32xf32>
    %64 = math.tanh %63 : vector<2x32xf32>
    %65 = vector.extract_strided_slice %50 {offsets = [0, 96], sizes = [2, 32], strides = [1, 1]} : vector<2x128xf32> to vector<2x32xf32>
    %66 = arith.negf %65 : vector<2x32xf32>
    %67 = math.exp %66 : vector<2x32xf32>
    %cst_37 = arith.constant 1.000000e+00 : f32
    %68 = vector.broadcast %cst_37 : f32 to vector<2x32xf32>
    %69 = arith.addf %68, %67 : vector<2x32xf32>
    %70 = arith.divf %68, %69 : vector<2x32xf32>
    %c0_38 = arith.constant 0 : index
    %c0_39 = arith.constant 0 : index
    %71 = vector.load %arg16[%c0_38, %c0_39] : memref<2x32xf32, #tpu.memory_space<vmem>>, vector<2x32xf32>
    %72 = arith.mulf %62, %71 : vector<2x32xf32>
    %73 = arith.mulf %56, %64 : vector<2x32xf32>
    %74 = arith.addf %72, %73 : vector<2x32xf32>
    %75 = math.tanh %74 : vector<2x32xf32>
    %76 = arith.mulf %70, %75 : vector<2x32xf32>
    %c0_40 = arith.constant 0 : index
    %c0_41 = arith.constant 0 : index
    %77 = vector.load %arg16[%c0_40, %c0_41] : memref<2x32xf32, #tpu.memory_space<vmem>>, vector<2x32xf32>
    tpu.vector_store %arg16[%c0_40, %c0_41], %74 {strides = array<i32>} : memref<2x32xf32, #tpu.memory_space<vmem>>, vector<2x32xf32>,
    %c0_42 = arith.constant 0 : index
    %c0_43 = arith.constant 0 : index
    %78 = vector.load %arg15[%c0_42, %c0_43] : memref<2x32xf32, #tpu.memory_space<vmem>>, vector<2x32xf32>
    tpu.vector_store %arg15[%c0_42, %c0_43], %76 {strides = array<i32>} : memref<2x32xf32, #tpu.memory_space<vmem>>, vector<2x32xf32>,
    %c2_44 = arith.constant 2 : index
    %c0_45 = arith.constant 0 : index
    %79 = vector.load %arg13[%c2_44, %c0_45] : memref<16x32xf32, #tpu.memory_space<vmem>>, vector<2x32xf32>
    tpu.vector_store %arg13[%c2_44, %c0_45], %76 {strides = array<i32>} : memref<16x32xf32, #tpu.memory_space<vmem>>, vector<2x32xf32>,
    %c0_46 = arith.constant 0 : index
    %c0_47 = arith.constant 0 : index
    %80 = vector.load %arg15[%c0_46, %c0_47] : memref<2x32xf32, #tpu.memory_space<vmem>>, vector<2x32xf32>
    %c4 = arith.constant 4 : index
    %c0_48 = arith.constant 0 : index
    %81 = vector.load %arg12[%c4, %c0_48] : memref<16x128xf32, #tpu.memory_space<vmem>>, vector<2x128xf32>
    %82 = arith.truncf %80 : vector<2x32xf32> to vector<2x32xbf16>
    %cst_49 = arith.constant dense<0.000000e+00> : vector<2x128xf32>
    %83 = tpu.matmul %82, %11, %cst_49 {dimension_numbers = #tpu.dot_dimension_numbers<[1], [0], [0], [1], [0, 0, 1, 1], [], []>} : vector<2x32xbf16>, vector<32x128xbf16>, vector<2x128xf32> -> vector<2x128xf32>
    %84 = arith.addf %81, %83 : vector<2x128xf32>
    %85 = vector.extract_strided_slice %84 {offsets = [0, 0], sizes = [2, 32], strides = [1, 1]} : vector<2x128xf32> to vector<2x32xf32>
    %86 = arith.negf %85 : vector<2x32xf32>
    %87 = math.exp %86 : vector<2x32xf32>
    %cst_50 = arith.constant 1.000000e+00 : f32
    %88 = vector.broadcast %cst_50 : f32 to vector<2x32xf32>
    %89 = arith.addf %88, %87 : vector<2x32xf32>
    %90 = arith.divf %88, %89 : vector<2x32xf32>
    %91 = vector.extract_strided_slice %84 {offsets = [0, 32], sizes = [2, 32], strides = [1, 1]} : vector<2x128xf32> to vector<2x32xf32>
    %92 = arith.negf %91 : vector<2x32xf32>
    %93 = math.exp %92 : vector<2x32xf32>
    %cst_51 = arith.constant 1.000000e+00 : f32
    %94 = vector.broadcast %cst_51 : f32 to vector<2x32xf32>
    %95 = arith.addf %94, %93 : vector<2x32xf32>
    %96 = arith.divf %94, %95 : vector<2x32xf32>
    %97 = vector.extract_strided_slice %84 {offsets = [0, 64], sizes = [2, 32], strides = [1, 1]} : vector<2x128xf32> to vector<2x32xf32>
    %98 = math.tanh %97 : vector<2x32xf32>
    %99 = vector.extract_strided_slice %84 {offsets = [0, 96], sizes = [2, 32], strides = [1, 1]} : vector<2x128xf32> to vector<2x32xf32>
    %100 = arith.negf %99 : vector<2x32xf32>
    %101 = math.exp %100 : vector<2x32xf32>
    %cst_52 = arith.constant 1.000000e+00 : f32
    %102 = vector.broadcast %cst_52 : f32 to vector<2x32xf32>
    %103 = arith.addf %102, %101 : vector<2x32xf32>
    %104 = arith.divf %102, %103 : vector<2x32xf32>
    %c0_53 = arith.constant 0 : index
    %c0_54 = arith.constant 0 : index
    %105 = vector.load %arg16[%c0_53, %c0_54] : memref<2x32xf32, #tpu.memory_space<vmem>>, vector<2x32xf32>
    %106 = arith.mulf %96, %105 : vector<2x32xf32>
    %107 = arith.mulf %90, %98 : vector<2x32xf32>
    %108 = arith.addf %106, %107 : vector<2x32xf32>
    %109 = math.tanh %108 : vector<2x32xf32>
    %110 = arith.mulf %104, %109 : vector<2x32xf32>
    %c0_55 = arith.constant 0 : index
    %c0_56 = arith.constant 0 : index
    %111 = vector.load %arg16[%c0_55, %c0_56] : memref<2x32xf32, #tpu.memory_space<vmem>>, vector<2x32xf32>
    tpu.vector_store %arg16[%c0_55, %c0_56], %108 {strides = array<i32>} : memref<2x32xf32, #tpu.memory_space<vmem>>, vector<2x32xf32>,
    %c0_57 = arith.constant 0 : index
    %c0_58 = arith.constant 0 : index
    %112 = vector.load %arg15[%c0_57, %c0_58] : memref<2x32xf32, #tpu.memory_space<vmem>>, vector<2x32xf32>
    tpu.vector_store %arg15[%c0_57, %c0_58], %110 {strides = array<i32>} : memref<2x32xf32, #tpu.memory_space<vmem>>, vector<2x32xf32>,
    %c4_59 = arith.constant 4 : index
    %c0_60 = arith.constant 0 : index
    %113 = vector.load %arg13[%c4_59, %c0_60] : memref<16x32xf32, #tpu.memory_space<vmem>>, vector<2x32xf32>
    tpu.vector_store %arg13[%c4_59, %c0_60], %110 {strides = array<i32>} : memref<16x32xf32, #tpu.memory_space<vmem>>, vector<2x32xf32>,
    %c0_61 = arith.constant 0 : index
    %c0_62 = arith.constant 0 : index
    %114 = vector.load %arg15[%c0_61, %c0_62] : memref<2x32xf32, #tpu.memory_space<vmem>>, vector<2x32xf32>
    %c6 = arith.constant 6 : index
    %c0_63 = arith.constant 0 : index
    %115 = vector.load %arg12[%c6, %c0_63] : memref<16x128xf32, #tpu.memory_space<vmem>>, vector<2x128xf32>
    %116 = arith.truncf %114 : vector<2x32xf32> to vector<2x32xbf16>
    %cst_64 = arith.constant dense<0.000000e+00> : vector<2x128xf32>
    %117 = tpu.matmul %116, %11, %cst_64 {dimension_numbers = #tpu.dot_dimension_numbers<[1], [0], [0], [1], [0, 0, 1, 1], [], []>} : vector<2x32xbf16>, vector<32x128xbf16>, vector<2x128xf32> -> vector<2x128xf32>
    %118 = arith.addf %115, %117 : vector<2x128xf32>
    %119 = vector.extract_strided_slice %118 {offsets = [0, 0], sizes = [2, 32], strides = [1, 1]} : vector<2x128xf32> to vector<2x32xf32>
    %120 = arith.negf %119 : vector<2x32xf32>
    %121 = math.exp %120 : vector<2x32xf32>
    %cst_65 = arith.constant 1.000000e+00 : f32
    %122 = vector.broadcast %cst_65 : f32 to vector<2x32xf32>
    %123 = arith.addf %122, %121 : vector<2x32xf32>
    %124 = arith.divf %122, %123 : vector<2x32xf32>
    %125 = vector.extract_strided_slice %118 {offsets = [0, 32], sizes = [2, 32], strides = [1, 1]} : vector<2x128xf32> to vector<2x32xf32>
    %126 = arith.negf %125 : vector<2x32xf32>
    %127 = math.exp %126 : vector<2x32xf32>
    %cst_66 = arith.constant 1.000000e+00 : f32
    %128 = vector.broadcast %cst_66 : f32 to vector<2x32xf32>
    %129 = arith.addf %128, %127 : vector<2x32xf32>
    %130 = arith.divf %128, %129 : vector<2x32xf32>
    %131 = vector.extract_strided_slice %118 {offsets = [0, 64], sizes = [2, 32], strides = [1, 1]} : vector<2x128xf32> to vector<2x32xf32>
    %132 = math.tanh %131 : vector<2x32xf32>
    %133 = vector.extract_strided_slice %118 {offsets = [0, 96], sizes = [2, 32], strides = [1, 1]} : vector<2x128xf32> to vector<2x32xf32>
    %134 = arith.negf %133 : vector<2x32xf32>
    %135 = math.exp %134 : vector<2x32xf32>
    %cst_67 = arith.constant 1.000000e+00 : f32
    %136 = vector.broadcast %cst_67 : f32 to vector<2x32xf32>
    %137 = arith.addf %136, %135 : vector<2x32xf32>
    %138 = arith.divf %136, %137 : vector<2x32xf32>
    %c0_68 = arith.constant 0 : index
    %c0_69 = arith.constant 0 : index
    %139 = vector.load %arg16[%c0_68, %c0_69] : memref<2x32xf32, #tpu.memory_space<vmem>>, vector<2x32xf32>
    %140 = arith.mulf %130, %139 : vector<2x32xf32>
    %141 = arith.mulf %124, %132 : vector<2x32xf32>
    %142 = arith.addf %140, %141 : vector<2x32xf32>
    %143 = math.tanh %142 : vector<2x32xf32>
    %144 = arith.mulf %138, %143 : vector<2x32xf32>
    %c0_70 = arith.constant 0 : index
    %c0_71 = arith.constant 0 : index
    %145 = vector.load %arg16[%c0_70, %c0_71] : memref<2x32xf32, #tpu.memory_space<vmem>>, vector<2x32xf32>
    tpu.vector_store %arg16[%c0_70, %c0_71], %142 {strides = array<i32>} : memref<2x32xf32, #tpu.memory_space<vmem>>, vector<2x32xf32>,
    %c0_72 = arith.constant 0 : index
    %c0_73 = arith.constant 0 : index
    %146 = vector.load %arg15[%c0_72, %c0_73] : memref<2x32xf32, #tpu.memory_space<vmem>>, vector<2x32xf32>
    tpu.vector_store %arg15[%c0_72, %c0_73], %144 {strides = array<i32>} : memref<2x32xf32, #tpu.memory_space<vmem>>, vector<2x32xf32>,
    %c6_74 = arith.constant 6 : index
    %c0_75 = arith.constant 0 : index
    %147 = vector.load %arg13[%c6_74, %c0_75] : memref<16x32xf32, #tpu.memory_space<vmem>>, vector<2x32xf32>
    tpu.vector_store %arg13[%c6_74, %c0_75], %144 {strides = array<i32>} : memref<16x32xf32, #tpu.memory_space<vmem>>, vector<2x32xf32>,
    %c0_76 = arith.constant 0 : index
    %c0_77 = arith.constant 0 : index
    %148 = vector.load %arg15[%c0_76, %c0_77] : memref<2x32xf32, #tpu.memory_space<vmem>>, vector<2x32xf32>
    %c8 = arith.constant 8 : index
    %c0_78 = arith.constant 0 : index
    %149 = vector.load %arg12[%c8, %c0_78] : memref<16x128xf32, #tpu.memory_space<vmem>>, vector<2x128xf32>
    %150 = arith.truncf %148 : vector<2x32xf32> to vector<2x32xbf16>
    %cst_79 = arith.constant dense<0.000000e+00> : vector<2x128xf32>
    %151 = tpu.matmul %150, %11, %cst_79 {dimension_numbers = #tpu.dot_dimension_numbers<[1], [0], [0], [1], [0, 0, 1, 1], [], []>} : vector<2x32xbf16>, vector<32x128xbf16>, vector<2x128xf32> -> vector<2x128xf32>
    %152 = arith.addf %149, %151 : vector<2x128xf32>
    %153 = vector.extract_strided_slice %152 {offsets = [0, 0], sizes = [2, 32], strides = [1, 1]} : vector<2x128xf32> to vector<2x32xf32>
    %154 = arith.negf %153 : vector<2x32xf32>
    %155 = math.exp %154 : vector<2x32xf32>
    %cst_80 = arith.constant 1.000000e+00 : f32
    %156 = vector.broadcast %cst_80 : f32 to vector<2x32xf32>
    %157 = arith.addf %156, %155 : vector<2x32xf32>
    %158 = arith.divf %156, %157 : vector<2x32xf32>
    %159 = vector.extract_strided_slice %152 {offsets = [0, 32], sizes = [2, 32], strides = [1, 1]} : vector<2x128xf32> to vector<2x32xf32>
    %160 = arith.negf %159 : vector<2x32xf32>
    %161 = math.exp %160 : vector<2x32xf32>
    %cst_81 = arith.constant 1.000000e+00 : f32
    %162 = vector.broadcast %cst_81 : f32 to vector<2x32xf32>
    %163 = arith.addf %162, %161 : vector<2x32xf32>
    %164 = arith.divf %162, %163 : vector<2x32xf32>
    %165 = vector.extract_strided_slice %152 {offsets = [0, 64], sizes = [2, 32], strides = [1, 1]} : vector<2x128xf32> to vector<2x32xf32>
    %166 = math.tanh %165 : vector<2x32xf32>
    %167 = vector.extract_strided_slice %152 {offsets = [0, 96], sizes = [2, 32], strides = [1, 1]} : vector<2x128xf32> to vector<2x32xf32>
    %168 = arith.negf %167 : vector<2x32xf32>
    %169 = math.exp %168 : vector<2x32xf32>
    %cst_82 = arith.constant 1.000000e+00 : f32
    %170 = vector.broadcast %cst_82 : f32 to vector<2x32xf32>
    %171 = arith.addf %170, %169 : vector<2x32xf32>
    %172 = arith.divf %170, %171 : vector<2x32xf32>
    %c0_83 = arith.constant 0 : index
    %c0_84 = arith.constant 0 : index
    %173 = vector.load %arg16[%c0_83, %c0_84] : memref<2x32xf32, #tpu.memory_space<vmem>>, vector<2x32xf32>
    %174 = arith.mulf %164, %173 : vector<2x32xf32>
    %175 = arith.mulf %158, %166 : vector<2x32xf32>
    %176 = arith.addf %174, %175 : vector<2x32xf32>
    %177 = math.tanh %176 : vector<2x32xf32>
    %178 = arith.mulf %172, %177 : vector<2x32xf32>
    %c0_85 = arith.constant 0 : index
    %c0_86 = arith.constant 0 : index
    %179 = vector.load %arg16[%c0_85, %c0_86] : memref<2x32xf32, #tpu.memory_space<vmem>>, vector<2x32xf32>
    tpu.vector_store %arg16[%c0_85, %c0_86], %176 {strides = array<i32>} : memref<2x32xf32, #tpu.memory_space<vmem>>, vector<2x32xf32>,
    %c0_87 = arith.constant 0 : index
    %c0_88 = arith.constant 0 : index
    %180 = vector.load %arg15[%c0_87, %c0_88] : memref<2x32xf32, #tpu.memory_space<vmem>>, vector<2x32xf32>
    tpu.vector_store %arg15[%c0_87, %c0_88], %178 {strides = array<i32>} : memref<2x32xf32, #tpu.memory_space<vmem>>, vector<2x32xf32>,
    %c8_89 = arith.constant 8 : index
    %c0_90 = arith.constant 0 : index
    %181 = vector.load %arg13[%c8_89, %c0_90] : memref<16x32xf32, #tpu.memory_space<vmem>>, vector<2x32xf32>
    tpu.vector_store %arg13[%c8_89, %c0_90], %178 {strides = array<i32>} : memref<16x32xf32, #tpu.memory_space<vmem>>, vector<2x32xf32>,
    %c0_91 = arith.constant 0 : index
    %c0_92 = arith.constant 0 : index
    %182 = vector.load %arg15[%c0_91, %c0_92] : memref<2x32xf32, #tpu.memory_space<vmem>>, vector<2x32xf32>
    %c10 = arith.constant 10 : index
    %c0_93 = arith.constant 0 : index
    %183 = vector.load %arg12[%c10, %c0_93] : memref<16x128xf32, #tpu.memory_space<vmem>>, vector<2x128xf32>
    %184 = arith.truncf %182 : vector<2x32xf32> to vector<2x32xbf16>
    %cst_94 = arith.constant dense<0.000000e+00> : vector<2x128xf32>
    %185 = tpu.matmul %184, %11, %cst_94 {dimension_numbers = #tpu.dot_dimension_numbers<[1], [0], [0], [1], [0, 0, 1, 1], [], []>} : vector<2x32xbf16>, vector<32x128xbf16>, vector<2x128xf32> -> vector<2x128xf32>
    %186 = arith.addf %183, %185 : vector<2x128xf32>
    %187 = vector.extract_strided_slice %186 {offsets = [0, 0], sizes = [2, 32], strides = [1, 1]} : vector<2x128xf32> to vector<2x32xf32>
    %188 = arith.negf %187 : vector<2x32xf32>
    %189 = math.exp %188 : vector<2x32xf32>
    %cst_95 = arith.constant 1.000000e+00 : f32
    %190 = vector.broadcast %cst_95 : f32 to vector<2x32xf32>
    %191 = arith.addf %190, %189 : vector<2x32xf32>
    %192 = arith.divf %190, %191 : vector<2x32xf32>
    %193 = vector.extract_strided_slice %186 {offsets = [0, 32], sizes = [2, 32], strides = [1, 1]} : vector<2x128xf32> to vector<2x32xf32>
    %194 = arith.negf %193 : vector<2x32xf32>
    %195 = math.exp %194 : vector<2x32xf32>
    %cst_96 = arith.constant 1.000000e+00 : f32
    %196 = vector.broadcast %cst_96 : f32 to vector<2x32xf32>
    %197 = arith.addf %196, %195 : vector<2x32xf32>
    %198 = arith.divf %196, %197 : vector<2x32xf32>
    %199 = vector.extract_strided_slice %186 {offsets = [0, 64], sizes = [2, 32], strides = [1, 1]} : vector<2x128xf32> to vector<2x32xf32>
    %200 = math.tanh %199 : vector<2x32xf32>
    %201 = vector.extract_strided_slice %186 {offsets = [0, 96], sizes = [2, 32], strides = [1, 1]} : vector<2x128xf32> to vector<2x32xf32>
    %202 = arith.negf %201 : vector<2x32xf32>
    %203 = math.exp %202 : vector<2x32xf32>
    %cst_97 = arith.constant 1.000000e+00 : f32
    %204 = vector.broadcast %cst_97 : f32 to vector<2x32xf32>
    %205 = arith.addf %204, %203 : vector<2x32xf32>
    %206 = arith.divf %204, %205 : vector<2x32xf32>
    %c0_98 = arith.constant 0 : index
    %c0_99 = arith.constant 0 : index
    %207 = vector.load %arg16[%c0_98, %c0_99] : memref<2x32xf32, #tpu.memory_space<vmem>>, vector<2x32xf32>
    %208 = arith.mulf %198, %207 : vector<2x32xf32>
    %209 = arith.mulf %192, %200 : vector<2x32xf32>
    %210 = arith.addf %208, %209 : vector<2x32xf32>
    %211 = math.tanh %210 : vector<2x32xf32>
    %212 = arith.mulf %206, %211 : vector<2x32xf32>
    %c0_100 = arith.constant 0 : index
    %c0_101 = arith.constant 0 : index
    %213 = vector.load %arg16[%c0_100, %c0_101] : memref<2x32xf32, #tpu.memory_space<vmem>>, vector<2x32xf32>
    tpu.vector_store %arg16[%c0_100, %c0_101], %210 {strides = array<i32>} : memref<2x32xf32, #tpu.memory_space<vmem>>, vector<2x32xf32>,
    %c0_102 = arith.constant 0 : index
    %c0_103 = arith.constant 0 : index
    %214 = vector.load %arg15[%c0_102, %c0_103] : memref<2x32xf32, #tpu.memory_space<vmem>>, vector<2x32xf32>
    tpu.vector_store %arg15[%c0_102, %c0_103], %212 {strides = array<i32>} : memref<2x32xf32, #tpu.memory_space<vmem>>, vector<2x32xf32>,
    %c10_104 = arith.constant 10 : index
    %c0_105 = arith.constant 0 : index
    %215 = vector.load %arg13[%c10_104, %c0_105] : memref<16x32xf32, #tpu.memory_space<vmem>>, vector<2x32xf32>
    tpu.vector_store %arg13[%c10_104, %c0_105], %212 {strides = array<i32>} : memref<16x32xf32, #tpu.memory_space<vmem>>, vector<2x32xf32>,
    %c0_106 = arith.constant 0 : index
    %c0_107 = arith.constant 0 : index
    %216 = vector.load %arg15[%c0_106, %c0_107] : memref<2x32xf32, #tpu.memory_space<vmem>>, vector<2x32xf32>
    %c12 = arith.constant 12 : index
    %c0_108 = arith.constant 0 : index
    %217 = vector.load %arg12[%c12, %c0_108] : memref<16x128xf32, #tpu.memory_space<vmem>>, vector<2x128xf32>
    %218 = arith.truncf %216 : vector<2x32xf32> to vector<2x32xbf16>
    %cst_109 = arith.constant dense<0.000000e+00> : vector<2x128xf32>
    %219 = tpu.matmul %218, %11, %cst_109 {dimension_numbers = #tpu.dot_dimension_numbers<[1], [0], [0], [1], [0, 0, 1, 1], [], []>} : vector<2x32xbf16>, vector<32x128xbf16>, vector<2x128xf32> -> vector<2x128xf32>
    %220 = arith.addf %217, %219 : vector<2x128xf32>
    %221 = vector.extract_strided_slice %220 {offsets = [0, 0], sizes = [2, 32], strides = [1, 1]} : vector<2x128xf32> to vector<2x32xf32>
    %222 = arith.negf %221 : vector<2x32xf32>
    %223 = math.exp %222 : vector<2x32xf32>
    %cst_110 = arith.constant 1.000000e+00 : f32
    %224 = vector.broadcast %cst_110 : f32 to vector<2x32xf32>
    %225 = arith.addf %224, %223 : vector<2x32xf32>
    %226 = arith.divf %224, %225 : vector<2x32xf32>
    %227 = vector.extract_strided_slice %220 {offsets = [0, 32], sizes = [2, 32], strides = [1, 1]} : vector<2x128xf32> to vector<2x32xf32>
    %228 = arith.negf %227 : vector<2x32xf32>
    %229 = math.exp %228 : vector<2x32xf32>
    %cst_111 = arith.constant 1.000000e+00 : f32
    %230 = vector.broadcast %cst_111 : f32 to vector<2x32xf32>
    %231 = arith.addf %230, %229 : vector<2x32xf32>
    %232 = arith.divf %230, %231 : vector<2x32xf32>
    %233 = vector.extract_strided_slice %220 {offsets = [0, 64], sizes = [2, 32], strides = [1, 1]} : vector<2x128xf32> to vector<2x32xf32>
    %234 = math.tanh %233 : vector<2x32xf32>
    %235 = vector.extract_strided_slice %220 {offsets = [0, 96], sizes = [2, 32], strides = [1, 1]} : vector<2x128xf32> to vector<2x32xf32>
    %236 = arith.negf %235 : vector<2x32xf32>
    %237 = math.exp %236 : vector<2x32xf32>
    %cst_112 = arith.constant 1.000000e+00 : f32
    %238 = vector.broadcast %cst_112 : f32 to vector<2x32xf32>
    %239 = arith.addf %238, %237 : vector<2x32xf32>
    %240 = arith.divf %238, %239 : vector<2x32xf32>
    %c0_113 = arith.constant 0 : index
    %c0_114 = arith.constant 0 : index
    %241 = vector.load %arg16[%c0_113, %c0_114] : memref<2x32xf32, #tpu.memory_space<vmem>>, vector<2x32xf32>
    %242 = arith.mulf %232, %241 : vector<2x32xf32>
    %243 = arith.mulf %226, %234 : vector<2x32xf32>
    %244 = arith.addf %242, %243 : vector<2x32xf32>
    %245 = math.tanh %244 : vector<2x32xf32>
    %246 = arith.mulf %240, %245 : vector<2x32xf32>
    %c0_115 = arith.constant 0 : index
    %c0_116 = arith.constant 0 : index
    %247 = vector.load %arg16[%c0_115, %c0_116] : memref<2x32xf32, #tpu.memory_space<vmem>>, vector<2x32xf32>
    tpu.vector_store %arg16[%c0_115, %c0_116], %244 {strides = array<i32>} : memref<2x32xf32, #tpu.memory_space<vmem>>, vector<2x32xf32>,
    %c0_117 = arith.constant 0 : index
    %c0_118 = arith.constant 0 : index
    %248 = vector.load %arg15[%c0_117, %c0_118] : memref<2x32xf32, #tpu.memory_space<vmem>>, vector<2x32xf32>
    tpu.vector_store %arg15[%c0_117, %c0_118], %246 {strides = array<i32>} : memref<2x32xf32, #tpu.memory_space<vmem>>, vector<2x32xf32>,
    %c12_119 = arith.constant 12 : index
    %c0_120 = arith.constant 0 : index
    %249 = vector.load %arg13[%c12_119, %c0_120] : memref<16x32xf32, #tpu.memory_space<vmem>>, vector<2x32xf32>
    tpu.vector_store %arg13[%c12_119, %c0_120], %246 {strides = array<i32>} : memref<16x32xf32, #tpu.memory_space<vmem>>, vector<2x32xf32>,
    %c0_121 = arith.constant 0 : index
    %c0_122 = arith.constant 0 : index
    %250 = vector.load %arg15[%c0_121, %c0_122] : memref<2x32xf32, #tpu.memory_space<vmem>>, vector<2x32xf32>
    %c14 = arith.constant 14 : index
    %c0_123 = arith.constant 0 : index
    %251 = vector.load %arg12[%c14, %c0_123] : memref<16x128xf32, #tpu.memory_space<vmem>>, vector<2x128xf32>
    %252 = arith.truncf %250 : vector<2x32xf32> to vector<2x32xbf16>
    %cst_124 = arith.constant dense<0.000000e+00> : vector<2x128xf32>
    %253 = tpu.matmul %252, %11, %cst_124 {dimension_numbers = #tpu.dot_dimension_numbers<[1], [0], [0], [1], [0, 0, 1, 1], [], []>} : vector<2x32xbf16>, vector<32x128xbf16>, vector<2x128xf32> -> vector<2x128xf32>
    %254 = arith.addf %251, %253 : vector<2x128xf32>
    %255 = vector.extract_strided_slice %254 {offsets = [0, 0], sizes = [2, 32], strides = [1, 1]} : vector<2x128xf32> to vector<2x32xf32>
    %256 = arith.negf %255 : vector<2x32xf32>
    %257 = math.exp %256 : vector<2x32xf32>
    %cst_125 = arith.constant 1.000000e+00 : f32
    %258 = vector.broadcast %cst_125 : f32 to vector<2x32xf32>
    %259 = arith.addf %258, %257 : vector<2x32xf32>
    %260 = arith.divf %258, %259 : vector<2x32xf32>
    %261 = vector.extract_strided_slice %254 {offsets = [0, 32], sizes = [2, 32], strides = [1, 1]} : vector<2x128xf32> to vector<2x32xf32>
    %262 = arith.negf %261 : vector<2x32xf32>
    %263 = math.exp %262 : vector<2x32xf32>
    %cst_126 = arith.constant 1.000000e+00 : f32
    %264 = vector.broadcast %cst_126 : f32 to vector<2x32xf32>
    %265 = arith.addf %264, %263 : vector<2x32xf32>
    %266 = arith.divf %264, %265 : vector<2x32xf32>
    %267 = vector.extract_strided_slice %254 {offsets = [0, 64], sizes = [2, 32], strides = [1, 1]} : vector<2x128xf32> to vector<2x32xf32>
    %268 = math.tanh %267 : vector<2x32xf32>
    %269 = vector.extract_strided_slice %254 {offsets = [0, 96], sizes = [2, 32], strides = [1, 1]} : vector<2x128xf32> to vector<2x32xf32>
    %270 = arith.negf %269 : vector<2x32xf32>
    %271 = math.exp %270 : vector<2x32xf32>
    %cst_127 = arith.constant 1.000000e+00 : f32
    %272 = vector.broadcast %cst_127 : f32 to vector<2x32xf32>
    %273 = arith.addf %272, %271 : vector<2x32xf32>
    %274 = arith.divf %272, %273 : vector<2x32xf32>
    %c0_128 = arith.constant 0 : index
    %c0_129 = arith.constant 0 : index
    %275 = vector.load %arg16[%c0_128, %c0_129] : memref<2x32xf32, #tpu.memory_space<vmem>>, vector<2x32xf32>
    %276 = arith.mulf %266, %275 : vector<2x32xf32>
    %277 = arith.mulf %260, %268 : vector<2x32xf32>
    %278 = arith.addf %276, %277 : vector<2x32xf32>
    %279 = math.tanh %278 : vector<2x32xf32>
    %280 = arith.mulf %274, %279 : vector<2x32xf32>
    %c0_130 = arith.constant 0 : index
    %c0_131 = arith.constant 0 : index
    %281 = vector.load %arg16[%c0_130, %c0_131] : memref<2x32xf32, #tpu.memory_space<vmem>>, vector<2x32xf32>
    tpu.vector_store %arg16[%c0_130, %c0_131], %278 {strides = array<i32>} : memref<2x32xf32, #tpu.memory_space<vmem>>, vector<2x32xf32>,
    %c0_132 = arith.constant 0 : index
    %c0_133 = arith.constant 0 : index
    %282 = vector.load %arg15[%c0_132, %c0_133] : memref<2x32xf32, #tpu.memory_space<vmem>>, vector<2x32xf32>
    tpu.vector_store %arg15[%c0_132, %c0_133], %280 {strides = array<i32>} : memref<2x32xf32, #tpu.memory_space<vmem>>, vector<2x32xf32>,
    %c14_134 = arith.constant 14 : index
    %c0_135 = arith.constant 0 : index
    %283 = vector.load %arg13[%c14_134, %c0_135] : memref<16x32xf32, #tpu.memory_space<vmem>>, vector<2x32xf32>
    tpu.vector_store %arg13[%c14_134, %c0_135], %280 {strides = array<i32>} : memref<16x32xf32, #tpu.memory_space<vmem>>, vector<2x32xf32>,
    %c0_136 = arith.constant 0 : index
    %c0_137 = arith.constant 0 : index
    %284 = vector.load %arg13[%c0_136, %c0_137] : memref<16x32xf32, #tpu.memory_space<vmem>>, vector<16x32xf32>
    %285 = arith.truncf %284 : vector<16x32xf32> to vector<16x32xbf16>
    %c0_138 = arith.constant 0 : index
    %c0_139 = arith.constant 0 : index
    %286 = vector.load %arg5[%c0_138, %c0_139] : memref<32x32xbf16, #tpu.memory_space<vmem>>, vector<32x32xbf16>
    %cst_140 = arith.constant dense<0.000000e+00> : vector<16x32xf32>
    %287 = tpu.matmul %285, %286, %cst_140 {dimension_numbers = #tpu.dot_dimension_numbers<[1], [0], [0], [1], [0, 0, 1, 1], [], []>} : vector<16x32xbf16>, vector<32x32xbf16>, vector<16x32xf32> -> vector<16x32xf32>
    tpu.wait_dma2 semaphore(%arg17 : memref<!tpu.dma_semaphore, #tpu.memory_space<semaphore_mem>>) src(%arg1 : memref<16x8x32xbf16, #tpu.memory_space<any>>) dst(%arg14 : memref<16x8x32xbf16, #tpu.memory_space<vmem>>)
    %c0_141 = arith.constant 0 : index
    %c0_142 = arith.constant 0 : index
    %c0_143 = arith.constant 0 : index
    %288 = vector.load %arg14[%c0_141, %c0_142, %c0_143] : memref<16x8x32xbf16, #tpu.memory_space<vmem>>, vector<16x8x32xbf16>
    %289 = arith.extf %288 : vector<16x8x32xbf16> to vector<16x8x32xf32>
    %290 = vector.shape_cast %287 : vector<16x32xf32> to vector<16x1x32xf32>
    %291 = vector.broadcast %290 : vector<16x1x32xf32> to vector<16x8x32xf32>
    %292 = arith.mulf %289, %291 : vector<16x8x32xf32>
    %cst_144 = arith.constant dense<0.000000e+00> : vector<16x8xf32>
    %293 = vector.multi_reduction <add>, %292, %cst_144 [2] : vector<16x8x32xf32> to vector<16x8xf32>
    %cst_145 = arith.constant dense<0xFF800000> : vector<16xf32>
    %294 = vector.multi_reduction <maximumf>, %293, %cst_145 [1] : vector<16x8xf32> to vector<16xf32>
    %295 = vector.shape_cast %294 : vector<16xf32> to vector<16x1xf32>
    %296 = vector.broadcast %295 : vector<16x1xf32> to vector<16x8xf32>
    %297 = arith.subf %293, %296 : vector<16x8xf32>
    %298 = math.exp %297 : vector<16x8xf32>
    %cst_146 = arith.constant dense<0.000000e+00> : vector<16xf32>
    %299 = vector.multi_reduction <add>, %298, %cst_146 [1] : vector<16x8xf32> to vector<16xf32>
    %300 = vector.shape_cast %299 : vector<16xf32> to vector<16x1xf32>
    %301 = tpu.reciprocal %300 {approx = true} : vector<16x1xf32> -> vector<16x1xf32>
    %302 = vector.broadcast %301 : vector<16x1xf32> to vector<16x8xf32>
    %303 = arith.mulf %298, %302 : vector<16x8xf32>
    %304 = vector.shape_cast %303 : vector<16x8xf32> to vector<16x8x1xf32>
    %305 = vector.broadcast %304 : vector<16x8x1xf32> to vector<16x8x32xf32>
    %306 = arith.mulf %305, %289 : vector<16x8x32xf32>
    %cst_147 = arith.constant dense<0.000000e+00> : vector<16x32xf32>
    %307 = vector.multi_reduction <add>, %306, %cst_147 [1] : vector<16x8x32xf32> to vector<16x32xf32>
    %308 = arith.truncf %307 : vector<16x32xf32> to vector<16x32xbf16>
    %c0_148 = arith.constant 0 : index
    %c0_149 = arith.constant 0 : index
    %309 = vector.load %arg6[%c0_148, %c0_149] : memref<32x32xbf16, #tpu.memory_space<vmem>>, vector<32x32xbf16>
    %cst_150 = arith.constant dense<0.000000e+00> : vector<16x32xf32>
    %310 = tpu.matmul %308, %309, %cst_150 {dimension_numbers = #tpu.dot_dimension_numbers<[1], [0], [0], [1], [0, 0, 1, 1], [], []>} : vector<16x32xbf16>, vector<32x32xbf16>, vector<16x32xf32> -> vector<16x32xf32>
    %311 = arith.truncf %284 : vector<16x32xf32> to vector<16x32xbf16>
    %c0_151 = arith.constant 0 : index
    %c0_152 = arith.constant 0 : index
    %312 = vector.load %arg7[%c0_151, %c0_152] : memref<32x32xbf16, #tpu.memory_space<vmem>>, vector<32x32xbf16>
    %cst_153 = arith.constant dense<0.000000e+00> : vector<16x32xf32>
    %313 = tpu.matmul %311, %312, %cst_153 {dimension_numbers = #tpu.dot_dimension_numbers<[1], [0], [0], [1], [0, 0, 1, 1], [], []>} : vector<16x32xbf16>, vector<32x32xbf16>, vector<16x32xf32> -> vector<16x32xf32>
    %314 = arith.addf %310, %313 : vector<16x32xf32>
    %315 = math.tanh %314 : vector<16x32xf32>
    %316 = arith.truncf %315 : vector<16x32xf32> to vector<16x32xbf16>
    %c0_154 = arith.constant 0 : index
    %c0_155 = arith.constant 0 : index
    %317 = vector.load %arg8[%c0_154, %c0_155] : memref<32x128xbf16, #tpu.memory_space<vmem>>, vector<32x128xbf16>
    %cst_156 = arith.constant dense<0.000000e+00> : vector<16x128xf32>
    %318 = tpu.matmul %316, %317, %cst_156 {dimension_numbers = #tpu.dot_dimension_numbers<[1], [0], [0], [1], [0, 0, 1, 1], [], []>} : vector<16x32xbf16>, vector<32x128xbf16>, vector<16x128xf32> -> vector<16x128xf32>
    %c0_157 = arith.constant 0 : index
    %c0_158 = arith.constant 0 : index
    %319 = vector.load %arg10[%c0_157, %c0_158] : memref<1x128xf32, #tpu.memory_space<vmem>>, vector<1x128xf32>
    %320 = vector.broadcast %319 : vector<1x128xf32> to vector<16x128xf32>
    %321 = arith.addf %318, %320 : vector<16x128xf32>
    %c0_159 = arith.constant 0 : index
    %c0_160 = arith.constant 0 : index
    %322 = vector.load %arg12[%c0_159, %c0_160] : memref<16x128xf32, #tpu.memory_space<vmem>>, vector<16x128xf32>
    tpu.vector_store %arg12[%c0_159, %c0_160], %321 {strides = array<i32>} : memref<16x128xf32, #tpu.memory_space<vmem>>, vector<16x128xf32>,
    %cst_161 = arith.constant 0.000000e+00 : f32
    %323 = vector.broadcast %cst_161 : f32 to vector<2x32xf32>
    %c0_162 = arith.constant 0 : index
    %c0_163 = arith.constant 0 : index
    %324 = vector.load %arg15[%c0_162, %c0_163] : memref<2x32xf32, #tpu.memory_space<vmem>>, vector<2x32xf32>
    tpu.vector_store %arg15[%c0_162, %c0_163], %323 {strides = array<i32>} : memref<2x32xf32, #tpu.memory_space<vmem>>, vector<2x32xf32>,
    %cst_164 = arith.constant 0.000000e+00 : f32
    %325 = vector.broadcast %cst_164 : f32 to vector<2x32xf32>
    %c0_165 = arith.constant 0 : index
    %c0_166 = arith.constant 0 : index
    %326 = vector.load %arg16[%c0_165, %c0_166] : memref<2x32xf32, #tpu.memory_space<vmem>>, vector<2x32xf32>
    tpu.vector_store %arg16[%c0_165, %c0_166], %325 {strides = array<i32>} : memref<2x32xf32, #tpu.memory_space<vmem>>, vector<2x32xf32>,
    %c0_167 = arith.constant 0 : index
    %c0_168 = arith.constant 0 : index
    %327 = vector.load %arg9[%c0_167, %c0_168] : memref<32x128xbf16, #tpu.memory_space<vmem>>, vector<32x128xbf16>
    %c0_169 = arith.constant 0 : index
    %c0_170 = arith.constant 0 : index
    %328 = vector.load %arg15[%c0_169, %c0_170] : memref<2x32xf32, #tpu.memory_space<vmem>>, vector<2x32xf32>
    %c0_171 = arith.constant 0 : index
    %c0_172 = arith.constant 0 : index
    %329 = vector.load %arg12[%c0_171, %c0_172] : memref<16x128xf32, #tpu.memory_space<vmem>>, vector<2x128xf32>
    %330 = arith.truncf %328 : vector<2x32xf32> to vector<2x32xbf16>
    %cst_173 = arith.constant dense<0.000000e+00> : vector<2x128xf32>
    %331 = tpu.matmul %330, %327, %cst_173 {dimension_numbers = #tpu.dot_dimension_numbers<[1], [0], [0], [1], [0, 0, 1, 1], [], []>} : vector<2x32xbf16>, vector<32x128xbf16>, vector<2x128xf32> -> vector<2x128xf32>
    %332 = arith.addf %329, %331 : vector<2x128xf32>
    %333 = vector.extract_strided_slice %332 {offsets = [0, 0], sizes = [2, 32], strides = [1, 1]} : vector<2x128xf32> to vector<2x32xf32>
    %334 = arith.negf %333 : vector<2x32xf32>
    %335 = math.exp %334 : vector<2x32xf32>
    %cst_174 = arith.constant 1.000000e+00 : f32
    %336 = vector.broadcast %cst_174 : f32 to vector<2x32xf32>
    %337 = arith.addf %336, %335 : vector<2x32xf32>
    %338 = arith.divf %336, %337 : vector<2x32xf32>
    %339 = vector.extract_strided_slice %332 {offsets = [0, 32], sizes = [2, 32], strides = [1, 1]} : vector<2x128xf32> to vector<2x32xf32>
    %340 = arith.negf %339 : vector<2x32xf32>
    %341 = math.exp %340 : vector<2x32xf32>
    %cst_175 = arith.constant 1.000000e+00 : f32
    %342 = vector.broadcast %cst_175 : f32 to vector<2x32xf32>
    %343 = arith.addf %342, %341 : vector<2x32xf32>
    %344 = arith.divf %342, %343 : vector<2x32xf32>
    %345 = vector.extract_strided_slice %332 {offsets = [0, 64], sizes = [2, 32], strides = [1, 1]} : vector<2x128xf32> to vector<2x32xf32>
    %346 = math.tanh %345 : vector<2x32xf32>
    %347 = vector.extract_strided_slice %332 {offsets = [0, 96], sizes = [2, 32], strides = [1, 1]} : vector<2x128xf32> to vector<2x32xf32>
    %348 = arith.negf %347 : vector<2x32xf32>
    %349 = math.exp %348 : vector<2x32xf32>
    %cst_176 = arith.constant 1.000000e+00 : f32
    %350 = vector.broadcast %cst_176 : f32 to vector<2x32xf32>
    %351 = arith.addf %350, %349 : vector<2x32xf32>
    %352 = arith.divf %350, %351 : vector<2x32xf32>
    %c0_177 = arith.constant 0 : index
    %c0_178 = arith.constant 0 : index
    %353 = vector.load %arg16[%c0_177, %c0_178] : memref<2x32xf32, #tpu.memory_space<vmem>>, vector<2x32xf32>
    %354 = arith.mulf %344, %353 : vector<2x32xf32>
    %355 = arith.mulf %338, %346 : vector<2x32xf32>
    %356 = arith.addf %354, %355 : vector<2x32xf32>
    %357 = math.tanh %356 : vector<2x32xf32>
    %358 = arith.mulf %352, %357 : vector<2x32xf32>
    %c0_179 = arith.constant 0 : index
    %c0_180 = arith.constant 0 : index
    %359 = vector.load %arg16[%c0_179, %c0_180] : memref<2x32xf32, #tpu.memory_space<vmem>>, vector<2x32xf32>
    tpu.vector_store %arg16[%c0_179, %c0_180], %356 {strides = array<i32>} : memref<2x32xf32, #tpu.memory_space<vmem>>, vector<2x32xf32>,
    %c0_181 = arith.constant 0 : index
    %c0_182 = arith.constant 0 : index
    %360 = vector.load %arg15[%c0_181, %c0_182] : memref<2x32xf32, #tpu.memory_space<vmem>>, vector<2x32xf32>
    tpu.vector_store %arg15[%c0_181, %c0_182], %358 {strides = array<i32>} : memref<2x32xf32, #tpu.memory_space<vmem>>, vector<2x32xf32>,
    %c0_183 = arith.constant 0 : index
    %c0_184 = arith.constant 0 : index
    %361 = vector.load %arg13[%c0_183, %c0_184] : memref<16x32xf32, #tpu.memory_space<vmem>>, vector<2x32xf32>
    tpu.vector_store %arg13[%c0_183, %c0_184], %358 {strides = array<i32>} : memref<16x32xf32, #tpu.memory_space<vmem>>, vector<2x32xf32>,
    %c0_185 = arith.constant 0 : index
    %c0_186 = arith.constant 0 : index
    %362 = vector.load %arg15[%c0_185, %c0_186] : memref<2x32xf32, #tpu.memory_space<vmem>>, vector<2x32xf32>
    %c2_187 = arith.constant 2 : index
    %c0_188 = arith.constant 0 : index
    %363 = vector.load %arg12[%c2_187, %c0_188] : memref<16x128xf32, #tpu.memory_space<vmem>>, vector<2x128xf32>
    %364 = arith.truncf %362 : vector<2x32xf32> to vector<2x32xbf16>
    %cst_189 = arith.constant dense<0.000000e+00> : vector<2x128xf32>
    %365 = tpu.matmul %364, %327, %cst_189 {dimension_numbers = #tpu.dot_dimension_numbers<[1], [0], [0], [1], [0, 0, 1, 1], [], []>} : vector<2x32xbf16>, vector<32x128xbf16>, vector<2x128xf32> -> vector<2x128xf32>
    %366 = arith.addf %363, %365 : vector<2x128xf32>
    %367 = vector.extract_strided_slice %366 {offsets = [0, 0], sizes = [2, 32], strides = [1, 1]} : vector<2x128xf32> to vector<2x32xf32>
    %368 = arith.negf %367 : vector<2x32xf32>
    %369 = math.exp %368 : vector<2x32xf32>
    %cst_190 = arith.constant 1.000000e+00 : f32
    %370 = vector.broadcast %cst_190 : f32 to vector<2x32xf32>
    %371 = arith.addf %370, %369 : vector<2x32xf32>
    %372 = arith.divf %370, %371 : vector<2x32xf32>
    %373 = vector.extract_strided_slice %366 {offsets = [0, 32], sizes = [2, 32], strides = [1, 1]} : vector<2x128xf32> to vector<2x32xf32>
    %374 = arith.negf %373 : vector<2x32xf32>
    %375 = math.exp %374 : vector<2x32xf32>
    %cst_191 = arith.constant 1.000000e+00 : f32
    %376 = vector.broadcast %cst_191 : f32 to vector<2x32xf32>
    %377 = arith.addf %376, %375 : vector<2x32xf32>
    %378 = arith.divf %376, %377 : vector<2x32xf32>
    %379 = vector.extract_strided_slice %366 {offsets = [0, 64], sizes = [2, 32], strides = [1, 1]} : vector<2x128xf32> to vector<2x32xf32>
    %380 = math.tanh %379 : vector<2x32xf32>
    %381 = vector.extract_strided_slice %366 {offsets = [0, 96], sizes = [2, 32], strides = [1, 1]} : vector<2x128xf32> to vector<2x32xf32>
    %382 = arith.negf %381 : vector<2x32xf32>
    %383 = math.exp %382 : vector<2x32xf32>
    %cst_192 = arith.constant 1.000000e+00 : f32
    %384 = vector.broadcast %cst_192 : f32 to vector<2x32xf32>
    %385 = arith.addf %384, %383 : vector<2x32xf32>
    %386 = arith.divf %384, %385 : vector<2x32xf32>
    %c0_193 = arith.constant 0 : index
    %c0_194 = arith.constant 0 : index
    %387 = vector.load %arg16[%c0_193, %c0_194] : memref<2x32xf32, #tpu.memory_space<vmem>>, vector<2x32xf32>
    %388 = arith.mulf %378, %387 : vector<2x32xf32>
    %389 = arith.mulf %372, %380 : vector<2x32xf32>
    %390 = arith.addf %388, %389 : vector<2x32xf32>
    %391 = math.tanh %390 : vector<2x32xf32>
    %392 = arith.mulf %386, %391 : vector<2x32xf32>
    %c0_195 = arith.constant 0 : index
    %c0_196 = arith.constant 0 : index
    %393 = vector.load %arg16[%c0_195, %c0_196] : memref<2x32xf32, #tpu.memory_space<vmem>>, vector<2x32xf32>
    tpu.vector_store %arg16[%c0_195, %c0_196], %390 {strides = array<i32>} : memref<2x32xf32, #tpu.memory_space<vmem>>, vector<2x32xf32>,
    %c0_197 = arith.constant 0 : index
    %c0_198 = arith.constant 0 : index
    %394 = vector.load %arg15[%c0_197, %c0_198] : memref<2x32xf32, #tpu.memory_space<vmem>>, vector<2x32xf32>
    tpu.vector_store %arg15[%c0_197, %c0_198], %392 {strides = array<i32>} : memref<2x32xf32, #tpu.memory_space<vmem>>, vector<2x32xf32>,
    %c2_199 = arith.constant 2 : index
    %c0_200 = arith.constant 0 : index
    %395 = vector.load %arg13[%c2_199, %c0_200] : memref<16x32xf32, #tpu.memory_space<vmem>>, vector<2x32xf32>
    tpu.vector_store %arg13[%c2_199, %c0_200], %392 {strides = array<i32>} : memref<16x32xf32, #tpu.memory_space<vmem>>, vector<2x32xf32>,
    %c0_201 = arith.constant 0 : index
    %c0_202 = arith.constant 0 : index
    %396 = vector.load %arg15[%c0_201, %c0_202] : memref<2x32xf32, #tpu.memory_space<vmem>>, vector<2x32xf32>
    %c4_203 = arith.constant 4 : index
    %c0_204 = arith.constant 0 : index
    %397 = vector.load %arg12[%c4_203, %c0_204] : memref<16x128xf32, #tpu.memory_space<vmem>>, vector<2x128xf32>
    %398 = arith.truncf %396 : vector<2x32xf32> to vector<2x32xbf16>
    %cst_205 = arith.constant dense<0.000000e+00> : vector<2x128xf32>
    %399 = tpu.matmul %398, %327, %cst_205 {dimension_numbers = #tpu.dot_dimension_numbers<[1], [0], [0], [1], [0, 0, 1, 1], [], []>} : vector<2x32xbf16>, vector<32x128xbf16>, vector<2x128xf32> -> vector<2x128xf32>
    %400 = arith.addf %397, %399 : vector<2x128xf32>
    %401 = vector.extract_strided_slice %400 {offsets = [0, 0], sizes = [2, 32], strides = [1, 1]} : vector<2x128xf32> to vector<2x32xf32>
    %402 = arith.negf %401 : vector<2x32xf32>
    %403 = math.exp %402 : vector<2x32xf32>
    %cst_206 = arith.constant 1.000000e+00 : f32
    %404 = vector.broadcast %cst_206 : f32 to vector<2x32xf32>
    %405 = arith.addf %404, %403 : vector<2x32xf32>
    %406 = arith.divf %404, %405 : vector<2x32xf32>
    %407 = vector.extract_strided_slice %400 {offsets = [0, 32], sizes = [2, 32], strides = [1, 1]} : vector<2x128xf32> to vector<2x32xf32>
    %408 = arith.negf %407 : vector<2x32xf32>
    %409 = math.exp %408 : vector<2x32xf32>
    %cst_207 = arith.constant 1.000000e+00 : f32
    %410 = vector.broadcast %cst_207 : f32 to vector<2x32xf32>
    %411 = arith.addf %410, %409 : vector<2x32xf32>
    %412 = arith.divf %410, %411 : vector<2x32xf32>
    %413 = vector.extract_strided_slice %400 {offsets = [0, 64], sizes = [2, 32], strides = [1, 1]} : vector<2x128xf32> to vector<2x32xf32>
    %414 = math.tanh %413 : vector<2x32xf32>
    %415 = vector.extract_strided_slice %400 {offsets = [0, 96], sizes = [2, 32], strides = [1, 1]} : vector<2x128xf32> to vector<2x32xf32>
    %416 = arith.negf %415 : vector<2x32xf32>
    %417 = math.exp %416 : vector<2x32xf32>
    %cst_208 = arith.constant 1.000000e+00 : f32
    %418 = vector.broadcast %cst_208 : f32 to vector<2x32xf32>
    %419 = arith.addf %418, %417 : vector<2x32xf32>
    %420 = arith.divf %418, %419 : vector<2x32xf32>
    %c0_209 = arith.constant 0 : index
    %c0_210 = arith.constant 0 : index
    %421 = vector.load %arg16[%c0_209, %c0_210] : memref<2x32xf32, #tpu.memory_space<vmem>>, vector<2x32xf32>
    %422 = arith.mulf %412, %421 : vector<2x32xf32>
    %423 = arith.mulf %406, %414 : vector<2x32xf32>
    %424 = arith.addf %422, %423 : vector<2x32xf32>
    %425 = math.tanh %424 : vector<2x32xf32>
    %426 = arith.mulf %420, %425 : vector<2x32xf32>
    %c0_211 = arith.constant 0 : index
    %c0_212 = arith.constant 0 : index
    %427 = vector.load %arg16[%c0_211, %c0_212] : memref<2x32xf32, #tpu.memory_space<vmem>>, vector<2x32xf32>
    tpu.vector_store %arg16[%c0_211, %c0_212], %424 {strides = array<i32>} : memref<2x32xf32, #tpu.memory_space<vmem>>, vector<2x32xf32>,
    %c0_213 = arith.constant 0 : index
    %c0_214 = arith.constant 0 : index
    %428 = vector.load %arg15[%c0_213, %c0_214] : memref<2x32xf32, #tpu.memory_space<vmem>>, vector<2x32xf32>
    tpu.vector_store %arg15[%c0_213, %c0_214], %426 {strides = array<i32>} : memref<2x32xf32, #tpu.memory_space<vmem>>, vector<2x32xf32>,
    %c4_215 = arith.constant 4 : index
    %c0_216 = arith.constant 0 : index
    %429 = vector.load %arg13[%c4_215, %c0_216] : memref<16x32xf32, #tpu.memory_space<vmem>>, vector<2x32xf32>
    tpu.vector_store %arg13[%c4_215, %c0_216], %426 {strides = array<i32>} : memref<16x32xf32, #tpu.memory_space<vmem>>, vector<2x32xf32>,
    %c0_217 = arith.constant 0 : index
    %c0_218 = arith.constant 0 : index
    %430 = vector.load %arg15[%c0_217, %c0_218] : memref<2x32xf32, #tpu.memory_space<vmem>>, vector<2x32xf32>
    %c6_219 = arith.constant 6 : index
    %c0_220 = arith.constant 0 : index
    %431 = vector.load %arg12[%c6_219, %c0_220] : memref<16x128xf32, #tpu.memory_space<vmem>>, vector<2x128xf32>
    %432 = arith.truncf %430 : vector<2x32xf32> to vector<2x32xbf16>
    %cst_221 = arith.constant dense<0.000000e+00> : vector<2x128xf32>
    %433 = tpu.matmul %432, %327, %cst_221 {dimension_numbers = #tpu.dot_dimension_numbers<[1], [0], [0], [1], [0, 0, 1, 1], [], []>} : vector<2x32xbf16>, vector<32x128xbf16>, vector<2x128xf32> -> vector<2x128xf32>
    %434 = arith.addf %431, %433 : vector<2x128xf32>
    %435 = vector.extract_strided_slice %434 {offsets = [0, 0], sizes = [2, 32], strides = [1, 1]} : vector<2x128xf32> to vector<2x32xf32>
    %436 = arith.negf %435 : vector<2x32xf32>
    %437 = math.exp %436 : vector<2x32xf32>
    %cst_222 = arith.constant 1.000000e+00 : f32
    %438 = vector.broadcast %cst_222 : f32 to vector<2x32xf32>
    %439 = arith.addf %438, %437 : vector<2x32xf32>
    %440 = arith.divf %438, %439 : vector<2x32xf32>
    %441 = vector.extract_strided_slice %434 {offsets = [0, 32], sizes = [2, 32], strides = [1, 1]} : vector<2x128xf32> to vector<2x32xf32>
    %442 = arith.negf %441 : vector<2x32xf32>
    %443 = math.exp %442 : vector<2x32xf32>
    %cst_223 = arith.constant 1.000000e+00 : f32
    %444 = vector.broadcast %cst_223 : f32 to vector<2x32xf32>
    %445 = arith.addf %444, %443 : vector<2x32xf32>
    %446 = arith.divf %444, %445 : vector<2x32xf32>
    %447 = vector.extract_strided_slice %434 {offsets = [0, 64], sizes = [2, 32], strides = [1, 1]} : vector<2x128xf32> to vector<2x32xf32>
    %448 = math.tanh %447 : vector<2x32xf32>
    %449 = vector.extract_strided_slice %434 {offsets = [0, 96], sizes = [2, 32], strides = [1, 1]} : vector<2x128xf32> to vector<2x32xf32>
    %450 = arith.negf %449 : vector<2x32xf32>
    %451 = math.exp %450 : vector<2x32xf32>
    %cst_224 = arith.constant 1.000000e+00 : f32
    %452 = vector.broadcast %cst_224 : f32 to vector<2x32xf32>
    %453 = arith.addf %452, %451 : vector<2x32xf32>
    %454 = arith.divf %452, %453 : vector<2x32xf32>
    %c0_225 = arith.constant 0 : index
    %c0_226 = arith.constant 0 : index
    %455 = vector.load %arg16[%c0_225, %c0_226] : memref<2x32xf32, #tpu.memory_space<vmem>>, vector<2x32xf32>
    %456 = arith.mulf %446, %455 : vector<2x32xf32>
    %457 = arith.mulf %440, %448 : vector<2x32xf32>
    %458 = arith.addf %456, %457 : vector<2x32xf32>
    %459 = math.tanh %458 : vector<2x32xf32>
    %460 = arith.mulf %454, %459 : vector<2x32xf32>
    %c0_227 = arith.constant 0 : index
    %c0_228 = arith.constant 0 : index
    %461 = vector.load %arg16[%c0_227, %c0_228] : memref<2x32xf32, #tpu.memory_space<vmem>>, vector<2x32xf32>
    tpu.vector_store %arg16[%c0_227, %c0_228], %458 {strides = array<i32>} : memref<2x32xf32, #tpu.memory_space<vmem>>, vector<2x32xf32>,
    %c0_229 = arith.constant 0 : index
    %c0_230 = arith.constant 0 : index
    %462 = vector.load %arg15[%c0_229, %c0_230] : memref<2x32xf32, #tpu.memory_space<vmem>>, vector<2x32xf32>
    tpu.vector_store %arg15[%c0_229, %c0_230], %460 {strides = array<i32>} : memref<2x32xf32, #tpu.memory_space<vmem>>, vector<2x32xf32>,
    %c6_231 = arith.constant 6 : index
    %c0_232 = arith.constant 0 : index
    %463 = vector.load %arg13[%c6_231, %c0_232] : memref<16x32xf32, #tpu.memory_space<vmem>>, vector<2x32xf32>
    tpu.vector_store %arg13[%c6_231, %c0_232], %460 {strides = array<i32>} : memref<16x32xf32, #tpu.memory_space<vmem>>, vector<2x32xf32>,
    %c0_233 = arith.constant 0 : index
    %c0_234 = arith.constant 0 : index
    %464 = vector.load %arg15[%c0_233, %c0_234] : memref<2x32xf32, #tpu.memory_space<vmem>>, vector<2x32xf32>
    %c8_235 = arith.constant 8 : index
    %c0_236 = arith.constant 0 : index
    %465 = vector.load %arg12[%c8_235, %c0_236] : memref<16x128xf32, #tpu.memory_space<vmem>>, vector<2x128xf32>
    %466 = arith.truncf %464 : vector<2x32xf32> to vector<2x32xbf16>
    %cst_237 = arith.constant dense<0.000000e+00> : vector<2x128xf32>
    %467 = tpu.matmul %466, %327, %cst_237 {dimension_numbers = #tpu.dot_dimension_numbers<[1], [0], [0], [1], [0, 0, 1, 1], [], []>} : vector<2x32xbf16>, vector<32x128xbf16>, vector<2x128xf32> -> vector<2x128xf32>
    %468 = arith.addf %465, %467 : vector<2x128xf32>
    %469 = vector.extract_strided_slice %468 {offsets = [0, 0], sizes = [2, 32], strides = [1, 1]} : vector<2x128xf32> to vector<2x32xf32>
    %470 = arith.negf %469 : vector<2x32xf32>
    %471 = math.exp %470 : vector<2x32xf32>
    %cst_238 = arith.constant 1.000000e+00 : f32
    %472 = vector.broadcast %cst_238 : f32 to vector<2x32xf32>
    %473 = arith.addf %472, %471 : vector<2x32xf32>
    %474 = arith.divf %472, %473 : vector<2x32xf32>
    %475 = vector.extract_strided_slice %468 {offsets = [0, 32], sizes = [2, 32], strides = [1, 1]} : vector<2x128xf32> to vector<2x32xf32>
    %476 = arith.negf %475 : vector<2x32xf32>
    %477 = math.exp %476 : vector<2x32xf32>
    %cst_239 = arith.constant 1.000000e+00 : f32
    %478 = vector.broadcast %cst_239 : f32 to vector<2x32xf32>
    %479 = arith.addf %478, %477 : vector<2x32xf32>
    %480 = arith.divf %478, %479 : vector<2x32xf32>
    %481 = vector.extract_strided_slice %468 {offsets = [0, 64], sizes = [2, 32], strides = [1, 1]} : vector<2x128xf32> to vector<2x32xf32>
    %482 = math.tanh %481 : vector<2x32xf32>
    %483 = vector.extract_strided_slice %468 {offsets = [0, 96], sizes = [2, 32], strides = [1, 1]} : vector<2x128xf32> to vector<2x32xf32>
    %484 = arith.negf %483 : vector<2x32xf32>
    %485 = math.exp %484 : vector<2x32xf32>
    %cst_240 = arith.constant 1.000000e+00 : f32
    %486 = vector.broadcast %cst_240 : f32 to vector<2x32xf32>
    %487 = arith.addf %486, %485 : vector<2x32xf32>
    %488 = arith.divf %486, %487 : vector<2x32xf32>
    %c0_241 = arith.constant 0 : index
    %c0_242 = arith.constant 0 : index
    %489 = vector.load %arg16[%c0_241, %c0_242] : memref<2x32xf32, #tpu.memory_space<vmem>>, vector<2x32xf32>
    %490 = arith.mulf %480, %489 : vector<2x32xf32>
    %491 = arith.mulf %474, %482 : vector<2x32xf32>
    %492 = arith.addf %490, %491 : vector<2x32xf32>
    %493 = math.tanh %492 : vector<2x32xf32>
    %494 = arith.mulf %488, %493 : vector<2x32xf32>
    %c0_243 = arith.constant 0 : index
    %c0_244 = arith.constant 0 : index
    %495 = vector.load %arg16[%c0_243, %c0_244] : memref<2x32xf32, #tpu.memory_space<vmem>>, vector<2x32xf32>
    tpu.vector_store %arg16[%c0_243, %c0_244], %492 {strides = array<i32>} : memref<2x32xf32, #tpu.memory_space<vmem>>, vector<2x32xf32>,
    %c0_245 = arith.constant 0 : index
    %c0_246 = arith.constant 0 : index
    %496 = vector.load %arg15[%c0_245, %c0_246] : memref<2x32xf32, #tpu.memory_space<vmem>>, vector<2x32xf32>
    tpu.vector_store %arg15[%c0_245, %c0_246], %494 {strides = array<i32>} : memref<2x32xf32, #tpu.memory_space<vmem>>, vector<2x32xf32>,
    %c8_247 = arith.constant 8 : index
    %c0_248 = arith.constant 0 : index
    %497 = vector.load %arg13[%c8_247, %c0_248] : memref<16x32xf32, #tpu.memory_space<vmem>>, vector<2x32xf32>
    tpu.vector_store %arg13[%c8_247, %c0_248], %494 {strides = array<i32>} : memref<16x32xf32, #tpu.memory_space<vmem>>, vector<2x32xf32>,
    %c0_249 = arith.constant 0 : index
    %c0_250 = arith.constant 0 : index
    %498 = vector.load %arg15[%c0_249, %c0_250] : memref<2x32xf32, #tpu.memory_space<vmem>>, vector<2x32xf32>
    %c10_251 = arith.constant 10 : index
    %c0_252 = arith.constant 0 : index
    %499 = vector.load %arg12[%c10_251, %c0_252] : memref<16x128xf32, #tpu.memory_space<vmem>>, vector<2x128xf32>
    %500 = arith.truncf %498 : vector<2x32xf32> to vector<2x32xbf16>
    %cst_253 = arith.constant dense<0.000000e+00> : vector<2x128xf32>
    %501 = tpu.matmul %500, %327, %cst_253 {dimension_numbers = #tpu.dot_dimension_numbers<[1], [0], [0], [1], [0, 0, 1, 1], [], []>} : vector<2x32xbf16>, vector<32x128xbf16>, vector<2x128xf32> -> vector<2x128xf32>
    %502 = arith.addf %499, %501 : vector<2x128xf32>
    %503 = vector.extract_strided_slice %502 {offsets = [0, 0], sizes = [2, 32], strides = [1, 1]} : vector<2x128xf32> to vector<2x32xf32>
    %504 = arith.negf %503 : vector<2x32xf32>
    %505 = math.exp %504 : vector<2x32xf32>
    %cst_254 = arith.constant 1.000000e+00 : f32
    %506 = vector.broadcast %cst_254 : f32 to vector<2x32xf32>
    %507 = arith.addf %506, %505 : vector<2x32xf32>
    %508 = arith.divf %506, %507 : vector<2x32xf32>
    %509 = vector.extract_strided_slice %502 {offsets = [0, 32], sizes = [2, 32], strides = [1, 1]} : vector<2x128xf32> to vector<2x32xf32>
    %510 = arith.negf %509 : vector<2x32xf32>
    %511 = math.exp %510 : vector<2x32xf32>
    %cst_255 = arith.constant 1.000000e+00 : f32
    %512 = vector.broadcast %cst_255 : f32 to vector<2x32xf32>
    %513 = arith.addf %512, %511 : vector<2x32xf32>
    %514 = arith.divf %512, %513 : vector<2x32xf32>
    %515 = vector.extract_strided_slice %502 {offsets = [0, 64], sizes = [2, 32], strides = [1, 1]} : vector<2x128xf32> to vector<2x32xf32>
    %516 = math.tanh %515 : vector<2x32xf32>
    %517 = vector.extract_strided_slice %502 {offsets = [0, 96], sizes = [2, 32], strides = [1, 1]} : vector<2x128xf32> to vector<2x32xf32>
    %518 = arith.negf %517 : vector<2x32xf32>
    %519 = math.exp %518 : vector<2x32xf32>
    %cst_256 = arith.constant 1.000000e+00 : f32
    %520 = vector.broadcast %cst_256 : f32 to vector<2x32xf32>
    %521 = arith.addf %520, %519 : vector<2x32xf32>
    %522 = arith.divf %520, %521 : vector<2x32xf32>
    %c0_257 = arith.constant 0 : index
    %c0_258 = arith.constant 0 : index
    %523 = vector.load %arg16[%c0_257, %c0_258] : memref<2x32xf32, #tpu.memory_space<vmem>>, vector<2x32xf32>
    %524 = arith.mulf %514, %523 : vector<2x32xf32>
    %525 = arith.mulf %508, %516 : vector<2x32xf32>
    %526 = arith.addf %524, %525 : vector<2x32xf32>
    %527 = math.tanh %526 : vector<2x32xf32>
    %528 = arith.mulf %522, %527 : vector<2x32xf32>
    %c0_259 = arith.constant 0 : index
    %c0_260 = arith.constant 0 : index
    %529 = vector.load %arg16[%c0_259, %c0_260] : memref<2x32xf32, #tpu.memory_space<vmem>>, vector<2x32xf32>
    tpu.vector_store %arg16[%c0_259, %c0_260], %526 {strides = array<i32>} : memref<2x32xf32, #tpu.memory_space<vmem>>, vector<2x32xf32>,
    %c0_261 = arith.constant 0 : index
    %c0_262 = arith.constant 0 : index
    %530 = vector.load %arg15[%c0_261, %c0_262] : memref<2x32xf32, #tpu.memory_space<vmem>>, vector<2x32xf32>
    tpu.vector_store %arg15[%c0_261, %c0_262], %528 {strides = array<i32>} : memref<2x32xf32, #tpu.memory_space<vmem>>, vector<2x32xf32>,
    %c10_263 = arith.constant 10 : index
    %c0_264 = arith.constant 0 : index
    %531 = vector.load %arg13[%c10_263, %c0_264] : memref<16x32xf32, #tpu.memory_space<vmem>>, vector<2x32xf32>
    tpu.vector_store %arg13[%c10_263, %c0_264], %528 {strides = array<i32>} : memref<16x32xf32, #tpu.memory_space<vmem>>, vector<2x32xf32>,
    %c0_265 = arith.constant 0 : index
    %c0_266 = arith.constant 0 : index
    %532 = vector.load %arg15[%c0_265, %c0_266] : memref<2x32xf32, #tpu.memory_space<vmem>>, vector<2x32xf32>
    %c12_267 = arith.constant 12 : index
    %c0_268 = arith.constant 0 : index
    %533 = vector.load %arg12[%c12_267, %c0_268] : memref<16x128xf32, #tpu.memory_space<vmem>>, vector<2x128xf32>
    %534 = arith.truncf %532 : vector<2x32xf32> to vector<2x32xbf16>
    %cst_269 = arith.constant dense<0.000000e+00> : vector<2x128xf32>
    %535 = tpu.matmul %534, %327, %cst_269 {dimension_numbers = #tpu.dot_dimension_numbers<[1], [0], [0], [1], [0, 0, 1, 1], [], []>} : vector<2x32xbf16>, vector<32x128xbf16>, vector<2x128xf32> -> vector<2x128xf32>
    %536 = arith.addf %533, %535 : vector<2x128xf32>
    %537 = vector.extract_strided_slice %536 {offsets = [0, 0], sizes = [2, 32], strides = [1, 1]} : vector<2x128xf32> to vector<2x32xf32>
    %538 = arith.negf %537 : vector<2x32xf32>
    %539 = math.exp %538 : vector<2x32xf32>
    %cst_270 = arith.constant 1.000000e+00 : f32
    %540 = vector.broadcast %cst_270 : f32 to vector<2x32xf32>
    %541 = arith.addf %540, %539 : vector<2x32xf32>
    %542 = arith.divf %540, %541 : vector<2x32xf32>
    %543 = vector.extract_strided_slice %536 {offsets = [0, 32], sizes = [2, 32], strides = [1, 1]} : vector<2x128xf32> to vector<2x32xf32>
    %544 = arith.negf %543 : vector<2x32xf32>
    %545 = math.exp %544 : vector<2x32xf32>
    %cst_271 = arith.constant 1.000000e+00 : f32
    %546 = vector.broadcast %cst_271 : f32 to vector<2x32xf32>
    %547 = arith.addf %546, %545 : vector<2x32xf32>
    %548 = arith.divf %546, %547 : vector<2x32xf32>
    %549 = vector.extract_strided_slice %536 {offsets = [0, 64], sizes = [2, 32], strides = [1, 1]} : vector<2x128xf32> to vector<2x32xf32>
    %550 = math.tanh %549 : vector<2x32xf32>
    %551 = vector.extract_strided_slice %536 {offsets = [0, 96], sizes = [2, 32], strides = [1, 1]} : vector<2x128xf32> to vector<2x32xf32>
    %552 = arith.negf %551 : vector<2x32xf32>
    %553 = math.exp %552 : vector<2x32xf32>
    %cst_272 = arith.constant 1.000000e+00 : f32
    %554 = vector.broadcast %cst_272 : f32 to vector<2x32xf32>
    %555 = arith.addf %554, %553 : vector<2x32xf32>
    %556 = arith.divf %554, %555 : vector<2x32xf32>
    %c0_273 = arith.constant 0 : index
    %c0_274 = arith.constant 0 : index
    %557 = vector.load %arg16[%c0_273, %c0_274] : memref<2x32xf32, #tpu.memory_space<vmem>>, vector<2x32xf32>
    %558 = arith.mulf %548, %557 : vector<2x32xf32>
    %559 = arith.mulf %542, %550 : vector<2x32xf32>
    %560 = arith.addf %558, %559 : vector<2x32xf32>
    %561 = math.tanh %560 : vector<2x32xf32>
    %562 = arith.mulf %556, %561 : vector<2x32xf32>
    %c0_275 = arith.constant 0 : index
    %c0_276 = arith.constant 0 : index
    %563 = vector.load %arg16[%c0_275, %c0_276] : memref<2x32xf32, #tpu.memory_space<vmem>>, vector<2x32xf32>
    tpu.vector_store %arg16[%c0_275, %c0_276], %560 {strides = array<i32>} : memref<2x32xf32, #tpu.memory_space<vmem>>, vector<2x32xf32>,
    %c0_277 = arith.constant 0 : index
    %c0_278 = arith.constant 0 : index
    %564 = vector.load %arg15[%c0_277, %c0_278] : memref<2x32xf32, #tpu.memory_space<vmem>>, vector<2x32xf32>
    tpu.vector_store %arg15[%c0_277, %c0_278], %562 {strides = array<i32>} : memref<2x32xf32, #tpu.memory_space<vmem>>, vector<2x32xf32>,
    %c12_279 = arith.constant 12 : index
    %c0_280 = arith.constant 0 : index
    %565 = vector.load %arg13[%c12_279, %c0_280] : memref<16x32xf32, #tpu.memory_space<vmem>>, vector<2x32xf32>
    tpu.vector_store %arg13[%c12_279, %c0_280], %562 {strides = array<i32>} : memref<16x32xf32, #tpu.memory_space<vmem>>, vector<2x32xf32>,
    %c0_281 = arith.constant 0 : index
    %c0_282 = arith.constant 0 : index
    %566 = vector.load %arg15[%c0_281, %c0_282] : memref<2x32xf32, #tpu.memory_space<vmem>>, vector<2x32xf32>
    %c14_283 = arith.constant 14 : index
    %c0_284 = arith.constant 0 : index
    %567 = vector.load %arg12[%c14_283, %c0_284] : memref<16x128xf32, #tpu.memory_space<vmem>>, vector<2x128xf32>
    %568 = arith.truncf %566 : vector<2x32xf32> to vector<2x32xbf16>
    %cst_285 = arith.constant dense<0.000000e+00> : vector<2x128xf32>
    %569 = tpu.matmul %568, %327, %cst_285 {dimension_numbers = #tpu.dot_dimension_numbers<[1], [0], [0], [1], [0, 0, 1, 1], [], []>} : vector<2x32xbf16>, vector<32x128xbf16>, vector<2x128xf32> -> vector<2x128xf32>
    %570 = arith.addf %567, %569 : vector<2x128xf32>
    %571 = vector.extract_strided_slice %570 {offsets = [0, 0], sizes = [2, 32], strides = [1, 1]} : vector<2x128xf32> to vector<2x32xf32>
    %572 = arith.negf %571 : vector<2x32xf32>
    %573 = math.exp %572 : vector<2x32xf32>
    %cst_286 = arith.constant 1.000000e+00 : f32
    %574 = vector.broadcast %cst_286 : f32 to vector<2x32xf32>
    %575 = arith.addf %574, %573 : vector<2x32xf32>
    %576 = arith.divf %574, %575 : vector<2x32xf32>
    %577 = vector.extract_strided_slice %570 {offsets = [0, 32], sizes = [2, 32], strides = [1, 1]} : vector<2x128xf32> to vector<2x32xf32>
    %578 = arith.negf %577 : vector<2x32xf32>
    %579 = math.exp %578 : vector<2x32xf32>
    %cst_287 = arith.constant 1.000000e+00 : f32
    %580 = vector.broadcast %cst_287 : f32 to vector<2x32xf32>
    %581 = arith.addf %580, %579 : vector<2x32xf32>
    %582 = arith.divf %580, %581 : vector<2x32xf32>
    %583 = vector.extract_strided_slice %570 {offsets = [0, 64], sizes = [2, 32], strides = [1, 1]} : vector<2x128xf32> to vector<2x32xf32>
    %584 = math.tanh %583 : vector<2x32xf32>
    %585 = vector.extract_strided_slice %570 {offsets = [0, 96], sizes = [2, 32], strides = [1, 1]} : vector<2x128xf32> to vector<2x32xf32>
    %586 = arith.negf %585 : vector<2x32xf32>
    %587 = math.exp %586 : vector<2x32xf32>
    %cst_288 = arith.constant 1.000000e+00 : f32
    %588 = vector.broadcast %cst_288 : f32 to vector<2x32xf32>
    %589 = arith.addf %588, %587 : vector<2x32xf32>
    %590 = arith.divf %588, %589 : vector<2x32xf32>
    %c0_289 = arith.constant 0 : index
    %c0_290 = arith.constant 0 : index
    %591 = vector.load %arg16[%c0_289, %c0_290] : memref<2x32xf32, #tpu.memory_space<vmem>>, vector<2x32xf32>
    %592 = arith.mulf %582, %591 : vector<2x32xf32>
    %593 = arith.mulf %576, %584 : vector<2x32xf32>
    %594 = arith.addf %592, %593 : vector<2x32xf32>
    %595 = math.tanh %594 : vector<2x32xf32>
    %596 = arith.mulf %590, %595 : vector<2x32xf32>
    %c0_291 = arith.constant 0 : index
    %c0_292 = arith.constant 0 : index
    %597 = vector.load %arg16[%c0_291, %c0_292] : memref<2x32xf32, #tpu.memory_space<vmem>>, vector<2x32xf32>
    tpu.vector_store %arg16[%c0_291, %c0_292], %594 {strides = array<i32>} : memref<2x32xf32, #tpu.memory_space<vmem>>, vector<2x32xf32>,
    %c0_293 = arith.constant 0 : index
    %c0_294 = arith.constant 0 : index
    %598 = vector.load %arg15[%c0_293, %c0_294] : memref<2x32xf32, #tpu.memory_space<vmem>>, vector<2x32xf32>
    tpu.vector_store %arg15[%c0_293, %c0_294], %596 {strides = array<i32>} : memref<2x32xf32, #tpu.memory_space<vmem>>, vector<2x32xf32>,
    %c14_295 = arith.constant 14 : index
    %c0_296 = arith.constant 0 : index
    %599 = vector.load %arg13[%c14_295, %c0_296] : memref<16x32xf32, #tpu.memory_space<vmem>>, vector<2x32xf32>
    tpu.vector_store %arg13[%c14_295, %c0_296], %596 {strides = array<i32>} : memref<16x32xf32, #tpu.memory_space<vmem>>, vector<2x32xf32>,
    %c0_297 = arith.constant 0 : index
    %c0_298 = arith.constant 0 : index
    %600 = vector.load %arg13[%c0_297, %c0_298] : memref<16x32xf32, #tpu.memory_space<vmem>>, vector<16x32xf32>
    %c0_299 = arith.constant 0 : index
    %c0_300 = arith.constant 0 : index
    %601 = vector.load %arg11[%c0_299, %c0_300] : memref<16x32xf32, #tpu.memory_space<vmem>>, vector<16x32xf32>
    tpu.vector_store %arg11[%c0_299, %c0_300], %600 {strides = array<i32>} : memref<16x32xf32, #tpu.memory_space<vmem>>, vector<16x32xf32>,
    return
  }
}

</mosaic_0001>

<llo_original>
// kernel: speaker_encoder_forward.1
$region0: #{speaker_encoder_forward.1}
  #allocation0 [shape = 'u32[]', space=smem, size = 0x4, offset = 0x4, fixed_abs, tag = 'smem constant byte address 0x4 - core index']
  #allocation1 [shape = 'u32[144,128]{1,0:T(1,128)}', space=vmem, size = 0x12000, scoped, tag = 'internal scratch']
  #allocation2 [shape = 'f32[16,128]{1,0:T(8,128)}', space=vmem, size = 0x2000, scoped, tag = 'scratch operand']
  #allocation3 [shape = 'f32[16,32]{1,0:T(8,128)}', space=vmem, size = 0x2000, scoped, tag = 'scratch operand']
  #allocation4 [shape = 'bf16[16,8,32]{2,1,0:T(8,128)(2,1)}', space=vmem, size = 0x8000, scoped, tag = 'scratch operand']
  #allocation5 [shape = 'f32[2,32]{1,0:T(2,128)}', space=vmem, size = 0x400, scoped, tag = 'scratch operand']
  #allocation6 [shape = 'f32[2,32]{1,0:T(2,128)}', space=vmem, size = 0x400, scoped, tag = 'scratch operand']
  #allocation7 [shape = 's32[1]{0}', space=sflag, size = 0x4, scoped, tag = 'scratch operand']
  #allocation8 [shape = 's32[]', space=sflag, size = 0x4, offset = 0, fixed_abs, tag = 'sflag constant byte address 0x0 - dummy sync flag']
  %s0 = inlined_call_operand.vmem [shape: bf16[16,32], index: 0, kind: input, shape index: {}]
  %s1 = inlined_call_operand.vmem [shape: bf16[16,8,32], index: 1, kind: input, shape index: {}]
  %s2 = inlined_call_operand.vmem [shape: bf16[32,128], index: 2, kind: input, shape index: {}]
  %s3 = inlined_call_operand.vmem [shape: bf16[32,128], index: 3, kind: input, shape index: {}]
  %s4 = inlined_call_operand.vmem [shape: f32[1,128], index: 4, kind: input, shape index: {}]
  %s5 = inlined_call_operand.vmem [shape: bf16[32,32], index: 5, kind: input, shape index: {}]
  %s6 = inlined_call_operand.vmem [shape: bf16[32,32], index: 6, kind: input, shape index: {}]
  %s7 = inlined_call_operand.vmem [shape: bf16[32,32], index: 7, kind: input, shape index: {}]
  %s8 = inlined_call_operand.vmem [shape: bf16[32,128], index: 8, kind: input, shape index: {}]
  %s9 = inlined_call_operand.vmem [shape: bf16[32,128], index: 9, kind: input, shape index: {}]
  %s10 = inlined_call_operand.vmem [shape: f32[1,128], index: 10, kind: input, shape index: {}]
  %s11 = inlined_call_operand.vmem [shape: f32[16,32], index: 11, kind: output, shape index: {}]
  %s12 = sld [smem:[#allocation0]]
  $region84: #{speaker_encoder_forward.1} parent=0
    _
  %s14 = ssub.s32 1, %s12
  %s15 = scalar_select 0, %s14, %s12
  // Predicated region
  $region2: #{speaker_encoder_forward.1} parent=0 // pred_check
    _
  $region3: #{speaker_encoder_forward.1} parent=0 // pred_check_branch
    %17 = sbr.rel (0) target = $region5
  $region4: #{speaker_encoder_forward.1} parent=0 // pred_region
    _
  $region5: #{speaker_encoder_forward.1} parent=0 // pred_fallthru
    _
  // Predicated region
  $region6: #{speaker_encoder_forward.1} parent=0 // pred_check
    _
  $region7: #{speaker_encoder_forward.1} parent=0 // pred_check_branch
    %19 = sbr.rel (0) target = $region9
  $region8: #{speaker_encoder_forward.1} parent=0 // pred_region
    _
  $region9: #{speaker_encoder_forward.1} parent=0 // pred_fallthru
    _
  // Predicated region
  $region10: #{speaker_encoder_forward.1} parent=0 // pred_check
    _
  $region11: #{speaker_encoder_forward.1} parent=0 // pred_check_branch
    %21 = sbr.rel (0) target = $region13
  $region12: #{speaker_encoder_forward.1} parent=0 // pred_region
    _
  $region13: #{speaker_encoder_forward.1} parent=0 // pred_fallthru
    _
  // Predicated region
  $region14: #{speaker_encoder_forward.1} parent=0 // pred_check
    _
  $region15: #{speaker_encoder_forward.1} parent=0 // pred_check_branch
    %23 = sbr.rel (0) target = $region17
  $region16: #{speaker_encoder_forward.1} parent=0 // pred_region
    _
  $region17: #{speaker_encoder_forward.1} parent=0 // pred_fallthru
    _
  // Predicated region
  $region18: #{speaker_encoder_forward.1} parent=0 // pred_check
    _
  $region19: #{speaker_encoder_forward.1} parent=0 // pred_check_branch
    %25 = sbr.rel (0) target = $region21
  $region20: #{speaker_encoder_forward.1} parent=0 // pred_region
    _
  $region21: #{speaker_encoder_forward.1} parent=0 // pred_fallthru
    _
  // Predicated region
  $region22: #{speaker_encoder_forward.1} parent=0 // pred_check
    _
  $region23: #{speaker_encoder_forward.1} parent=0 // pred_check_branch
    %27 = sbr.rel (0) target = $region25
  $region24: #{speaker_encoder_forward.1} parent=0 // pred_region
    _
  $region25: #{speaker_encoder_forward.1} parent=0 // pred_fallthru
    _
  // Predicated region
  $region26: #{speaker_encoder_forward.1} parent=0 // pred_check
    _
  $region27: #{speaker_encoder_forward.1} parent=0 // pred_check_branch
    %29 = sbr.rel (0) target = $region29
  $region28: #{speaker_encoder_forward.1} parent=0 // pred_region
    _
  $region29: #{speaker_encoder_forward.1} parent=0 // pred_fallthru
    _
  // Predicated region
  $region30: #{speaker_encoder_forward.1} parent=0 // pred_check
    _
  $region31: #{speaker_encoder_forward.1} parent=0 // pred_check_branch
    %31 = sbr.rel (0) target = $region33
  $region32: #{speaker_encoder_forward.1} parent=0 // pred_region
    _
  $region33: #{speaker_encoder_forward.1} parent=0 // pred_fallthru
    _
  // Predicated region
  $region34: #{speaker_encoder_forward.1} parent=0 // pred_check
    _
  $region35: #{speaker_encoder_forward.1} parent=0 // pred_check_branch
    %33 = sbr.rel (0) target = $region37
  $region36: #{speaker_encoder_forward.1} parent=0 // pred_region
    _
  $region37: #{speaker_encoder_forward.1} parent=0 // pred_fallthru
    _
  // Predicated region
  $region38: #{speaker_encoder_forward.1} parent=0 // pred_check
    _
  $region39: #{speaker_encoder_forward.1} parent=0 // pred_check_branch
    %35 = sbr.rel (0) target = $region41
  $region40: #{speaker_encoder_forward.1} parent=0 // pred_region
    _
  $region41: #{speaker_encoder_forward.1} parent=0 // pred_fallthru
    _
  %p38 = scmp.lt.u32.totalorder 64, 8
  %p39 = pneg %p38
  // Predicated region
  $region42: #{speaker_encoder_forward.1} parent=0 // pred_check
    _
  $region43: #{speaker_encoder_forward.1} parent=0 // pred_check_branch
    %41 = sbr.rel (%p38) target = $region45
  $region44: #{speaker_encoder_forward.1} parent=0 // pred_region
    %s57 = sand.u32 64, 7
    %p58 = scmp.eq.s32.totalorder %s57, 0
    // Predicated region
    $region57: #{speaker_encoder_forward.1} parent=44 // pred_check
      %p59 = pneg %p58
    $region58: #{speaker_encoder_forward.1} parent=44 // pred_check_branch
      %61 = sbr.rel (%p59) target = $region60
    $region59: #{speaker_encoder_forward.1} parent=44 // pred_region
      loop: start=0, step=1, limit=1
      $region61: #{speaker_encoder_forward.1} parent=59 // loop_pre_header
        _
      $region62: #{speaker_encoder_forward.1} parent=59 // loop_header
        %s63 = sphi 0, %s67
        %p64 = scmp.ge.s32.totalorder %s63, 1
        %s68 = sphi %s1, %s1
        %s69 = sphi [#allocation4], [#allocation4]
      $region63: #{speaker_encoder_forward.1} parent=59 // loop_header_branch
        %66 = sbr.rel (%p64) target = $region67
      $region64: #{speaker_encoder_forward.1} parent=59 // loop_body
        %v70 = vld [vmem:[%s68] sm:$0xff]
        %71 = vst [vmem:[%s69] sm:$0xff] %v70
        %v72 = vld [vmem:[%s68 + $0x8] sm:$0xff]
        %73 = vst [vmem:[%s69 + $0x8] sm:$0xff] %v72
        %v74 = vld [vmem:[%s68 + $0x10] sm:$0xff]
        %75 = vst [vmem:[%s69 + $0x10] sm:$0xff] %v74
        %v76 = vld [vmem:[%s68 + $0x18] sm:$0xff]
        %77 = vst [vmem:[%s69 + $0x18] sm:$0xff] %v76
        %v78 = vld [vmem:[%s68 + $0x20] sm:$0xff]
        %79 = vst [vmem:[%s69 + $0x20] sm:$0xff] %v78
        %v80 = vld [vmem:[%s68 + $0x28] sm:$0xff]
        %81 = vst [vmem:[%s69 + $0x28] sm:$0xff] %v80
        %v82 = vld [vmem:[%s68 + $0x30] sm:$0xff]
        %83 = vst [vmem:[%s69 + $0x30] sm:$0xff] %v82
        %v84 = vld [vmem:[%s68 + $0x38] sm:$0xff]
        %85 = vst [vmem:[%s69 + $0x38] sm:$0xff] %v84
      $region65: #{speaker_encoder_forward.1} parent=59 // loop_footer
        %s67 = sadd.s32 1, %s63
      $region66: #{speaker_encoder_forward.1} parent=59 // loop_footer_branch
        %62 = sbr.rel target = $region62
      $region67: #{speaker_encoder_forward.1} parent=59 // loop_exit
        _
    $region60: #{speaker_encoder_forward.1} parent=44 // pred_fallthru
      _
    %p86 = pneg %p58
    // Predicated region
    $region68: #{speaker_encoder_forward.1} parent=44 // pred_check
      _
    $region69: #{speaker_encoder_forward.1} parent=44 // pred_check_branch
      %88 = sbr.rel (%p58) target = $region71
    $region70: #{speaker_encoder_forward.1} parent=44 // pred_region
      %s89 = sand.u32 64, 7
    $region71: #{speaker_encoder_forward.1} parent=44 // pred_fallthru
      _
  $region45: #{speaker_encoder_forward.1} parent=0 // pred_fallthru
    _
  // Predicated region
  $region46: #{speaker_encoder_forward.1} parent=0 // pred_check
    %p42 = pneg %p38
  $region47: #{speaker_encoder_forward.1} parent=0 // pred_check_branch
    %44 = sbr.rel (%p42) target = $region49
  $region48: #{speaker_encoder_forward.1} parent=0 // pred_region
    %s45 = sshll.u32 1, 64
    %s46 = ssub.s32 %s45, 1
    loop: start=0, step=1, limit=1
    $region50: #{speaker_encoder_forward.1} parent=48 // loop_pre_header
      _
    $region51: #{speaker_encoder_forward.1} parent=48 // loop_header
      %s48 = sphi 0, %s52
      %p49 = scmp.ge.s32.totalorder %s48, 1
      %s53 = sphi %s1, %s1
      %s54 = sphi [#allocation4], [#allocation4]
    $region52: #{speaker_encoder_forward.1} parent=48 // loop_header_branch
      %51 = sbr.rel (%p49) target = $region56
    $region53: #{speaker_encoder_forward.1} parent=48 // loop_body
      %v55 = vld [vmem:[%s53] sm:%s46]
      %56 = vst [vmem:[%s54] sm:%s46] %v55
    $region54: #{speaker_encoder_forward.1} parent=48 // loop_footer
      %s52 = sadd.s32 1, %s48
    $region55: #{speaker_encoder_forward.1} parent=48 // loop_footer_branch
      %47 = sbr.rel target = $region51
    $region56: #{speaker_encoder_forward.1} parent=48 // loop_exit
      _
  $region49: #{speaker_encoder_forward.1} parent=0 // pred_fallthru
    _
  // Predicated region
  $region72: #{speaker_encoder_forward.1} parent=0 // pred_check
    _
  $region73: #{speaker_encoder_forward.1} parent=0 // pred_check_branch
    %92 = sbr.rel (0) target = $region75
  $region74: #{speaker_encoder_forward.1} parent=0 // pred_region
    %93 = vsyncadd [#allocation7], 1024
  $region75: #{speaker_encoder_forward.1} parent=0 // pred_fallthru
    _
  %v94 = vld [vmem:[%s0] sm:$0xf]
  %v95 = vld [vmem:[%s0 + $0x4] sm:$0xf]
  %v96 = vld [vmem:[%s2] sm:$0xf]
  %v97 = vld [vmem:[%s2 + $0x4] sm:$0xf]
  %v98 = vld [vmem:[%s2 + $0x8] sm:$0xf]
  %v99 = vld [vmem:[%s2 + $0xc] sm:$0xf]
  %v100 = vld [vmem:[%s4] sm:$0x1]
  %v102 = vlaneseq
  %v103 = vshrl.u32 %v102, 7
  %v104 = vsub.s32 0, %v103
  %v105 = vrot.slane %v100, %v104
  %v109 = vunpack.c.l.b16 %v94
  %v110 = vunpack.c.l.b16 %v95
  %v111 = vpack.c.b16 %v110, %v109
  %v116 = vunpack.c.l.b16 %v96
  %v117 = vunpack.c.l.b16 %v97
  %v118 = vunpack.c.l.b16 %v98
  %v119 = vunpack.c.l.b16 %v99
  %v120 = vpack.c.b16 %v117, %v116
  %v121 = vpack.c.b16 %v119, %v118
  %vm124 = vcmask 261120
  %v126 = vsel %vm124, %v111, 0
  %128 = vmatprep.subr.bf16.mxu0 0
  %129 = vmatpush1.bf16.msra.mxu0 0
  %130 = vmatprep.subr.bf16.mxu0 0
  %131 = vmatpush1.bf16.msra.mxu0 0
  %132 = vmatprep.subr.bf16.mxu0 0
  %133 = vmatpush1.bf16.msra.mxu0 0
  %134 = vmatprep.subr.bf16.mxu0 0
  %135 = vmatpush1.bf16.msra.mxu0 0
  %136 = vmatprep.subr.bf16.mxu0 0
  %137 = vmatpush1.bf16.msra.mxu0 0
  %138 = vmatprep.subr.bf16.mxu0 0
  %139 = vmatpush1.bf16.msra.mxu0 0
  %140 = vmatprep.subr.bf16.mxu0 0
  %141 = vmatpush1.bf16.msra.mxu0 %v121
  %142 = vmatprep.subr.bf16.mxu0 0
  %143 = vmatpush1.bf16.msra.mxu0 %v120
  %144 = vmatprep.subr.bf16.mxu0 0
  %145 = vmatpush2.bf16.msra.mxu0 0
  %146 = vmatprep.subr.bf16.mxu0 0
  %147 = vmatpush2.bf16.msra.mxu0 0
  %148 = vmatprep.subr.bf16.mxu0 0
  %149 = vmatpush2.bf16.msra.mxu0 0
  %150 = vmatprep.subr.bf16.mxu0 0
  %151 = vmatpush2.bf16.msra.mxu0 0
  %152 = vmatprep.subr.bf16.mxu0 0
  %153 = vmatpush2.bf16.msra.mxu0 0
  %154 = vmatprep.subr.bf16.mxu0 0
  %155 = vmatpush2.bf16.msra.mxu0 0
  %156 = vmatprep.subr.bf16.mxu0 0
  %157 = vmatpush2.bf16.msra.mxu0 0
  %158 = vmatprep.subr.bf16.mxu0 0
  %159 = vmatpush2.bf16.msra.mxu0 0
  %160 = vmatprep.mubr.bf16.mxu0 0
  %161 = vmatmul.mubr.bf16.gmra.mxu0 %v126
  %v162 = vpop.f32.mrf.mxu0
  %v163 = vadd.f32 %v105, %v162
  %v164 = vpop.f32.mrf.mxu0
  %v165 = vpop.f32.mrf.mxu0
  %v166 = vadd.f32 %v105, %v165
  %v167 = vpop.f32.mrf.mxu0
  %168 = vdwg.mxu0
  %169 = vst [vmem:[#allocation2] sm:$0xff] %v163
  %170 = vst [vmem:[#allocation2 + $0x8] sm:$0xff] %v166
  %vm171 = vcmask 254976
  %172 = vst.msk [vmem:[#allocation5] sm:$0x3] %vm171, 0.0
  %173 = vst.msk [vmem:[#allocation6] sm:$0x3] %vm171, 0.0
  %v174 = vld [vmem:[%s3] sm:$0xf]
  %v175 = vld [vmem:[%s3 + $0x4] sm:$0xf]
  %v176 = vld [vmem:[%s3 + $0x8] sm:$0xf]
  %v177 = vld [vmem:[%s3 + $0xc] sm:$0xf]
  %v178 = vld [vmem:[#allocation5] sm:$0x3]
  %v179 = vld [vmem:[#allocation2] sm:$0x3]
  %v180 = vpack.c.bf16 %v178, %v178
  %v185 = vunpack.c.l.b16 %v174
  %v186 = vunpack.c.l.b16 %v175
  %v187 = vunpack.c.l.b16 %v176
  %v188 = vunpack.c.l.b16 %v177
  %v189 = vpack.c.b16 %v186, %v185
  %v190 = vpack.c.b16 %v188, %v187
  %v194 = vsel %vm124, %v180, 0
  %196 = vmatprep.subr.bf16.mxu0 0
  %197 = vmatpush1.bf16.msra.mxu0 0
  %198 = vmatprep.subr.bf16.mxu0 0
  %199 = vmatpush1.bf16.msra.mxu0 0
  %200 = vmatprep.subr.bf16.mxu0 0
  %201 = vmatpush1.bf16.msra.mxu0 0
  %202 = vmatprep.subr.bf16.mxu0 0
  %203 = vmatpush1.bf16.msra.mxu0 0
  %204 = vmatprep.subr.bf16.mxu0 0
  %205 = vmatpush1.bf16.msra.mxu0 0
  %206 = vmatprep.subr.bf16.mxu0 0
  %207 = vmatpush1.bf16.msra.mxu0 0
  %208 = vmatprep.subr.bf16.mxu0 0
  %209 = vmatpush1.bf16.msra.mxu0 %v190
  %210 = vmatprep.subr.bf16.mxu0 0
  %211 = vmatpush1.bf16.msra.mxu0 %v189
  %212 = vmatprep.subr.bf16.mxu0 0
  %213 = vmatpush2.bf16.msra.mxu0 0
  %214 = vmatprep.subr.bf16.mxu0 0
  %215 = vmatpush2.bf16.msra.mxu0 0
  %216 = vmatprep.subr.bf16.mxu0 0
  %217 = vmatpush2.bf16.msra.mxu0 0
  %218 = vmatprep.subr.bf16.mxu0 0
  %219 = vmatpush2.bf16.msra.mxu0 0
  %220 = vmatprep.subr.bf16.mxu0 0
  %221 = vmatpush2.bf16.msra.mxu0 0
  %222 = vmatprep.subr.bf16.mxu0 0
  %223 = vmatpush2.bf16.msra.mxu0 0
  %224 = vmatprep.subr.bf16.mxu0 0
  %225 = vmatpush2.bf16.msra.mxu0 0
  %226 = vmatprep.subr.bf16.mxu0 0
  %227 = vmatpush2.bf16.msra.mxu0 0
  %228 = vmatprep.mubr.bf16.mxu0 0
  %229 = vmatmul.mubr.bf16.gmra.mxu0 %v194
  %v230 = vpop.f32.mrf.mxu0
  %v231 = vadd.f32 0.0, %v230
  %v232 = vpop.f32.mrf.mxu0
  %v233 = vpop.f32.mrf.mxu0
  %v234 = vpop.f32.mrf.mxu0
  %235 = vdwg.mxu0
  %v236 = vadd.f32 %v179, %v231
  %v237 = vxor.u32 %v236, 2147483648
  %v238 = vmul.f32 %v237, 1.442695
  %v239 = vpow.pop %v238
  %v240 = vadd.f32 %v239, 1.0
  %v241 = vrcp.pop %v240
  %v242 = vmul.f32 1.0, %v241
  %v243 = vtanh.pop %v236
  %v244 = vld [vmem:[#allocation6] sm:$0x3]
  %246 = vrot.lane.b32.xlu0 %v244, 32
  %v247 = vpop.permute.xlu0 %246
  %v249 = vmul.f32 %v242, %v247
  %251 = vrot.lane.b32.xlu0 %v243, 64
  %v252 = vpop.permute.xlu0 %251
  %v254 = vmul.f32 %v242, %v252
  %256 = vrot.lane.b32.xlu0 %v254, 32
  %v257 = vpop.permute.xlu0 %256
  %v259 = vadd.f32 %v249, %v257
  %v260 = vtanh.pop %v259
  %262 = vrot.lane.b32.xlu0 %v260, 64
  %v263 = vpop.permute.xlu0 %262
  %v265 = vmul.f32 %v242, %v263
  %267 = vrot.lane.b32.xlu0 %v259, 96
  %v268 = vpop.permute.xlu0 %267
  %270 = vst.msk [vmem:[#allocation6] sm:$0x3] %vm171, %v268
  %272 = vrot.lane.b32.xlu0 %v265, 32
  %v273 = vpop.permute.xlu0 %272
  %275 = vst.msk [vmem:[#allocation5] sm:$0x3] %vm171, %v273
  %276 = vst.msk [vmem:[#allocation3] sm:$0x3] %vm171, %v273
  %v277 = vld [vmem:[#allocation5] sm:$0x3]
  %v278 = vld [vmem:[#allocation2 + $0x2] sm:$0x3]
  %v279 = vpack.c.bf16 %v277, %v277
  %v281 = vsel %vm124, %v279, 0
  %283 = vmatprep.subr.bf16.mxu0 0
  %284 = vmatpush1.bf16.msra.mxu0 0
  %285 = vmatprep.subr.bf16.mxu0 0
  %286 = vmatpush1.bf16.msra.mxu0 0
  %287 = vmatprep.subr.bf16.mxu0 0
  %288 = vmatpush1.bf16.msra.mxu0 0
  %289 = vmatprep.subr.bf16.mxu0 0
  %290 = vmatpush1.bf16.msra.mxu0 0
  %291 = vmatprep.subr.bf16.mxu0 0
  %292 = vmatpush1.bf16.msra.mxu0 0
  %293 = vmatprep.subr.bf16.mxu0 0
  %294 = vmatpush1.bf16.msra.mxu0 0
  %295 = vmatprep.subr.bf16.mxu0 0
  %296 = vmatpush1.bf16.msra.mxu0 %v190
  %297 = vmatprep.subr.bf16.mxu0 0
  %298 = vmatpush1.bf16.msra.mxu0 %v189
  %299 = vmatprep.subr.bf16.mxu0 0
  %300 = vmatpush2.bf16.msra.mxu0 0
  %301 = vmatprep.subr.bf16.mxu0 0
  %302 = vmatpush2.bf16.msra.mxu0 0
  %303 = vmatprep.subr.bf16.mxu0 0
  %304 = vmatpush2.bf16.msra.mxu0 0
  %305 = vmatprep.subr.bf16.mxu0 0
  %306 = vmatpush2.bf16.msra.mxu0 0
  %307 = vmatprep.subr.bf16.mxu0 0
  %308 = vmatpush2.bf16.msra.mxu0 0
  %309 = vmatprep.subr.bf16.mxu0 0
  %310 = vmatpush2.bf16.msra.mxu0 0
  %311 = vmatprep.subr.bf16.mxu0 0
  %312 = vmatpush2.bf16.msra.mxu0 0
  %313 = vmatprep.subr.bf16.mxu0 0
  %314 = vmatpush2.bf16.msra.mxu0 0
  %315 = vmatprep.mubr.bf16.mxu0 0
  %316 = vmatmul.mubr.bf16.gmra.mxu0 %v281
  %v317 = vpop.f32.mrf.mxu0
  %v318 = vadd.f32 0.0, %v317
  %v319 = vpop.f32.mrf.mxu0
  %v320 = vpop.f32.mrf.mxu0
  %v321 = vpop.f32.mrf.mxu0
  %322 = vdwg.mxu0
  %v323 = vadd.f32 %v278, %v318
  %v324 = vxor.u32 %v323, 2147483648
  %v325 = vmul.f32 %v324, 1.442695
  %v326 = vpow.pop %v325
  %v327 = vadd.f32 %v326, 1.0
  %v328 = vrcp.pop %v327
  %v329 = vmul.f32 1.0, %v328
  %v330 = vtanh.pop %v323
  %v331 = vld [vmem:[#allocation6] sm:$0x3]
  %333 = vrot.lane.b32.xlu0 %v331, 32
  %v334 = vpop.permute.xlu0 %333
  %v336 = vmul.f32 %v329, %v334
  %338 = vrot.lane.b32.xlu0 %v330, 64
  %v339 = vpop.permute.xlu0 %338
  %v341 = vmul.f32 %v329, %v339
  %343 = vrot.lane.b32.xlu0 %v341, 32
  %v344 = vpop.permute.xlu0 %343
  %v346 = vadd.f32 %v336, %v344
  %v347 = vtanh.pop %v346
  %349 = vrot.lane.b32.xlu0 %v347, 64
  %v350 = vpop.permute.xlu0 %349
  %v352 = vmul.f32 %v329, %v350
  %354 = vrot.lane.b32.xlu0 %v346, 96
  %v355 = vpop.permute.xlu0 %354
  %357 = vst.msk [vmem:[#allocation6] sm:$0x3] %vm171, %v355
  %359 = vrot.lane.b32.xlu0 %v352, 32
  %v360 = vpop.permute.xlu0 %359
  %362 = vst.msk [vmem:[#allocation5] sm:$0x3] %vm171, %v360
  %363 = vst.msk [vmem:[#allocation3 + $0x2] sm:$0x3] %vm171, %v360
  %v364 = vld [vmem:[#allocation5] sm:$0x3]
  %v365 = vld [vmem:[#allocation2 + $0x4] sm:$0x3]
  %v366 = vpack.c.bf16 %v364, %v364
  %v368 = vsel %vm124, %v366, 0
  %370 = vmatprep.subr.bf16.mxu0 0
  %371 = vmatpush1.bf16.msra.mxu0 0
  %372 = vmatprep.subr.bf16.mxu0 0
  %373 = vmatpush1.bf16.msra.mxu0 0
  %374 = vmatprep.subr.bf16.mxu0 0
  %375 = vmatpush1.bf16.msra.mxu0 0
  %376 = vmatprep.subr.bf16.mxu0 0
  %377 = vmatpush1.bf16.msra.mxu0 0
  %378 = vmatprep.subr.bf16.mxu0 0
  %379 = vmatpush1.bf16.msra.mxu0 0
  %380 = vmatprep.subr.bf16.mxu0 0
  %381 = vmatpush1.bf16.msra.mxu0 0
  %382 = vmatprep.subr.bf16.mxu0 0
  %383 = vmatpush1.bf16.msra.mxu0 %v190
  %384 = vmatprep.subr.bf16.mxu0 0
  %385 = vmatpush1.bf16.msra.mxu0 %v189
  %386 = vmatprep.subr.bf16.mxu0 0
  %387 = vmatpush2.bf16.msra.mxu0 0
  %388 = vmatprep.subr.bf16.mxu0 0
  %389 = vmatpush2.bf16.msra.mxu0 0
  %390 = vmatprep.subr.bf16.mxu0 0
  %391 = vmatpush2.bf16.msra.mxu0 0
  %392 = vmatprep.subr.bf16.mxu0 0
  %393 = vmatpush2.bf16.msra.mxu0 0
  %394 = vmatprep.subr.bf16.mxu0 0
  %395 = vmatpush2.bf16.msra.mxu0 0
  %396 = vmatprep.subr.bf16.mxu0 0
  %397 = vmatpush2.bf16.msra.mxu0 0
  %398 = vmatprep.subr.bf16.mxu0 0
  %399 = vmatpush2.bf16.msra.mxu0 0
  %400 = vmatprep.subr.bf16.mxu0 0
  %401 = vmatpush2.bf16.msra.mxu0 0
  %402 = vmatprep.mubr.bf16.mxu0 0
  %403 = vmatmul.mubr.bf16.gmra.mxu0 %v368
  %v404 = vpop.f32.mrf.mxu0
  %v405 = vadd.f32 0.0, %v404
  %v406 = vpop.f32.mrf.mxu0
  %v407 = vpop.f32.mrf.mxu0
  %v408 = vpop.f32.mrf.mxu0
  %409 = vdwg.mxu0
  %v410 = vadd.f32 %v365, %v405
  %v411 = vxor.u32 %v410, 2147483648
  %v412 = vmul.f32 %v411, 1.442695
  %v413 = vpow.pop %v412
  %v414 = vadd.f32 %v413, 1.0
  %v415 = vrcp.pop %v414
  %v416 = vmul.f32 1.0, %v415
  %v417 = vtanh.pop %v410
  %v418 = vld [vmem:[#allocation6] sm:$0x3]
  %420 = vrot.lane.b32.xlu0 %v418, 32
  %v421 = vpop.permute.xlu0 %420
  %v423 = vmul.f32 %v416, %v421
  %425 = vrot.lane.b32.xlu0 %v417, 64
  %v426 = vpop.permute.xlu0 %425
  %v428 = vmul.f32 %v416, %v426
  %430 = vrot.lane.b32.xlu0 %v428, 32
  %v431 = vpop.permute.xlu0 %430
  %v433 = vadd.f32 %v423, %v431
  %v434 = vtanh.pop %v433
  %436 = vrot.lane.b32.xlu0 %v434, 64
  %v437 = vpop.permute.xlu0 %436
  %v439 = vmul.f32 %v416, %v437
  %441 = vrot.lane.b32.xlu0 %v433, 96
  %v442 = vpop.permute.xlu0 %441
  %444 = vst.msk [vmem:[#allocation6] sm:$0x3] %vm171, %v442
  %446 = vrot.lane.b32.xlu0 %v439, 32
  %v447 = vpop.permute.xlu0 %446
  %449 = vst.msk [vmem:[#allocation5] sm:$0x3] %vm171, %v447
  %450 = vst.msk [vmem:[#allocation3 + $0x4] sm:$0x3] %vm171, %v447
  %v451 = vld [vmem:[#allocation5] sm:$0x3]
  %v452 = vld [vmem:[#allocation2 + $0x6] sm:$0x3]
  %v453 = vpack.c.bf16 %v451, %v451
  %v455 = vsel %vm124, %v453, 0
  %457 = vmatprep.subr.bf16.mxu0 0
  %458 = vmatpush1.bf16.msra.mxu0 0
  %459 = vmatprep.subr.bf16.mxu0 0
  %460 = vmatpush1.bf16.msra.mxu0 0
  %461 = vmatprep.subr.bf16.mxu0 0
  %462 = vmatpush1.bf16.msra.mxu0 0
  %463 = vmatprep.subr.bf16.mxu0 0
  %464 = vmatpush1.bf16.msra.mxu0 0
  %465 = vmatprep.subr.bf16.mxu0 0
  %466 = vmatpush1.bf16.msra.mxu0 0
  %467 = vmatprep.subr.bf16.mxu0 0
  %468 = vmatpush1.bf16.msra.mxu0 0
  %469 = vmatprep.subr.bf16.mxu0 0
  %470 = vmatpush1.bf16.msra.mxu0 %v190
  %471 = vmatprep.subr.bf16.mxu0 0
  %472 = vmatpush1.bf16.msra.mxu0 %v189
  %473 = vmatprep.subr.bf16.mxu0 0
  %474 = vmatpush2.bf16.msra.mxu0 0
  %475 = vmatprep.subr.bf16.mxu0 0
  %476 = vmatpush2.bf16.msra.mxu0 0
  %477 = vmatprep.subr.bf16.mxu0 0
  %478 = vmatpush2.bf16.msra.mxu0 0
  %479 = vmatprep.subr.bf16.mxu0 0
  %480 = vmatpush2.bf16.msra.mxu0 0
  %481 = vmatprep.subr.bf16.mxu0 0
  %482 = vmatpush2.bf16.msra.mxu0 0
  %483 = vmatprep.subr.bf16.mxu0 0
  %484 = vmatpush2.bf16.msra.mxu0 0
  %485 = vmatprep.subr.bf16.mxu0 0
  %486 = vmatpush2.bf16.msra.mxu0 0
  %487 = vmatprep.subr.bf16.mxu0 0
  %488 = vmatpush2.bf16.msra.mxu0 0
  %489 = vmatprep.mubr.bf16.mxu0 0
  %490 = vmatmul.mubr.bf16.gmra.mxu0 %v455
  %v491 = vpop.f32.mrf.mxu0
  %v492 = vadd.f32 0.0, %v491
  %v493 = vpop.f32.mrf.mxu0
  %v494 = vpop.f32.mrf.mxu0
  %v495 = vpop.f32.mrf.mxu0
  %496 = vdwg.mxu0
  %v497 = vadd.f32 %v452, %v492
  %v498 = vxor.u32 %v497, 2147483648
  %v499 = vmul.f32 %v498, 1.442695
  %v500 = vpow.pop %v499
  %v501 = vadd.f32 %v500, 1.0
  %v502 = vrcp.pop %v501
  %v503 = vmul.f32 1.0, %v502
  %v504 = vtanh.pop %v497
  %v505 = vld [vmem:[#allocation6] sm:$0x3]
  %507 = vrot.lane.b32.xlu0 %v505, 32
  %v508 = vpop.permute.xlu0 %507
  %v510 = vmul.f32 %v503, %v508
  %512 = vrot.lane.b32.xlu0 %v504, 64
  %v513 = vpop.permute.xlu0 %512
  %v515 = vmul.f32 %v503, %v513
  %517 = vrot.lane.b32.xlu0 %v515, 32
  %v518 = vpop.permute.xlu0 %517
  %v520 = vadd.f32 %v510, %v518
  %v521 = vtanh.pop %v520
  %523 = vrot.lane.b32.xlu0 %v521, 64
  %v524 = vpop.permute.xlu0 %523
  %v526 = vmul.f32 %v503, %v524
  %528 = vrot.lane.b32.xlu0 %v520, 96
  %v529 = vpop.permute.xlu0 %528
  %531 = vst.msk [vmem:[#allocation6] sm:$0x3] %vm171, %v529
  %533 = vrot.lane.b32.xlu0 %v526, 32
  %v534 = vpop.permute.xlu0 %533
  %536 = vst.msk [vmem:[#allocation5] sm:$0x3] %vm171, %v534
  %537 = vst.msk [vmem:[#allocation3 + $0x6] sm:$0x3] %vm171, %v534
  %v538 = vld [vmem:[#allocation5] sm:$0x3]
  %v539 = vld [vmem:[#allocation2 + $0x8] sm:$0x3]
  %v540 = vpack.c.bf16 %v538, %v538
  %v542 = vsel %vm124, %v540, 0
  %544 = vmatprep.subr.bf16.mxu0 0
  %545 = vmatpush1.bf16.msra.mxu0 0
  %546 = vmatprep.subr.bf16.mxu0 0
  %547 = vmatpush1.bf16.msra.mxu0 0
  %548 = vmatprep.subr.bf16.mxu0 0
  %549 = vmatpush1.bf16.msra.mxu0 0
  %550 = vmatprep.subr.bf16.mxu0 0
  %551 = vmatpush1.bf16.msra.mxu0 0
  %552 = vmatprep.subr.bf16.mxu0 0
  %553 = vmatpush1.bf16.msra.mxu0 0
  %554 = vmatprep.subr.bf16.mxu0 0
  %555 = vmatpush1.bf16.msra.mxu0 0
  %556 = vmatprep.subr.bf16.mxu0 0
  %557 = vmatpush1.bf16.msra.mxu0 %v190
  %558 = vmatprep.subr.bf16.mxu0 0
  %559 = vmatpush1.bf16.msra.mxu0 %v189
  %560 = vmatprep.subr.bf16.mxu0 0
  %561 = vmatpush2.bf16.msra.mxu0 0
  %562 = vmatprep.subr.bf16.mxu0 0
  %563 = vmatpush2.bf16.msra.mxu0 0
  %564 = vmatprep.subr.bf16.mxu0 0
  %565 = vmatpush2.bf16.msra.mxu0 0
  %566 = vmatprep.subr.bf16.mxu0 0
  %567 = vmatpush2.bf16.msra.mxu0 0
  %568 = vmatprep.subr.bf16.mxu0 0
  %569 = vmatpush2.bf16.msra.mxu0 0
  %570 = vmatprep.subr.bf16.mxu0 0
  %571 = vmatpush2.bf16.msra.mxu0 0
  %572 = vmatprep.subr.bf16.mxu0 0
  %573 = vmatpush2.bf16.msra.mxu0 0
  %574 = vmatprep.subr.bf16.mxu0 0
  %575 = vmatpush2.bf16.msra.mxu0 0
  %576 = vmatprep.mubr.bf16.mxu0 0
  %577 = vmatmul.mubr.bf16.gmra.mxu0 %v542
  %v578 = vpop.f32.mrf.mxu0
  %v579 = vadd.f32 0.0, %v578
  %v580 = vpop.f32.mrf.mxu0
  %v581 = vpop.f32.mrf.mxu0
  %v582 = vpop.f32.mrf.mxu0
  %583 = vdwg.mxu0
  %v584 = vadd.f32 %v539, %v579
  %v585 = vxor.u32 %v584, 2147483648
  %v586 = vmul.f32 %v585, 1.442695
  %v587 = vpow.pop %v586
  %v588 = vadd.f32 %v587, 1.0
  %v589 = vrcp.pop %v588
  %v590 = vmul.f32 1.0, %v589
  %v591 = vtanh.pop %v584
  %v592 = vld [vmem:[#allocation6] sm:$0x3]
  %594 = vrot.lane.b32.xlu0 %v592, 32
  %v595 = vpop.permute.xlu0 %594
  %v597 = vmul.f32 %v590, %v595
  %599 = vrot.lane.b32.xlu0 %v591, 64
  %v600 = vpop.permute.xlu0 %599
  %v602 = vmul.f32 %v590, %v600
  %604 = vrot.lane.b32.xlu0 %v602, 32
  %v605 = vpop.permute.xlu0 %604
  %v607 = vadd.f32 %v597, %v605
  %v608 = vtanh.pop %v607
  %610 = vrot.lane.b32.xlu0 %v608, 64
  %v611 = vpop.permute.xlu0 %610
  %v613 = vmul.f32 %v590, %v611
  %615 = vrot.lane.b32.xlu0 %v607, 96
  %v616 = vpop.permute.xlu0 %615
  %618 = vst.msk [vmem:[#allocation6] sm:$0x3] %vm171, %v616
  %620 = vrot.lane.b32.xlu0 %v613, 32
  %v621 = vpop.permute.xlu0 %620
  %623 = vst.msk [vmem:[#allocation5] sm:$0x3] %vm171, %v621
  %624 = vst.msk [vmem:[#allocation3 + $0x8] sm:$0x3] %vm171, %v621
  %v625 = vld [vmem:[#allocation5] sm:$0x3]
  %v626 = vld [vmem:[#allocation2 + $0xa] sm:$0x3]
  %v627 = vpack.c.bf16 %v625, %v625
  %v629 = vsel %vm124, %v627, 0
  %631 = vmatprep.subr.bf16.mxu0 0
  %632 = vmatpush1.bf16.msra.mxu0 0
  %633 = vmatprep.subr.bf16.mxu0 0
  %634 = vmatpush1.bf16.msra.mxu0 0
  %635 = vmatprep.subr.bf16.mxu0 0
  %636 = vmatpush1.bf16.msra.mxu0 0
  %637 = vmatprep.subr.bf16.mxu0 0
  %638 = vmatpush1.bf16.msra.mxu0 0
  %639 = vmatprep.subr.bf16.mxu0 0
  %640 = vmatpush1.bf16.msra.mxu0 0
  %641 = vmatprep.subr.bf16.mxu0 0
  %642 = vmatpush1.bf16.msra.mxu0 0
  %643 = vmatprep.subr.bf16.mxu0 0
  %644 = vmatpush1.bf16.msra.mxu0 %v190
  %645 = vmatprep.subr.bf16.mxu0 0
  %646 = vmatpush1.bf16.msra.mxu0 %v189
  %647 = vmatprep.subr.bf16.mxu0 0
  %648 = vmatpush2.bf16.msra.mxu0 0
  %649 = vmatprep.subr.bf16.mxu0 0
  %650 = vmatpush2.bf16.msra.mxu0 0
  %651 = vmatprep.subr.bf16.mxu0 0
  %652 = vmatpush2.bf16.msra.mxu0 0
  %653 = vmatprep.subr.bf16.mxu0 0
  %654 = vmatpush2.bf16.msra.mxu0 0
  %655 = vmatprep.subr.bf16.mxu0 0
  %656 = vmatpush2.bf16.msra.mxu0 0
  %657 = vmatprep.subr.bf16.mxu0 0
  %658 = vmatpush2.bf16.msra.mxu0 0
  %659 = vmatprep.subr.bf16.mxu0 0
  %660 = vmatpush2.bf16.msra.mxu0 0
  %661 = vmatprep.subr.bf16.mxu0 0
  %662 = vmatpush2.bf16.msra.mxu0 0
  %663 = vmatprep.mubr.bf16.mxu0 0
  %664 = vmatmul.mubr.bf16.gmra.mxu0 %v629
  %v665 = vpop.f32.mrf.mxu0
  %v666 = vadd.f32 0.0, %v665
  %v667 = vpop.f32.mrf.mxu0
  %v668 = vpop.f32.mrf.mxu0
  %v669 = vpop.f32.mrf.mxu0
  %670 = vdwg.mxu0
  %v671 = vadd.f32 %v626, %v666
  %v672 = vxor.u32 %v671, 2147483648
  %v673 = vmul.f32 %v672, 1.442695
  %v674 = vpow.pop %v673
  %v675 = vadd.f32 %v674, 1.0
  %v676 = vrcp.pop %v675
  %v677 = vmul.f32 1.0, %v676
  %v678 = vtanh.pop %v671
  %v679 = vld [vmem:[#allocation6] sm:$0x3]
  %681 = vrot.lane.b32.xlu0 %v679, 32
  %v682 = vpop.permute.xlu0 %681
  %v684 = vmul.f32 %v677, %v682
  %686 = vrot.lane.b32.xlu0 %v678, 64
  %v687 = vpop.permute.xlu0 %686
  %v689 = vmul.f32 %v677, %v687
  %691 = vrot.lane.b32.xlu0 %v689, 32
  %v692 = vpop.permute.xlu0 %691
  %v694 = vadd.f32 %v684, %v692
  %v695 = vtanh.pop %v694
  %697 = vrot.lane.b32.xlu0 %v695, 64
  %v698 = vpop.permute.xlu0 %697
  %v700 = vmul.f32 %v677, %v698
  %702 = vrot.lane.b32.xlu0 %v694, 96
  %v703 = vpop.permute.xlu0 %702
  %705 = vst.msk [vmem:[#allocation6] sm:$0x3] %vm171, %v703
  %707 = vrot.lane.b32.xlu0 %v700, 32
  %v708 = vpop.permute.xlu0 %707
  %710 = vst.msk [vmem:[#allocation5] sm:$0x3] %vm171, %v708
  %711 = vst.msk [vmem:[#allocation3 + $0xa] sm:$0x3] %vm171, %v708
  %v712 = vld [vmem:[#allocation5] sm:$0x3]
  %v713 = vld [vmem:[#allocation2 + $0xc] sm:$0x3]
  %v714 = vpack.c.bf16 %v712, %v712
  %v716 = vsel %vm124, %v714, 0
  %718 = vmatprep.subr.bf16.mxu0 0
  %719 = vmatpush1.bf16.msra.mxu0 0
  %720 = vmatprep.subr.bf16.mxu0 0
  %721 = vmatpush1.bf16.msra.mxu0 0
  %722 = vmatprep.subr.bf16.mxu0 0
  %723 = vmatpush1.bf16.msra.mxu0 0
  %724 = vmatprep.subr.bf16.mxu0 0
  %725 = vmatpush1.bf16.msra.mxu0 0
  %726 = vmatprep.subr.bf16.mxu0 0
  %727 = vmatpush1.bf16.msra.mxu0 0
  %728 = vmatprep.subr.bf16.mxu0 0
  %729 = vmatpush1.bf16.msra.mxu0 0
  %730 = vmatprep.subr.bf16.mxu0 0
  %731 = vmatpush1.bf16.msra.mxu0 %v190
  %732 = vmatprep.subr.bf16.mxu0 0
  %733 = vmatpush1.bf16.msra.mxu0 %v189
  %734 = vmatprep.subr.bf16.mxu0 0
  %735 = vmatpush2.bf16.msra.mxu0 0
  %736 = vmatprep.subr.bf16.mxu0 0
  %737 = vmatpush2.bf16.msra.mxu0 0
  %738 = vmatprep.subr.bf16.mxu0 0
  %739 = vmatpush2.bf16.msra.mxu0 0
  %740 = vmatprep.subr.bf16.mxu0 0
  %741 = vmatpush2.bf16.msra.mxu0 0
  %742 = vmatprep.subr.bf16.mxu0 0
  %743 = vmatpush2.bf16.msra.mxu0 0
  %744 = vmatprep.subr.bf16.mxu0 0
  %745 = vmatpush2.bf16.msra.mxu0 0
  %746 = vmatprep.subr.bf16.mxu0 0
  %747 = vmatpush2.bf16.msra.mxu0 0
  %748 = vmatprep.subr.bf16.mxu0 0
  %749 = vmatpush2.bf16.msra.mxu0 0
  %750 = vmatprep.mubr.bf16.mxu0 0
  %751 = vmatmul.mubr.bf16.gmra.mxu0 %v716
  %v752 = vpop.f32.mrf.mxu0
  %v753 = vadd.f32 0.0, %v752
  %v754 = vpop.f32.mrf.mxu0
  %v755 = vpop.f32.mrf.mxu0
  %v756 = vpop.f32.mrf.mxu0
  %757 = vdwg.mxu0
  %v758 = vadd.f32 %v713, %v753
  %v759 = vxor.u32 %v758, 2147483648
  %v760 = vmul.f32 %v759, 1.442695
  %v761 = vpow.pop %v760
  %v762 = vadd.f32 %v761, 1.0
  %v763 = vrcp.pop %v762
  %v764 = vmul.f32 1.0, %v763
  %v765 = vtanh.pop %v758
  %v766 = vld [vmem:[#allocation6] sm:$0x3]
  %768 = vrot.lane.b32.xlu0 %v766, 32
  %v769 = vpop.permute.xlu0 %768
  %v771 = vmul.f32 %v764, %v769
  %773 = vrot.lane.b32.xlu0 %v765, 64
  %v774 = vpop.permute.xlu0 %773
  %v776 = vmul.f32 %v764, %v774
  %778 = vrot.lane.b32.xlu0 %v776, 32
  %v779 = vpop.permute.xlu0 %778
  %v781 = vadd.f32 %v771, %v779
  %v782 = vtanh.pop %v781
  %784 = vrot.lane.b32.xlu0 %v782, 64
  %v785 = vpop.permute.xlu0 %784
  %v787 = vmul.f32 %v764, %v785
  %789 = vrot.lane.b32.xlu0 %v781, 96
  %v790 = vpop.permute.xlu0 %789
  %792 = vst.msk [vmem:[#allocation6] sm:$0x3] %vm171, %v790
  %794 = vrot.lane.b32.xlu0 %v787, 32
  %v795 = vpop.permute.xlu0 %794
  %797 = vst.msk [vmem:[#allocation5] sm:$0x3] %vm171, %v795
  %798 = vst.msk [vmem:[#allocation3 + $0xc] sm:$0x3] %vm171, %v795
  %v799 = vld [vmem:[#allocation5] sm:$0x3]
  %v800 = vld [vmem:[#allocation2 + $0xe] sm:$0x3]
  %v801 = vpack.c.bf16 %v799, %v799
  %v803 = vsel %vm124, %v801, 0
  %805 = vmatprep.subr.bf16.mxu0 0
  %806 = vmatpush1.bf16.msra.mxu0 0
  %807 = vmatprep.subr.bf16.mxu0 0
  %808 = vmatpush1.bf16.msra.mxu0 0
  %809 = vmatprep.subr.bf16.mxu0 0
  %810 = vmatpush1.bf16.msra.mxu0 0
  %811 = vmatprep.subr.bf16.mxu0 0
  %812 = vmatpush1.bf16.msra.mxu0 0
  %813 = vmatprep.subr.bf16.mxu0 0
  %814 = vmatpush1.bf16.msra.mxu0 0
  %815 = vmatprep.subr.bf16.mxu0 0
  %816 = vmatpush1.bf16.msra.mxu0 0
  %817 = vmatprep.subr.bf16.mxu0 0
  %818 = vmatpush1.bf16.msra.mxu0 %v190
  %819 = vmatprep.subr.bf16.mxu0 0
  %820 = vmatpush1.bf16.msra.mxu0 %v189
  %821 = vmatprep.subr.bf16.mxu0 0
  %822 = vmatpush2.bf16.msra.mxu0 0
  %823 = vmatprep.subr.bf16.mxu0 0
  %824 = vmatpush2.bf16.msra.mxu0 0
  %825 = vmatprep.subr.bf16.mxu0 0
  %826 = vmatpush2.bf16.msra.mxu0 0
  %827 = vmatprep.subr.bf16.mxu0 0
  %828 = vmatpush2.bf16.msra.mxu0 0
  %829 = vmatprep.subr.bf16.mxu0 0
  %830 = vmatpush2.bf16.msra.mxu0 0
  %831 = vmatprep.subr.bf16.mxu0 0
  %832 = vmatpush2.bf16.msra.mxu0 0
  %833 = vmatprep.subr.bf16.mxu0 0
  %834 = vmatpush2.bf16.msra.mxu0 0
  %835 = vmatprep.subr.bf16.mxu0 0
  %836 = vmatpush2.bf16.msra.mxu0 0
  %837 = vmatprep.mubr.bf16.mxu0 0
  %838 = vmatmul.mubr.bf16.gmra.mxu0 %v803
  %v839 = vpop.f32.mrf.mxu0
  %v840 = vadd.f32 0.0, %v839
  %v841 = vpop.f32.mrf.mxu0
  %v842 = vpop.f32.mrf.mxu0
  %v843 = vpop.f32.mrf.mxu0
  %844 = vdwg.mxu0
  %v845 = vadd.f32 %v800, %v840
  %v846 = vxor.u32 %v845, 2147483648
  %v847 = vmul.f32 %v846, 1.442695
  %v848 = vpow.pop %v847
  %v849 = vadd.f32 %v848, 1.0
  %v850 = vrcp.pop %v849
  %v851 = vmul.f32 1.0, %v850
  %v852 = vtanh.pop %v845
  %v853 = vld [vmem:[#allocation6] sm:$0x3]
  %855 = vrot.lane.b32.xlu0 %v853, 32
  %v856 = vpop.permute.xlu0 %855
  %v858 = vmul.f32 %v851, %v856
  %860 = vrot.lane.b32.xlu0 %v852, 64
  %v861 = vpop.permute.xlu0 %860
  %v863 = vmul.f32 %v851, %v861
  %865 = vrot.lane.b32.xlu0 %v863, 32
  %v866 = vpop.permute.xlu0 %865
  %v868 = vadd.f32 %v858, %v866
  %v869 = vtanh.pop %v868
  %871 = vrot.lane.b32.xlu0 %v869, 64
  %v872 = vpop.permute.xlu0 %871
  %v874 = vmul.f32 %v851, %v872
  %876 = vrot.lane.b32.xlu0 %v868, 96
  %v877 = vpop.permute.xlu0 %876
  %879 = vst.msk [vmem:[#allocation6] sm:$0x3] %vm171, %v877
  %881 = vrot.lane.b32.xlu0 %v874, 32
  %v882 = vpop.permute.xlu0 %881
  %884 = vst.msk [vmem:[#allocation5] sm:$0x3] %vm171, %v882
  %885 = vst.msk [vmem:[#allocation3 + $0xe] sm:$0x3] %vm171, %v882
  %v886 = vld [vmem:[#allocation3] sm:$0xff]
  %v887 = vld [vmem:[#allocation3 + $0x8] sm:$0xff]
  %v888 = vpack.c.bf16 %v887, %v886
  %v889 = vld [vmem:[%s5] sm:$0xf]
  %v890 = vld [vmem:[%s5 + $0x4] sm:$0xf]
  %v891 = vld [vmem:[%s5 + $0x8] sm:$0xf]
  %v892 = vld [vmem:[%s5 + $0xc] sm:$0xf]
  %v897 = vunpack.c.l.b16 %v889
  %v898 = vunpack.c.l.b16 %v890
  %v899 = vunpack.c.l.b16 %v891
  %v900 = vunpack.c.l.b16 %v892
  %v901 = vpack.c.b16 %v898, %v897
  %v902 = vpack.c.b16 %v900, %v899
  %v906 = vsel %vm124, %v888, 0
  %908 = vmatprep.subr.bf16.mxu0 0
  %909 = vmatpush1.bf16.msra.mxu0 0
  %910 = vmatprep.subr.bf16.mxu0 0
  %911 = vmatpush1.bf16.msra.mxu0 0
  %912 = vmatprep.subr.bf16.mxu0 0
  %913 = vmatpush1.bf16.msra.mxu0 0
  %914 = vmatprep.subr.bf16.mxu0 0
  %915 = vmatpush1.bf16.msra.mxu0 0
  %916 = vmatprep.subr.bf16.mxu0 0
  %917 = vmatpush1.bf16.msra.mxu0 0
  %918 = vmatprep.subr.bf16.mxu0 0
  %919 = vmatpush1.bf16.msra.mxu0 0
  %920 = vmatprep.subr.bf16.mxu0 0
  %921 = vmatpush1.bf16.msra.mxu0 %v902
  %922 = vmatprep.subr.bf16.mxu0 0
  %923 = vmatpush1.bf16.msra.mxu0 %v901
  %924 = vmatprep.subr.bf16.mxu0 0
  %925 = vmatpush2.bf16.msra.mxu0 0
  %926 = vmatprep.subr.bf16.mxu0 0
  %927 = vmatpush2.bf16.msra.mxu0 0
  %928 = vmatprep.subr.bf16.mxu0 0
  %929 = vmatpush2.bf16.msra.mxu0 0
  %930 = vmatprep.subr.bf16.mxu0 0
  %931 = vmatpush2.bf16.msra.mxu0 0
  %932 = vmatprep.subr.bf16.mxu0 0
  %933 = vmatpush2.bf16.msra.mxu0 0
  %934 = vmatprep.subr.bf16.mxu0 0
  %935 = vmatpush2.bf16.msra.mxu0 0
  %936 = vmatprep.subr.bf16.mxu0 0
  %937 = vmatpush2.bf16.msra.mxu0 0
  %938 = vmatprep.subr.bf16.mxu0 0
  %939 = vmatpush2.bf16.msra.mxu0 0
  %940 = vmatprep.mubr.bf16.mxu0 0
  %941 = vmatmul.mubr.bf16.gmra.mxu0 %v906
  %v942 = vpop.f32.mrf.mxu0
  %v943 = vadd.f32 0.0, %v942
  %v944 = vpop.f32.mrf.mxu0
  %v945 = vpop.f32.mrf.mxu0
  %v946 = vadd.f32 0.0, %v945
  %v947 = vpop.f32.mrf.mxu0
  %948 = vdwg.mxu0
  %s949 = smul.u32 4, 16
  %s950 = smul.u32 %s949, 1
  %s951 = smul.u32 %s950, 1
  %s952 = sshll.u32 %s951, 4
  %953 = dma.done [#allocation7], %s952
  %v954 = vld [vmem:[#allocation4] sm:$0xf]
  %v955 = vld [vmem:[#allocation4 + $0x4] sm:$0xf]
  %v956 = vld [vmem:[#allocation4 + $0x8] sm:$0xf]
  %v957 = vld [vmem:[#allocation4 + $0xc] sm:$0xf]
  %v958 = vld [vmem:[#allocation4 + $0x10] sm:$0xf]
  %v959 = vld [vmem:[#allocation4 + $0x14] sm:$0xf]
  %v960 = vld [vmem:[#allocation4 + $0x18] sm:$0xf]
  %v961 = vld [vmem:[#allocation4 + $0x1c] sm:$0xf]
  %v962 = vld [vmem:[#allocation4 + $0x20] sm:$0xf]
  %v963 = vld [vmem:[#allocation4 + $0x24] sm:$0xf]
  %v964 = vld [vmem:[#allocation4 + $0x28] sm:$0xf]
  %v965 = vld [vmem:[#allocation4 + $0x2c] sm:$0xf]
  %v966 = vld [vmem:[#allocation4 + $0x30] sm:$0xf]
  %v967 = vld [vmem:[#allocation4 + $0x34] sm:$0xf]
  %v968 = vld [vmem:[#allocation4 + $0x38] sm:$0xf]
  %v969 = vld [vmem:[#allocation4 + $0x3c] sm:$0xf]
  %v970 = vunpack.c.l.bf16 %v954
  %v971 = vunpack.c.l.bf16 %v955
  %v972 = vunpack.c.l.bf16 %v956
  %v973 = vunpack.c.l.bf16 %v957
  %v974 = vunpack.c.l.bf16 %v958
  %v975 = vunpack.c.l.bf16 %v959
  %v976 = vunpack.c.l.bf16 %v960
  %v977 = vunpack.c.l.bf16 %v961
  %v978 = vunpack.c.l.bf16 %v962
  %v979 = vunpack.c.l.bf16 %v963
  %v980 = vunpack.c.l.bf16 %v964
  %v981 = vunpack.c.l.bf16 %v965
  %v982 = vunpack.c.l.bf16 %v966
  %v983 = vunpack.c.l.bf16 %v967
  %v984 = vunpack.c.l.bf16 %v968
  %v985 = vunpack.c.l.bf16 %v969
  %v988 = vcombine.high %v943, %v943
  %v990 = vunpack.c.l.s4 1966171168
  %v991 = vunpack.c.0.s8 %v990
  %v992 = vlaneseq
  %v993 = vshrl.u32 %v992, 7
  %v994 = vsub.s32 %v991, %v993
  %v995 = vrot.slane %v943, %v994
  %v997 = vunpack.c.l.s4 1966171168
  %v998 = vunpack.c.0.s8 %v997
  %v999 = vlaneseq
  %v1000 = vshrl.u32 %v999, 7
  %v1001 = vsub.s32 %v998, %v1000
  %v1002 = vrot.slane %v988, %v1001
  %v1003 = vcombine.high %v995, %v995
  %v1004 = vcombine.high %v1002, %v1002
  %v1006 = vunpack.c.l.s4 1966171168
  %v1007 = vunpack.c.0.s8 %v1006
  %v1008 = vlaneseq
  %v1009 = vshrl.u32 %v1008, 7
  %v1010 = vsub.s32 %v1007, %v1009
  %v1011 = vrot.slane %v995, %v1010
  %v1013 = vunpack.c.l.s4 1966171168
  %v1014 = vunpack.c.0.s8 %v1013
  %v1015 = vlaneseq
  %v1016 = vshrl.u32 %v1015, 7
  %v1017 = vsub.s32 %v1014, %v1016
  %v1018 = vrot.slane %v1002, %v1017
  %v1020 = vunpack.c.l.s4 1966171168
  %v1021 = vunpack.c.0.s8 %v1020
  %v1022 = vlaneseq
  %v1023 = vshrl.u32 %v1022, 7
  %v1024 = vsub.s32 %v1021, %v1023
  %v1025 = vrot.slane %v1003, %v1024
  %v1027 = vunpack.c.l.s4 1966171168
  %v1028 = vunpack.c.0.s8 %v1027
  %v1029 = vlaneseq
  %v1030 = vshrl.u32 %v1029, 7
  %v1031 = vsub.s32 %v1028, %v1030
  %v1032 = vrot.slane %v1004, %v1031
  %v1033 = vcombine.high %v1011, %v1011
  %v1034 = vcombine.high %v1018, %v1018
  %v1035 = vcombine.high %v1025, %v1025
  %v1036 = vcombine.high %v1032, %v1032
  %v1037 = vcombine.high %v946, %v946
  %v1039 = vunpack.c.l.s4 1966171168
  %v1040 = vunpack.c.0.s8 %v1039
  %v1041 = vlaneseq
  %v1042 = vshrl.u32 %v1041, 7
  %v1043 = vsub.s32 %v1040, %v1042
  %v1044 = vrot.slane %v946, %v1043
  %v1046 = vunpack.c.l.s4 1966171168
  %v1047 = vunpack.c.0.s8 %v1046
  %v1048 = vlaneseq
  %v1049 = vshrl.u32 %v1048, 7
  %v1050 = vsub.s32 %v1047, %v1049
  %v1051 = vrot.slane %v1037, %v1050
  %v1052 = vcombine.high %v1044, %v1044
  %v1053 = vcombine.high %v1051, %v1051
  %v1055 = vunpack.c.l.s4 1966171168
  %v1056 = vunpack.c.0.s8 %v1055
  %v1057 = vlaneseq
  %v1058 = vshrl.u32 %v1057, 7
  %v1059 = vsub.s32 %v1056, %v1058
  %v1060 = vrot.slane %v1044, %v1059
  %v1062 = vunpack.c.l.s4 1966171168
  %v1063 = vunpack.c.0.s8 %v1062
  %v1064 = vlaneseq
  %v1065 = vshrl.u32 %v1064, 7
  %v1066 = vsub.s32 %v1063, %v1065
  %v1067 = vrot.slane %v1051, %v1066
  %v1069 = vunpack.c.l.s4 1966171168
  %v1070 = vunpack.c.0.s8 %v1069
  %v1071 = vlaneseq
  %v1072 = vshrl.u32 %v1071, 7
  %v1073 = vsub.s32 %v1070, %v1072
  %v1074 = vrot.slane %v1052, %v1073
  %v1076 = vunpack.c.l.s4 1966171168
  %v1077 = vunpack.c.0.s8 %v1076
  %v1078 = vlaneseq
  %v1079 = vshrl.u32 %v1078, 7
  %v1080 = vsub.s32 %v1077, %v1079
  %v1081 = vrot.slane %v1053, %v1080
  %v1082 = vcombine.high %v1060, %v1060
  %v1083 = vcombine.high %v1067, %v1067
  %v1084 = vcombine.high %v1074, %v1074
  %v1085 = vcombine.high %v1081, %v1081
  %v1086 = vlaneseq
  %v1087 = vshrl.u32 %v1086, 7
  %v1088 = vsub.s32 0, %v1087
  %v1089 = vrot.slane %v1011, %v1088
  %v1090 = vlaneseq
  %v1091 = vshrl.u32 %v1090, 7
  %v1092 = vsub.s32 0, %v1091
  %v1093 = vrot.slane %v1025, %v1092
  %v1094 = vlaneseq
  %v1095 = vshrl.u32 %v1094, 7
  %v1096 = vsub.s32 0, %v1095
  %v1097 = vrot.slane %v1033, %v1096
  %v1098 = vlaneseq
  %v1099 = vshrl.u32 %v1098, 7
  %v1100 = vsub.s32 0, %v1099
  %v1101 = vrot.slane %v1035, %v1100
  %v1102 = vlaneseq
  %v1103 = vshrl.u32 %v1102, 7
  %v1104 = vsub.s32 0, %v1103
  %v1105 = vrot.slane %v1018, %v1104
  %v1106 = vlaneseq
  %v1107 = vshrl.u32 %v1106, 7
  %v1108 = vsub.s32 0, %v1107
  %v1109 = vrot.slane %v1032, %v1108
  %v1110 = vlaneseq
  %v1111 = vshrl.u32 %v1110, 7
  %v1112 = vsub.s32 0, %v1111
  %v1113 = vrot.slane %v1034, %v1112
  %v1114 = vlaneseq
  %v1115 = vshrl.u32 %v1114, 7
  %v1116 = vsub.s32 0, %v1115
  %v1117 = vrot.slane %v1036, %v1116
  %v1118 = vlaneseq
  %v1119 = vshrl.u32 %v1118, 7
  %v1120 = vsub.s32 0, %v1119
  %v1121 = vrot.slane %v1060, %v1120
  %v1122 = vlaneseq
  %v1123 = vshrl.u32 %v1122, 7
  %v1124 = vsub.s32 0, %v1123
  %v1125 = vrot.slane %v1074, %v1124
  %v1126 = vlaneseq
  %v1127 = vshrl.u32 %v1126, 7
  %v1128 = vsub.s32 0, %v1127
  %v1129 = vrot.slane %v1082, %v1128
  %v1130 = vlaneseq
  %v1131 = vshrl.u32 %v1130, 7
  %v1132 = vsub.s32 0, %v1131
  %v1133 = vrot.slane %v1084, %v1132
  %v1134 = vlaneseq
  %v1135 = vshrl.u32 %v1134, 7
  %v1136 = vsub.s32 0, %v1135
  %v1137 = vrot.slane %v1067, %v1136
  %v1138 = vlaneseq
  %v1139 = vshrl.u32 %v1138, 7
  %v1140 = vsub.s32 0, %v1139
  %v1141 = vrot.slane %v1081, %v1140
  %v1142 = vlaneseq
  %v1143 = vshrl.u32 %v1142, 7
  %v1144 = vsub.s32 0, %v1143
  %v1145 = vrot.slane %v1083, %v1144
  %v1146 = vlaneseq
  %v1147 = vshrl.u32 %v1146, 7
  %v1148 = vsub.s32 0, %v1147
  %v1149 = vrot.slane %v1085, %v1148
  %v1166 = vmul.f32 %v970, %v1089
  %v1167 = vmul.f32 %v971, %v1093
  %v1168 = vmul.f32 %v972, %v1097
  %v1169 = vmul.f32 %v973, %v1101
  %v1170 = vmul.f32 %v974, %v1105
  %v1171 = vmul.f32 %v975, %v1109
  %v1172 = vmul.f32 %v976, %v1113
  %v1173 = vmul.f32 %v977, %v1117
  %v1174 = vmul.f32 %v978, %v1121
  %v1175 = vmul.f32 %v979, %v1125
  %v1176 = vmul.f32 %v980, %v1129
  %v1177 = vmul.f32 %v981, %v1133
  %v1178 = vmul.f32 %v982, %v1137
  %v1179 = vmul.f32 %v983, %v1141
  %v1180 = vmul.f32 %v984, %v1145
  %v1181 = vmul.f32 %v985, %v1149
  %v1182 = vsel %vm124, %v1166, 0.0
  %1183 = vadd.xlane.f32.xlu0 %v1182
  %v1184 = vpop.xlane.xlu0 %1183
  %v1185 = vsel %vm124, %v1167, 0.0
  %1186 = vadd.xlane.f32.xlu0 %v1185
  %v1187 = vpop.xlane.xlu0 %1186
  %v1188 = vsel %vm124, %v1168, 0.0
  %1189 = vadd.xlane.f32.xlu0 %v1188
  %v1190 = vpop.xlane.xlu0 %1189
  %v1191 = vsel %vm124, %v1169, 0.0
  %1192 = vadd.xlane.f32.xlu0 %v1191
  %v1193 = vpop.xlane.xlu0 %1192
  %v1194 = vsel %vm124, %v1170, 0.0
  %1195 = vadd.xlane.f32.xlu0 %v1194
  %v1196 = vpop.xlane.xlu0 %1195
  %v1197 = vsel %vm124, %v1171, 0.0
  %1198 = vadd.xlane.f32.xlu0 %v1197
  %v1199 = vpop.xlane.xlu0 %1198
  %v1200 = vsel %vm124, %v1172, 0.0
  %1201 = vadd.xlane.f32.xlu0 %v1200
  %v1202 = vpop.xlane.xlu0 %1201
  %v1203 = vsel %vm124, %v1173, 0.0
  %1204 = vadd.xlane.f32.xlu0 %v1203
  %v1205 = vpop.xlane.xlu0 %1204
  %v1206 = vsel %vm124, %v1174, 0.0
  %1207 = vadd.xlane.f32.xlu0 %v1206
  %v1208 = vpop.xlane.xlu0 %1207
  %v1209 = vsel %vm124, %v1175, 0.0
  %1210 = vadd.xlane.f32.xlu0 %v1209
  %v1211 = vpop.xlane.xlu0 %1210
  %v1212 = vsel %vm124, %v1176, 0.0
  %1213 = vadd.xlane.f32.xlu0 %v1212
  %v1214 = vpop.xlane.xlu0 %1213
  %v1215 = vsel %vm124, %v1177, 0.0
  %1216 = vadd.xlane.f32.xlu0 %v1215
  %v1217 = vpop.xlane.xlu0 %1216
  %v1218 = vsel %vm124, %v1178, 0.0
  %1219 = vadd.xlane.f32.xlu0 %v1218
  %v1220 = vpop.xlane.xlu0 %1219
  %v1221 = vsel %vm124, %v1179, 0.0
  %1222 = vadd.xlane.f32.xlu0 %v1221
  %v1223 = vpop.xlane.xlu0 %1222
  %v1224 = vsel %vm124, %v1180, 0.0
  %1225 = vadd.xlane.f32.xlu0 %v1224
  %v1226 = vpop.xlane.xlu0 %1225
  %v1227 = vsel %vm124, %v1181, 0.0
  %1228 = vadd.xlane.f32.xlu0 %v1227
  %v1229 = vpop.xlane.xlu0 %1228
  %v1246 = vlaneseq
  %v1247 = vand.u32 %v1246, 127
  %v1248 = vlaneseq
  %v1249 = vshrl.u32 %v1248, 7
  %v1250 = vsub.s32 %v1247, %v1249
  %v1251 = vrot.slane %v1184, %v1250
  %v1252 = vlaneseq
  %v1253 = vshrl.u32 %v1252, 7
  %v1254 = vsub.s32 %v1247, %v1253
  %v1255 = vrot.slane %v1187, %v1254
  %v1256 = vlaneseq
  %v1257 = vshrl.u32 %v1256, 7
  %v1258 = vsub.s32 %v1247, %v1257
  %v1259 = vrot.slane %v1190, %v1258
  %v1260 = vlaneseq
  %v1261 = vshrl.u32 %v1260, 7
  %v1262 = vsub.s32 %v1247, %v1261
  %v1263 = vrot.slane %v1193, %v1262
  %v1264 = vlaneseq
  %v1265 = vshrl.u32 %v1264, 7
  %v1266 = vsub.s32 %v1247, %v1265
  %v1267 = vrot.slane %v1196, %v1266
  %v1268 = vlaneseq
  %v1269 = vshrl.u32 %v1268, 7
  %v1270 = vsub.s32 %v1247, %v1269
  %v1271 = vrot.slane %v1199, %v1270
  %v1272 = vlaneseq
  %v1273 = vshrl.u32 %v1272, 7
  %v1274 = vsub.s32 %v1247, %v1273
  %v1275 = vrot.slane %v1202, %v1274
  %v1276 = vlaneseq
  %v1277 = vshrl.u32 %v1276, 7
  %v1278 = vsub.s32 %v1247, %v1277
  %v1279 = vrot.slane %v1205, %v1278
  %v1280 = vlaneseq
  %v1281 = vshrl.u32 %v1280, 7
  %v1282 = vsub.s32 %v1247, %v1281
  %v1283 = vrot.slane %v1208, %v1282
  %v1284 = vlaneseq
  %v1285 = vshrl.u32 %v1284, 7
  %v1286 = vsub.s32 %v1247, %v1285
  %v1287 = vrot.slane %v1211, %v1286
  %v1288 = vlaneseq
  %v1289 = vshrl.u32 %v1288, 7
  %v1290 = vsub.s32 %v1247, %v1289
  %v1291 = vrot.slane %v1214, %v1290
  %v1292 = vlaneseq
  %v1293 = vshrl.u32 %v1292, 7
  %v1294 = vsub.s32 %v1247, %v1293
  %v1295 = vrot.slane %v1217, %v1294
  %v1296 = vlaneseq
  %v1297 = vshrl.u32 %v1296, 7
  %v1298 = vsub.s32 %v1247, %v1297
  %v1299 = vrot.slane %v1220, %v1298
  %v1300 = vlaneseq
  %v1301 = vshrl.u32 %v1300, 7
  %v1302 = vsub.s32 %v1247, %v1301
  %v1303 = vrot.slane %v1223, %v1302
  %v1304 = vlaneseq
  %v1305 = vshrl.u32 %v1304, 7
  %v1306 = vsub.s32 %v1247, %v1305
  %v1307 = vrot.slane %v1226, %v1306
  %v1308 = vlaneseq
  %v1309 = vshrl.u32 %v1308, 7
  %v1310 = vsub.s32 %v1247, %v1309
  %v1311 = vrot.slane %v1229, %v1310
  %vm1312 = vcmask 1041409
  %v1313 = vsel %vm1312, %v1255, %v1251
  %vm1314 = vcmask 1042434
  %v1315 = vsel %vm1314, %v1259, %v1313
  %vm1316 = vcmask 1043459
  %v1317 = vsel %vm1316, %v1263, %v1315
  %vm1318 = vcmask 1044484
  %v1319 = vsel %vm1318, %v1267, %v1317
  %vm1320 = vcmask 1045509
  %v1321 = vsel %vm1320, %v1271, %v1319
  %vm1322 = vcmask 1046534
  %v1323 = vsel %vm1322, %v1275, %v1321
  %vm1324 = vcmask 1047559
  %v1325 = vsel %vm1324, %v1279, %v1323
  %v1326 = vsel %vm1312, %v1287, %v1283
  %v1327 = vsel %vm1314, %v1291, %v1326
  %v1328 = vsel %vm1316, %v1295, %v1327
  %v1329 = vsel %vm1318, %v1299, %v1328
  %v1330 = vsel %vm1320, %v1303, %v1329
  %v1331 = vsel %vm1322, %v1307, %v1330
  %v1332 = vsel %vm1324, %v1311, %v1331
  %vm1335 = vcmask 64512
  %v1336 = vsel %vm1335, %v1325, -inf
  %1337 = vmax.xlane.f32.xlu0 %v1336
  %v1338 = vpop.xlane.xlu0 %1337
  %v1339 = vsel %vm1335, %v1332, -inf
  %1340 = vmax.xlane.f32.xlu0 %v1339
  %v1341 = vpop.xlane.xlu0 %1340
  %v1344 = vlaneseq
  %v1345 = vshrl.u32 %v1344, 7
  %v1346 = vsub.s32 0, %v1345
  %v1347 = vrot.slane %v1338, %v1346
  %v1348 = vlaneseq
  %v1349 = vshrl.u32 %v1348, 7
  %v1350 = vsub.s32 1, %v1349
  %v1351 = vrot.slane %v1338, %v1350
  %v1352 = vlaneseq
  %v1353 = vshrl.u32 %v1352, 7
  %v1354 = vsub.s32 2, %v1353
  %v1355 = vrot.slane %v1338, %v1354
  %v1356 = vlaneseq
  %v1357 = vshrl.u32 %v1356, 7
  %v1358 = vsub.s32 3, %v1357
  %v1359 = vrot.slane %v1338, %v1358
  %v1360 = vlaneseq
  %v1361 = vshrl.u32 %v1360, 7
  %v1362 = vsub.s32 4, %v1361
  %v1363 = vrot.slane %v1338, %v1362
  %v1364 = vlaneseq
  %v1365 = vshrl.u32 %v1364, 7
  %v1366 = vsub.s32 5, %v1365
  %v1367 = vrot.slane %v1338, %v1366
  %v1368 = vlaneseq
  %v1369 = vshrl.u32 %v1368, 7
  %v1370 = vsub.s32 6, %v1369
  %v1371 = vrot.slane %v1338, %v1370
  %v1372 = vlaneseq
  %v1373 = vshrl.u32 %v1372, 7
  %v1374 = vsub.s32 7, %v1373
  %v1375 = vrot.slane %v1338, %v1374
  %v1376 = vlaneseq
  %v1377 = vshrl.u32 %v1376, 7
  %v1378 = vsub.s32 0, %v1377
  %v1379 = vrot.slane %v1341, %v1378
  %v1380 = vlaneseq
  %v1381 = vshrl.u32 %v1380, 7
  %v1382 = vsub.s32 1, %v1381
  %v1383 = vrot.slane %v1341, %v1382
  %v1384 = vlaneseq
  %v1385 = vshrl.u32 %v1384, 7
  %v1386 = vsub.s32 2, %v1385
  %v1387 = vrot.slane %v1341, %v1386
  %v1388 = vlaneseq
  %v1389 = vshrl.u32 %v1388, 7
  %v1390 = vsub.s32 3, %v1389
  %v1391 = vrot.slane %v1341, %v1390
  %v1392 = vlaneseq
  %v1393 = vshrl.u32 %v1392, 7
  %v1394 = vsub.s32 4, %v1393
  %v1395 = vrot.slane %v1341, %v1394
  %v1396 = vlaneseq
  %v1397 = vshrl.u32 %v1396, 7
  %v1398 = vsub.s32 5, %v1397
  %v1399 = vrot.slane %v1341, %v1398
  %v1400 = vlaneseq
  %v1401 = vshrl.u32 %v1400, 7
  %v1402 = vsub.s32 6, %v1401
  %v1403 = vrot.slane %v1341, %v1402
  %v1404 = vlaneseq
  %v1405 = vshrl.u32 %v1404, 7
  %v1406 = vsub.s32 7, %v1405
  %v1407 = vrot.slane %v1341, %v1406
  %v1424 = vsub.f32 %v1184, %v1347
  %v1425 = vsub.f32 %v1187, %v1351
  %v1426 = vsub.f32 %v1190, %v1355
  %v1427 = vsub.f32 %v1193, %v1359
  %v1428 = vsub.f32 %v1196, %v1363
  %v1429 = vsub.f32 %v1199, %v1367
  %v1430 = vsub.f32 %v1202, %v1371
  %v1431 = vsub.f32 %v1205, %v1375
  %v1432 = vsub.f32 %v1208, %v1379
  %v1433 = vsub.f32 %v1211, %v1383
  %v1434 = vsub.f32 %v1214, %v1387
  %v1435 = vsub.f32 %v1217, %v1391
  %v1436 = vsub.f32 %v1220, %v1395
  %v1437 = vsub.f32 %v1223, %v1399
  %v1438 = vsub.f32 %v1226, %v1403
  %v1439 = vsub.f32 %v1229, %v1407
  %v1440 = vmul.f32 %v1424, 1.442695
  %v1441 = vpow.pop %v1440
  %v1442 = vmul.f32 %v1425, 1.442695
  %v1443 = vpow.pop %v1442
  %v1444 = vmul.f32 %v1426, 1.442695
  %v1445 = vpow.pop %v1444
  %v1446 = vmul.f32 %v1427, 1.442695
  %v1447 = vpow.pop %v1446
  %v1448 = vmul.f32 %v1428, 1.442695
  %v1449 = vpow.pop %v1448
  %v1450 = vmul.f32 %v1429, 1.442695
  %v1451 = vpow.pop %v1450
  %v1452 = vmul.f32 %v1430, 1.442695
  %v1453 = vpow.pop %v1452
  %v1454 = vmul.f32 %v1431, 1.442695
  %v1455 = vpow.pop %v1454
  %v1456 = vmul.f32 %v1432, 1.442695
  %v1457 = vpow.pop %v1456
  %v1458 = vmul.f32 %v1433, 1.442695
  %v1459 = vpow.pop %v1458
  %v1460 = vmul.f32 %v1434, 1.442695
  %v1461 = vpow.pop %v1460
  %v1462 = vmul.f32 %v1435, 1.442695
  %v1463 = vpow.pop %v1462
  %v1464 = vmul.f32 %v1436, 1.442695
  %v1465 = vpow.pop %v1464
  %v1466 = vmul.f32 %v1437, 1.442695
  %v1467 = vpow.pop %v1466
  %v1468 = vmul.f32 %v1438, 1.442695
  %v1469 = vpow.pop %v1468
  %v1470 = vmul.f32 %v1439, 1.442695
  %v1471 = vpow.pop %v1470
  %1488 = vset.pattern.permute.xlu0 0
  %1489 = vperm.xlu0 %1488, %v1441
  %v1490 = vpop.permute.xlu0 %1489
  %1491 = vset.pattern.permute.xlu0 0
  %1492 = vperm.xlu0 %1491, %v1443
  %v1493 = vpop.permute.xlu0 %1492
  %1494 = vset.pattern.permute.xlu0 0
  %1495 = vperm.xlu0 %1494, %v1445
  %v1496 = vpop.permute.xlu0 %1495
  %1497 = vset.pattern.permute.xlu0 0
  %1498 = vperm.xlu0 %1497, %v1447
  %v1499 = vpop.permute.xlu0 %1498
  %1500 = vset.pattern.permute.xlu0 0
  %1501 = vperm.xlu0 %1500, %v1449
  %v1502 = vpop.permute.xlu0 %1501
  %1503 = vset.pattern.permute.xlu0 0
  %1504 = vperm.xlu0 %1503, %v1451
  %v1505 = vpop.permute.xlu0 %1504
  %1506 = vset.pattern.permute.xlu0 0
  %1507 = vperm.xlu0 %1506, %v1453
  %v1508 = vpop.permute.xlu0 %1507
  %1509 = vset.pattern.permute.xlu0 0
  %1510 = vperm.xlu0 %1509, %v1455
  %v1511 = vpop.permute.xlu0 %1510
  %1512 = vset.pattern.permute.xlu0 0
  %1513 = vperm.xlu0 %1512, %v1457
  %v1514 = vpop.permute.xlu0 %1513
  %1515 = vset.pattern.permute.xlu0 0
  %1516 = vperm.xlu0 %1515, %v1459
  %v1517 = vpop.permute.xlu0 %1516
  %1518 = vset.pattern.permute.xlu0 0
  %1519 = vperm.xlu0 %1518, %v1461
  %v1520 = vpop.permute.xlu0 %1519
  %1521 = vset.pattern.permute.xlu0 0
  %1522 = vperm.xlu0 %1521, %v1463
  %v1523 = vpop.permute.xlu0 %1522
  %1524 = vset.pattern.permute.xlu0 0
  %1525 = vperm.xlu0 %1524, %v1465
  %v1526 = vpop.permute.xlu0 %1525
  %1527 = vset.pattern.permute.xlu0 0
  %1528 = vperm.xlu0 %1527, %v1467
  %v1529 = vpop.permute.xlu0 %1528
  %1530 = vset.pattern.permute.xlu0 0
  %1531 = vperm.xlu0 %1530, %v1469
  %v1532 = vpop.permute.xlu0 %1531
  %1533 = vset.pattern.permute.xlu0 0
  %1534 = vperm.xlu0 %1533, %v1471
  %v1535 = vpop.permute.xlu0 %1534
  %v1536 = vlaneseq
  %v1537 = vshrl.u32 %v1536, 7
  %v1538 = vsub.s32 %v1247, %v1537
  %v1539 = vrot.slane %v1490, %v1538
  %v1540 = vlaneseq
  %v1541 = vshrl.u32 %v1540, 7
  %v1542 = vsub.s32 %v1247, %v1541
  %v1543 = vrot.slane %v1493, %v1542
  %v1544 = vlaneseq
  %v1545 = vshrl.u32 %v1544, 7
  %v1546 = vsub.s32 %v1247, %v1545
  %v1547 = vrot.slane %v1496, %v1546
  %v1548 = vlaneseq
  %v1549 = vshrl.u32 %v1548, 7
  %v1550 = vsub.s32 %v1247, %v1549
  %v1551 = vrot.slane %v1499, %v1550
  %v1552 = vlaneseq
  %v1553 = vshrl.u32 %v1552, 7
  %v1554 = vsub.s32 %v1247, %v1553
  %v1555 = vrot.slane %v1502, %v1554
  %v1556 = vlaneseq
  %v1557 = vshrl.u32 %v1556, 7
  %v1558 = vsub.s32 %v1247, %v1557
  %v1559 = vrot.slane %v1505, %v1558
  %v1560 = vlaneseq
  %v1561 = vshrl.u32 %v1560, 7
  %v1562 = vsub.s32 %v1247, %v1561
  %v1563 = vrot.slane %v1508, %v1562
  %v1564 = vlaneseq
  %v1565 = vshrl.u32 %v1564, 7
  %v1566 = vsub.s32 %v1247, %v1565
  %v1567 = vrot.slane %v1511, %v1566
  %v1568 = vlaneseq
  %v1569 = vshrl.u32 %v1568, 7
  %v1570 = vsub.s32 %v1247, %v1569
  %v1571 = vrot.slane %v1514, %v1570
  %v1572 = vlaneseq
  %v1573 = vshrl.u32 %v1572, 7
  %v1574 = vsub.s32 %v1247, %v1573
  %v1575 = vrot.slane %v1517, %v1574
  %v1576 = vlaneseq
  %v1577 = vshrl.u32 %v1576, 7
  %v1578 = vsub.s32 %v1247, %v1577
  %v1579 = vrot.slane %v1520, %v1578
  %v1580 = vlaneseq
  %v1581 = vshrl.u32 %v1580, 7
  %v1582 = vsub.s32 %v1247, %v1581
  %v1583 = vrot.slane %v1523, %v1582
  %v1584 = vlaneseq
  %v1585 = vshrl.u32 %v1584, 7
  %v1586 = vsub.s32 %v1247, %v1585
  %v1587 = vrot.slane %v1526, %v1586
  %v1588 = vlaneseq
  %v1589 = vshrl.u32 %v1588, 7
  %v1590 = vsub.s32 %v1247, %v1589
  %v1591 = vrot.slane %v1529, %v1590
  %v1592 = vlaneseq
  %v1593 = vshrl.u32 %v1592, 7
  %v1594 = vsub.s32 %v1247, %v1593
  %v1595 = vrot.slane %v1532, %v1594
  %v1596 = vlaneseq
  %v1597 = vshrl.u32 %v1596, 7
  %v1598 = vsub.s32 %v1247, %v1597
  %v1599 = vrot.slane %v1535, %v1598
  %v1600 = vsel %vm1312, %v1543, %v1539
  %v1601 = vsel %vm1314, %v1547, %v1600
  %v1602 = vsel %vm1316, %v1551, %v1601
  %v1603 = vsel %vm1318, %v1555, %v1602
  %v1604 = vsel %vm1320, %v1559, %v1603
  %v1605 = vsel %vm1322, %v1563, %v1604
  %v1606 = vsel %vm1324, %v1567, %v1605
  %v1607 = vsel %vm1312, %v1575, %v1571
  %v1608 = vsel %vm1314, %v1579, %v1607
  %v1609 = vsel %vm1316, %v1583, %v1608
  %v1610 = vsel %vm1318, %v1587, %v1609
  %v1611 = vsel %vm1320, %v1591, %v1610
  %v1612 = vsel %vm1322, %v1595, %v1611
  %v1613 = vsel %vm1324, %v1599, %v1612
  %v1616 = vsel %vm1335, %v1606, 0.0
  %1617 = vadd.xlane.f32.xlu0 %v1616
  %v1618 = vpop.xlane.xlu0 %1617
  %v1619 = vsel %vm1335, %v1613, 0.0
  %1620 = vadd.xlane.f32.xlu0 %v1619
  %v1621 = vpop.xlane.xlu0 %1620
  %v1622 = vrcp.pop %v1618
  %v1623 = vrcp.pop %v1621
  %v1626 = vlaneseq
  %v1627 = vshrl.u32 %v1626, 7
  %v1628 = vsub.s32 0, %v1627
  %v1629 = vrot.slane %v1622, %v1628
  %v1630 = vlaneseq
  %v1631 = vshrl.u32 %v1630, 7
  %v1632 = vsub.s32 1, %v1631
  %v1633 = vrot.slane %v1622, %v1632
  %v1634 = vlaneseq
  %v1635 = vshrl.u32 %v1634, 7
  %v1636 = vsub.s32 2, %v1635
  %v1637 = vrot.slane %v1622, %v1636
  %v1638 = vlaneseq
  %v1639 = vshrl.u32 %v1638, 7
  %v1640 = vsub.s32 3, %v1639
  %v1641 = vrot.slane %v1622, %v1640
  %v1642 = vlaneseq
  %v1643 = vshrl.u32 %v1642, 7
  %v1644 = vsub.s32 4, %v1643
  %v1645 = vrot.slane %v1622, %v1644
  %v1646 = vlaneseq
  %v1647 = vshrl.u32 %v1646, 7
  %v1648 = vsub.s32 5, %v1647
  %v1649 = vrot.slane %v1622, %v1648
  %v1650 = vlaneseq
  %v1651 = vshrl.u32 %v1650, 7
  %v1652 = vsub.s32 6, %v1651
  %v1653 = vrot.slane %v1622, %v1652
  %v1654 = vlaneseq
  %v1655 = vshrl.u32 %v1654, 7
  %v1656 = vsub.s32 7, %v1655
  %v1657 = vrot.slane %v1622, %v1656
  %v1658 = vlaneseq
  %v1659 = vshrl.u32 %v1658, 7
  %v1660 = vsub.s32 0, %v1659
  %v1661 = vrot.slane %v1623, %v1660
  %v1662 = vlaneseq
  %v1663 = vshrl.u32 %v1662, 7
  %v1664 = vsub.s32 1, %v1663
  %v1665 = vrot.slane %v1623, %v1664
  %v1666 = vlaneseq
  %v1667 = vshrl.u32 %v1666, 7
  %v1668 = vsub.s32 2, %v1667
  %v1669 = vrot.slane %v1623, %v1668
  %v1670 = vlaneseq
  %v1671 = vshrl.u32 %v1670, 7
  %v1672 = vsub.s32 3, %v1671
  %v1673 = vrot.slane %v1623, %v1672
  %v1674 = vlaneseq
  %v1675 = vshrl.u32 %v1674, 7
  %v1676 = vsub.s32 4, %v1675
  %v1677 = vrot.slane %v1623, %v1676
  %v1678 = vlaneseq
  %v1679 = vshrl.u32 %v1678, 7
  %v1680 = vsub.s32 5, %v1679
  %v1681 = vrot.slane %v1623, %v1680
  %v1682 = vlaneseq
  %v1683 = vshrl.u32 %v1682, 7
  %v1684 = vsub.s32 6, %v1683
  %v1685 = vrot.slane %v1623, %v1684
  %v1686 = vlaneseq
  %v1687 = vshrl.u32 %v1686, 7
  %v1688 = vsub.s32 7, %v1687
  %v1689 = vrot.slane %v1623, %v1688
  %v1706 = vmul.f32 %v1441, %v1629
  %v1707 = vmul.f32 %v1443, %v1633
  %v1708 = vmul.f32 %v1445, %v1637
  %v1709 = vmul.f32 %v1447, %v1641
  %v1710 = vmul.f32 %v1449, %v1645
  %v1711 = vmul.f32 %v1451, %v1649
  %v1712 = vmul.f32 %v1453, %v1653
  %v1713 = vmul.f32 %v1455, %v1657
  %v1714 = vmul.f32 %v1457, %v1661
  %v1715 = vmul.f32 %v1459, %v1665
  %v1716 = vmul.f32 %v1461, %v1669
  %v1717 = vmul.f32 %v1463, %v1673
  %v1718 = vmul.f32 %v1465, %v1677
  %v1719 = vmul.f32 %v1467, %v1681
  %v1720 = vmul.f32 %v1469, %v1685
  %v1721 = vmul.f32 %v1471, %v1689
  %1723 = vset.pattern.permute.xlu0 0
  %1724 = vperm.xlu0 %1723, %v1706
  %v1725 = vpop.permute.xlu0 %1724
  %1728 = vset.pattern.permute.xlu0 0
  %1729 = vperm.xlu0 %1728, %v1707
  %v1730 = vpop.permute.xlu0 %1729
  %1733 = vset.pattern.permute.xlu0 0
  %1734 = vperm.xlu0 %1733, %v1708
  %v1735 = vpop.permute.xlu0 %1734
  %1738 = vset.pattern.permute.xlu0 0
  %1739 = vperm.xlu0 %1738, %v1709
  %v1740 = vpop.permute.xlu0 %1739
  %1743 = vset.pattern.permute.xlu0 0
  %1744 = vperm.xlu0 %1743, %v1710
  %v1745 = vpop.permute.xlu0 %1744
  %1748 = vset.pattern.permute.xlu0 0
  %1749 = vperm.xlu0 %1748, %v1711
  %v1750 = vpop.permute.xlu0 %1749
  %1753 = vset.pattern.permute.xlu0 0
  %1754 = vperm.xlu0 %1753, %v1712
  %v1755 = vpop.permute.xlu0 %1754
  %1758 = vset.pattern.permute.xlu0 0
  %1759 = vperm.xlu0 %1758, %v1713
  %v1760 = vpop.permute.xlu0 %1759
  %1763 = vset.pattern.permute.xlu0 0
  %1764 = vperm.xlu0 %1763, %v1714
  %v1765 = vpop.permute.xlu0 %1764
  %1768 = vset.pattern.permute.xlu0 0
  %1769 = vperm.xlu0 %1768, %v1715
  %v1770 = vpop.permute.xlu0 %1769
  %1773 = vset.pattern.permute.xlu0 0
  %1774 = vperm.xlu0 %1773, %v1716
  %v1775 = vpop.permute.xlu0 %1774
  %1778 = vset.pattern.permute.xlu0 0
  %1779 = vperm.xlu0 %1778, %v1717
  %v1780 = vpop.permute.xlu0 %1779
  %1783 = vset.pattern.permute.xlu0 0
  %1784 = vperm.xlu0 %1783, %v1718
  %v1785 = vpop.permute.xlu0 %1784
  %1788 = vset.pattern.permute.xlu0 0
  %1789 = vperm.xlu0 %1788, %v1719
  %v1790 = vpop.permute.xlu0 %1789
  %1793 = vset.pattern.permute.xlu0 0
  %1794 = vperm.xlu0 %1793, %v1720
  %v1795 = vpop.permute.xlu0 %1794
  %1798 = vset.pattern.permute.xlu0 0
  %1799 = vperm.xlu0 %1798, %v1721
  %v1800 = vpop.permute.xlu0 %1799
  %v1802 = vmul.f32 %v1725, %v970
  %v1803 = vmul.f32 %v1730, %v971
  %v1804 = vmul.f32 %v1735, %v972
  %v1805 = vmul.f32 %v1740, %v973
  %v1806 = vmul.f32 %v1745, %v974
  %v1807 = vmul.f32 %v1750, %v975
  %v1808 = vmul.f32 %v1755, %v976
  %v1809 = vmul.f32 %v1760, %v977
  %v1810 = vmul.f32 %v1765, %v978
  %v1811 = vmul.f32 %v1770, %v979
  %v1812 = vmul.f32 %v1775, %v980
  %v1813 = vmul.f32 %v1780, %v981
  %v1814 = vmul.f32 %v1785, %v982
  %v1815 = vmul.f32 %v1790, %v983
  %v1816 = vmul.f32 %v1795, %v984
  %v1817 = vmul.f32 %v1800, %v985
  %v1818 = vsel %vm124, %v1802, 0.0
  %v1819 = vrot.slane %v1818, 4
  %v1820 = vadd.f32 %v1818, %v1819
  %v1821 = vrot.slane %v1820, 2
  %v1822 = vadd.f32 %v1820, %v1821
  %v1823 = vrot.slane %v1822, 1
  %v1824 = vadd.f32 %v1822, %v1823
  %v1825 = vsel %vm124, %v1803, 0.0
  %v1826 = vrot.slane %v1825, 4
  %v1827 = vadd.f32 %v1825, %v1826
  %v1828 = vrot.slane %v1827, 2
  %v1829 = vadd.f32 %v1827, %v1828
  %v1830 = vrot.slane %v1829, 1
  %v1831 = vadd.f32 %v1829, %v1830
  %v1832 = vsel %vm124, %v1804, 0.0
  %v1833 = vrot.slane %v1832, 4
  %v1834 = vadd.f32 %v1832, %v1833
  %v1835 = vrot.slane %v1834, 2
  %v1836 = vadd.f32 %v1834, %v1835
  %v1837 = vrot.slane %v1836, 1
  %v1838 = vadd.f32 %v1836, %v1837
  %v1839 = vsel %vm124, %v1805, 0.0
  %v1840 = vrot.slane %v1839, 4
  %v1841 = vadd.f32 %v1839, %v1840
  %v1842 = vrot.slane %v1841, 2
  %v1843 = vadd.f32 %v1841, %v1842
  %v1844 = vrot.slane %v1843, 1
  %v1845 = vadd.f32 %v1843, %v1844
  %v1846 = vsel %vm124, %v1806, 0.0
  %v1847 = vrot.slane %v1846, 4
  %v1848 = vadd.f32 %v1846, %v1847
  %v1849 = vrot.slane %v1848, 2
  %v1850 = vadd.f32 %v1848, %v1849
  %v1851 = vrot.slane %v1850, 1
  %v1852 = vadd.f32 %v1850, %v1851
  %v1853 = vsel %vm124, %v1807, 0.0
  %v1854 = vrot.slane %v1853, 4
  %v1855 = vadd.f32 %v1853, %v1854
  %v1856 = vrot.slane %v1855, 2
  %v1857 = vadd.f32 %v1855, %v1856
  %v1858 = vrot.slane %v1857, 1
  %v1859 = vadd.f32 %v1857, %v1858
  %v1860 = vsel %vm124, %v1808, 0.0
  %v1861 = vrot.slane %v1860, 4
  %v1862 = vadd.f32 %v1860, %v1861
  %v1863 = vrot.slane %v1862, 2
  %v1864 = vadd.f32 %v1862, %v1863
  %v1865 = vrot.slane %v1864, 1
  %v1866 = vadd.f32 %v1864, %v1865
  %v1867 = vsel %vm124, %v1809, 0.0
  %v1868 = vrot.slane %v1867, 4
  %v1869 = vadd.f32 %v1867, %v1868
  %v1870 = vrot.slane %v1869, 2
  %v1871 = vadd.f32 %v1869, %v1870
  %v1872 = vrot.slane %v1871, 1
  %v1873 = vadd.f32 %v1871, %v1872
  %v1874 = vsel %vm124, %v1810, 0.0
  %v1875 = vrot.slane %v1874, 4
  %v1876 = vadd.f32 %v1874, %v1875
  %v1877 = vrot.slane %v1876, 2
  %v1878 = vadd.f32 %v1876, %v1877
  %v1879 = vrot.slane %v1878, 1
  %v1880 = vadd.f32 %v1878, %v1879
  %v1881 = vsel %vm124, %v1811, 0.0
  %v1882 = vrot.slane %v1881, 4
  %v1883 = vadd.f32 %v1881, %v1882
  %v1884 = vrot.slane %v1883, 2
  %v1885 = vadd.f32 %v1883, %v1884
  %v1886 = vrot.slane %v1885, 1
  %v1887 = vadd.f32 %v1885, %v1886
  %v1888 = vsel %vm124, %v1812, 0.0
  %v1889 = vrot.slane %v1888, 4
  %v1890 = vadd.f32 %v1888, %v1889
  %v1891 = vrot.slane %v1890, 2
  %v1892 = vadd.f32 %v1890, %v1891
  %v1893 = vrot.slane %v1892, 1
  %v1894 = vadd.f32 %v1892, %v1893
  %v1895 = vsel %vm124, %v1813, 0.0
  %v1896 = vrot.slane %v1895, 4
  %v1897 = vadd.f32 %v1895, %v1896
  %v1898 = vrot.slane %v1897, 2
  %v1899 = vadd.f32 %v1897, %v1898
  %v1900 = vrot.slane %v1899, 1
  %v1901 = vadd.f32 %v1899, %v1900
  %v1902 = vsel %vm124, %v1814, 0.0
  %v1903 = vrot.slane %v1902, 4
  %v1904 = vadd.f32 %v1902, %v1903
  %v1905 = vrot.slane %v1904, 2
  %v1906 = vadd.f32 %v1904, %v1905
  %v1907 = vrot.slane %v1906, 1
  %v1908 = vadd.f32 %v1906, %v1907
  %v1909 = vsel %vm124, %v1815, 0.0
  %v1910 = vrot.slane %v1909, 4
  %v1911 = vadd.f32 %v1909, %v1910
  %v1912 = vrot.slane %v1911, 2
  %v1913 = vadd.f32 %v1911, %v1912
  %v1914 = vrot.slane %v1913, 1
  %v1915 = vadd.f32 %v1913, %v1914
  %v1916 = vsel %vm124, %v1816, 0.0
  %v1917 = vrot.slane %v1916, 4
  %v1918 = vadd.f32 %v1916, %v1917
  %v1919 = vrot.slane %v1918, 2
  %v1920 = vadd.f32 %v1918, %v1919
  %v1921 = vrot.slane %v1920, 1
  %v1922 = vadd.f32 %v1920, %v1921
  %v1923 = vsel %vm124, %v1817, 0.0
  %v1924 = vrot.slane %v1923, 4
  %v1925 = vadd.f32 %v1923, %v1924
  %v1926 = vrot.slane %v1925, 2
  %v1927 = vadd.f32 %v1925, %v1926
  %v1928 = vrot.slane %v1927, 1
  %v1929 = vadd.f32 %v1927, %v1928
  %v1930 = vpack.c.bf16 %v1824, %v1824
  %v1931 = vpack.c.bf16 %v1831, %v1831
  %v1932 = vpack.c.bf16 %v1838, %v1838
  %v1933 = vpack.c.bf16 %v1845, %v1845
  %v1934 = vpack.c.bf16 %v1852, %v1852
  %v1935 = vpack.c.bf16 %v1859, %v1859
  %v1936 = vpack.c.bf16 %v1866, %v1866
  %v1937 = vpack.c.bf16 %v1873, %v1873
  %v1938 = vpack.c.bf16 %v1880, %v1880
  %v1939 = vpack.c.bf16 %v1887, %v1887
  %v1940 = vpack.c.bf16 %v1894, %v1894
  %v1941 = vpack.c.bf16 %v1901, %v1901
  %v1942 = vpack.c.bf16 %v1908, %v1908
  %v1943 = vpack.c.bf16 %v1915, %v1915
  %v1944 = vpack.c.bf16 %v1922, %v1922
  %v1945 = vpack.c.bf16 %v1929, %v1929
  %v1946 = vld [vmem:[%s6] sm:$0xf]
  %v1947 = vld [vmem:[%s6 + $0x4] sm:$0xf]
  %v1948 = vld [vmem:[%s6 + $0x8] sm:$0xf]
  %v1949 = vld [vmem:[%s6 + $0xc] sm:$0xf]
  %v1950 = vld [vmem:[%s7] sm:$0xf]
  %v1951 = vld [vmem:[%s7 + $0x4] sm:$0xf]
  %v1952 = vld [vmem:[%s7 + $0x8] sm:$0xf]
  %v1953 = vld [vmem:[%s7 + $0xc] sm:$0xf]
  %v1958 = vunpack.c.l.b16 %v1950
  %v1959 = vunpack.c.l.b16 %v1951
  %v1960 = vunpack.c.l.b16 %v1952
  %v1961 = vunpack.c.l.b16 %v1953
  %v1962 = vpack.c.b16 %v1959, %v1958
  %v1963 = vpack.c.b16 %v1961, %v1960
  %1966 = vmatprep.subr.bf16.mxu0 0
  %1967 = vmatpush1.bf16.msra.mxu0 0
  %1968 = vmatprep.subr.bf16.mxu0 0
  %1969 = vmatpush1.bf16.msra.mxu0 0
  %1970 = vmatprep.subr.bf16.mxu0 0
  %1971 = vmatpush1.bf16.msra.mxu0 0
  %1972 = vmatprep.subr.bf16.mxu0 0
  %1973 = vmatpush1.bf16.msra.mxu0 0
  %1974 = vmatprep.subr.bf16.mxu0 0
  %1975 = vmatpush1.bf16.msra.mxu0 0
  %1976 = vmatprep.subr.bf16.mxu0 0
  %1977 = vmatpush1.bf16.msra.mxu0 0
  %1978 = vmatprep.subr.bf16.mxu0 0
  %1979 = vmatpush1.bf16.msra.mxu0 %v1963
  %1980 = vmatprep.subr.bf16.mxu0 0
  %1981 = vmatpush1.bf16.msra.mxu0 %v1962
  %1982 = vmatprep.subr.bf16.mxu0 0
  %1983 = vmatpush2.bf16.msra.mxu0 0
  %1984 = vmatprep.subr.bf16.mxu0 0
  %1985 = vmatpush2.bf16.msra.mxu0 0
  %1986 = vmatprep.subr.bf16.mxu0 0
  %1987 = vmatpush2.bf16.msra.mxu0 0
  %1988 = vmatprep.subr.bf16.mxu0 0
  %1989 = vmatpush2.bf16.msra.mxu0 0
  %1990 = vmatprep.subr.bf16.mxu0 0
  %1991 = vmatpush2.bf16.msra.mxu0 0
  %1992 = vmatprep.subr.bf16.mxu0 0
  %1993 = vmatpush2.bf16.msra.mxu0 0
  %1994 = vmatprep.subr.bf16.mxu0 0
  %1995 = vmatpush2.bf16.msra.mxu0 0
  %1996 = vmatprep.subr.bf16.mxu0 0
  %1997 = vmatpush2.bf16.msra.mxu0 0
  %1998 = vmatprep.mubr.bf16.mxu0 0
  %1999 = vmatmul.mubr.bf16.gmra.mxu0 %v906
  %v2000 = vpop.f32.mrf.mxu0
  %v2001 = vadd.f32 0.0, %v2000
  %v2002 = vpop.f32.mrf.mxu0
  %v2003 = vpop.f32.mrf.mxu0
  %v2004 = vadd.f32 0.0, %v2003
  %v2005 = vpop.f32.mrf.mxu0
  %2006 = vdwg.mxu0
  %v2023 = vunpack.c.l.b16 %v1930
  %v2024 = vunpack.c.l.b16 %v1931
  %v2025 = vunpack.c.l.b16 %v1932
  %v2026 = vunpack.c.l.b16 %v1933
  %v2027 = vunpack.c.l.b16 %v1934
  %v2028 = vunpack.c.l.b16 %v1935
  %v2029 = vunpack.c.l.b16 %v1936
  %v2030 = vunpack.c.l.b16 %v1937
  %v2031 = vunpack.c.l.b16 %v1938
  %v2032 = vunpack.c.l.b16 %v1939
  %v2033 = vunpack.c.l.b16 %v1940
  %v2034 = vunpack.c.l.b16 %v1941
  %v2035 = vunpack.c.l.b16 %v1942
  %v2036 = vunpack.c.l.b16 %v1943
  %v2037 = vunpack.c.l.b16 %v1944
  %v2038 = vunpack.c.l.b16 %v1945
  %v2039 = vsel %vm1312, %v2024, %v2023
  %v2040 = vsel %vm1314, %v2025, %v2039
  %v2041 = vsel %vm1316, %v2026, %v2040
  %v2042 = vsel %vm1318, %v2027, %v2041
  %v2043 = vsel %vm1320, %v2028, %v2042
  %v2044 = vsel %vm1322, %v2029, %v2043
  %v2045 = vsel %vm1324, %v2030, %v2044
  %v2046 = vsel %vm1312, %v2032, %v2031
  %v2047 = vsel %vm1314, %v2033, %v2046
  %v2048 = vsel %vm1316, %v2034, %v2047
  %v2049 = vsel %vm1318, %v2035, %v2048
  %v2050 = vsel %vm1320, %v2036, %v2049
  %v2051 = vsel %vm1322, %v2037, %v2050
  %v2052 = vsel %vm1324, %v2038, %v2051
  %v2053 = vpack.c.b16 %v2052, %v2045
  %v2058 = vunpack.c.l.b16 %v1946
  %v2059 = vunpack.c.l.b16 %v1947
  %v2060 = vunpack.c.l.b16 %v1948
  %v2061 = vunpack.c.l.b16 %v1949
  %v2062 = vpack.c.b16 %v2059, %v2058
  %v2063 = vpack.c.b16 %v2061, %v2060
  %v2067 = vsel %vm124, %v2053, 0
  %2069 = vmatprep.subr.bf16.mxu0 0
  %2070 = vmatpush1.bf16.msra.mxu0 0
  %2071 = vmatprep.subr.bf16.mxu0 0
  %2072 = vmatpush1.bf16.msra.mxu0 0
  %2073 = vmatprep.subr.bf16.mxu0 0
  %2074 = vmatpush1.bf16.msra.mxu0 0
  %2075 = vmatprep.subr.bf16.mxu0 0
  %2076 = vmatpush1.bf16.msra.mxu0 0
  %2077 = vmatprep.subr.bf16.mxu0 0
  %2078 = vmatpush1.bf16.msra.mxu0 0
  %2079 = vmatprep.subr.bf16.mxu0 0
  %2080 = vmatpush1.bf16.msra.mxu0 0
  %2081 = vmatprep.subr.bf16.mxu0 0
  %2082 = vmatpush1.bf16.msra.mxu0 %v2063
  %2083 = vmatprep.subr.bf16.mxu0 0
  %2084 = vmatpush1.bf16.msra.mxu0 %v2062
  %2085 = vmatprep.subr.bf16.mxu0 0
  %2086 = vmatpush2.bf16.msra.mxu0 0
  %2087 = vmatprep.subr.bf16.mxu0 0
  %2088 = vmatpush2.bf16.msra.mxu0 0
  %2089 = vmatprep.subr.bf16.mxu0 0
  %2090 = vmatpush2.bf16.msra.mxu0 0
  %2091 = vmatprep.subr.bf16.mxu0 0
  %2092 = vmatpush2.bf16.msra.mxu0 0
  %2093 = vmatprep.subr.bf16.mxu0 0
  %2094 = vmatpush2.bf16.msra.mxu0 0
  %2095 = vmatprep.subr.bf16.mxu0 0
  %2096 = vmatpush2.bf16.msra.mxu0 0
  %2097 = vmatprep.subr.bf16.mxu0 0
  %2098 = vmatpush2.bf16.msra.mxu0 0
  %2099 = vmatprep.subr.bf16.mxu0 0
  %2100 = vmatpush2.bf16.msra.mxu0 0
  %2101 = vmatprep.mubr.bf16.mxu0 0
  %2102 = vmatmul.mubr.bf16.gmra.mxu0 %v2067
  %v2103 = vpop.f32.mrf.mxu0
  %v2104 = vadd.f32 %v2001, %v2103
  %v2105 = vpop.f32.mrf.mxu0
  %v2106 = vpop.f32.mrf.mxu0
  %v2107 = vadd.f32 %v2004, %v2106
  %v2108 = vpop.f32.mrf.mxu0
  %2109 = vdwg.mxu0
  %v2110 = vtanh.pop %v2104
  %v2111 = vtanh.pop %v2107
  %v2112 = vpack.c.bf16 %v2111, %v2110
  %v2113 = vld [vmem:[%s8] sm:$0xf]
  %v2114 = vld [vmem:[%s8 + $0x4] sm:$0xf]
  %v2115 = vld [vmem:[%s8 + $0x8] sm:$0xf]
  %v2116 = vld [vmem:[%s8 + $0xc] sm:$0xf]
  %v2117 = vld [vmem:[%s10] sm:$0x1]
  %v2119 = vlaneseq
  %v2120 = vshrl.u32 %v2119, 7
  %v2121 = vsub.s32 0, %v2120
  %v2122 = vrot.slane %v2117, %v2121
  %v2128 = vunpack.c.l.b16 %v2113
  %v2129 = vunpack.c.l.b16 %v2114
  %v2130 = vunpack.c.l.b16 %v2115
  %v2131 = vunpack.c.l.b16 %v2116
  %v2132 = vpack.c.b16 %v2129, %v2128
  %v2133 = vpack.c.b16 %v2131, %v2130
  %v2137 = vsel %vm124, %v2112, 0
  %2139 = vmatprep.subr.bf16.mxu0 0
  %2140 = vmatpush1.bf16.msra.mxu0 0
  %2141 = vmatprep.subr.bf16.mxu0 0
  %2142 = vmatpush1.bf16.msra.mxu0 0
  %2143 = vmatprep.subr.bf16.mxu0 0
  %2144 = vmatpush1.bf16.msra.mxu0 0
  %2145 = vmatprep.subr.bf16.mxu0 0
  %2146 = vmatpush1.bf16.msra.mxu0 0
  %2147 = vmatprep.subr.bf16.mxu0 0
  %2148 = vmatpush1.bf16.msra.mxu0 0
  %2149 = vmatprep.subr.bf16.mxu0 0
  %2150 = vmatpush1.bf16.msra.mxu0 0
  %2151 = vmatprep.subr.bf16.mxu0 0
  %2152 = vmatpush1.bf16.msra.mxu0 %v2133
  %2153 = vmatprep.subr.bf16.mxu0 0
  %2154 = vmatpush1.bf16.msra.mxu0 %v2132
  %2155 = vmatprep.subr.bf16.mxu0 0
  %2156 = vmatpush2.bf16.msra.mxu0 0
  %2157 = vmatprep.subr.bf16.mxu0 0
  %2158 = vmatpush2.bf16.msra.mxu0 0
  %2159 = vmatprep.subr.bf16.mxu0 0
  %2160 = vmatpush2.bf16.msra.mxu0 0
  %2161 = vmatprep.subr.bf16.mxu0 0
  %2162 = vmatpush2.bf16.msra.mxu0 0
  %2163 = vmatprep.subr.bf16.mxu0 0
  %2164 = vmatpush2.bf16.msra.mxu0 0
  %2165 = vmatprep.subr.bf16.mxu0 0
  %2166 = vmatpush2.bf16.msra.mxu0 0
  %2167 = vmatprep.subr.bf16.mxu0 0
  %2168 = vmatpush2.bf16.msra.mxu0 0
  %2169 = vmatprep.subr.bf16.mxu0 0
  %2170 = vmatpush2.bf16.msra.mxu0 0
  %2171 = vmatprep.mubr.bf16.mxu0 0
  %2172 = vmatmul.mubr.bf16.gmra.mxu0 %v2137
  %v2173 = vpop.f32.mrf.mxu0
  %v2174 = vadd.f32 %v2122, %v2173
  %v2175 = vpop.f32.mrf.mxu0
  %v2176 = vpop.f32.mrf.mxu0
  %v2177 = vadd.f32 %v2122, %v2176
  %v2178 = vpop.f32.mrf.mxu0
  %2179 = vdwg.mxu0
  %2180 = vst [vmem:[#allocation2] sm:$0xff] %v2174
  %2181 = vst [vmem:[#allocation2 + $0x8] sm:$0xff] %v2177
  %2182 = vst.msk [vmem:[#allocation5] sm:$0x3] %vm171, 0.0
  %2183 = vst.msk [vmem:[#allocation6] sm:$0x3] %vm171, 0.0
  %v2184 = vld [vmem:[%s9] sm:$0xf]
  %v2185 = vld [vmem:[%s9 + $0x4] sm:$0xf]
  %v2186 = vld [vmem:[%s9 + $0x8] sm:$0xf]
  %v2187 = vld [vmem:[%s9 + $0xc] sm:$0xf]
  %v2188 = vld [vmem:[#allocation5] sm:$0x3]
  %v2189 = vld [vmem:[#allocation2] sm:$0x3]
  %v2190 = vpack.c.bf16 %v2188, %v2188
  %v2195 = vunpack.c.l.b16 %v2184
  %v2196 = vunpack.c.l.b16 %v2185
  %v2197 = vunpack.c.l.b16 %v2186
  %v2198 = vunpack.c.l.b16 %v2187
  %v2199 = vpack.c.b16 %v2196, %v2195
  %v2200 = vpack.c.b16 %v2198, %v2197
  %v2204 = vsel %vm124, %v2190, 0
  %2206 = vmatprep.subr.bf16.mxu0 0
  %2207 = vmatpush1.bf16.msra.mxu0 0
  %2208 = vmatprep.subr.bf16.mxu0 0
  %2209 = vmatpush1.bf16.msra.mxu0 0
  %2210 = vmatprep.subr.bf16.mxu0 0
  %2211 = vmatpush1.bf16.msra.mxu0 0
  %2212 = vmatprep.subr.bf16.mxu0 0
  %2213 = vmatpush1.bf16.msra.mxu0 0
  %2214 = vmatprep.subr.bf16.mxu0 0
  %2215 = vmatpush1.bf16.msra.mxu0 0
  %2216 = vmatprep.subr.bf16.mxu0 0
  %2217 = vmatpush1.bf16.msra.mxu0 0
  %2218 = vmatprep.subr.bf16.mxu0 0
  %2219 = vmatpush1.bf16.msra.mxu0 %v2200
  %2220 = vmatprep.subr.bf16.mxu0 0
  %2221 = vmatpush1.bf16.msra.mxu0 %v2199
  %2222 = vmatprep.subr.bf16.mxu0 0
  %2223 = vmatpush2.bf16.msra.mxu0 0
  %2224 = vmatprep.subr.bf16.mxu0 0
  %2225 = vmatpush2.bf16.msra.mxu0 0
  %2226 = vmatprep.subr.bf16.mxu0 0
  %2227 = vmatpush2.bf16.msra.mxu0 0
  %2228 = vmatprep.subr.bf16.mxu0 0
  %2229 = vmatpush2.bf16.msra.mxu0 0
  %2230 = vmatprep.subr.bf16.mxu0 0
  %2231 = vmatpush2.bf16.msra.mxu0 0
  %2232 = vmatprep.subr.bf16.mxu0 0
  %2233 = vmatpush2.bf16.msra.mxu0 0
  %2234 = vmatprep.subr.bf16.mxu0 0
  %2235 = vmatpush2.bf16.msra.mxu0 0
  %2236 = vmatprep.subr.bf16.mxu0 0
  %2237 = vmatpush2.bf16.msra.mxu0 0
  %2238 = vmatprep.mubr.bf16.mxu0 0
  %2239 = vmatmul.mubr.bf16.gmra.mxu0 %v2204
  %v2240 = vpop.f32.mrf.mxu0
  %v2241 = vadd.f32 0.0, %v2240
  %v2242 = vpop.f32.mrf.mxu0
  %v2243 = vpop.f32.mrf.mxu0
  %v2244 = vpop.f32.mrf.mxu0
  %2245 = vdwg.mxu0
  %v2246 = vadd.f32 %v2189, %v2241
  %v2247 = vxor.u32 %v2246, 2147483648
  %v2248 = vmul.f32 %v2247, 1.442695
  %v2249 = vpow.pop %v2248
  %v2250 = vadd.f32 %v2249, 1.0
  %v2251 = vrcp.pop %v2250
  %v2252 = vmul.f32 1.0, %v2251
  %v2253 = vtanh.pop %v2246
  %v2254 = vld [vmem:[#allocation6] sm:$0x3]
  %2256 = vrot.lane.b32.xlu0 %v2254, 32
  %v2257 = vpop.permute.xlu0 %2256
  %v2259 = vmul.f32 %v2252, %v2257
  %2261 = vrot.lane.b32.xlu0 %v2253, 64
  %v2262 = vpop.permute.xlu0 %2261
  %v2264 = vmul.f32 %v2252, %v2262
  %2266 = vrot.lane.b32.xlu0 %v2264, 32
  %v2267 = vpop.permute.xlu0 %2266
  %v2269 = vadd.f32 %v2259, %v2267
  %v2270 = vtanh.pop %v2269
  %2272 = vrot.lane.b32.xlu0 %v2270, 64
  %v2273 = vpop.permute.xlu0 %2272
  %v2275 = vmul.f32 %v2252, %v2273
  %2277 = vrot.lane.b32.xlu0 %v2269, 96
  %v2278 = vpop.permute.xlu0 %2277
  %2280 = vst.msk [vmem:[#allocation6] sm:$0x3] %vm171, %v2278
  %2282 = vrot.lane.b32.xlu0 %v2275, 32
  %v2283 = vpop.permute.xlu0 %2282
  %2285 = vst.msk [vmem:[#allocation5] sm:$0x3] %vm171, %v2283
  %2286 = vst.msk [vmem:[#allocation3] sm:$0x3] %vm171, %v2283
  %v2287 = vld [vmem:[#allocation5] sm:$0x3]
  %v2288 = vld [vmem:[#allocation2 + $0x2] sm:$0x3]
  %v2289 = vpack.c.bf16 %v2287, %v2287
  %v2291 = vsel %vm124, %v2289, 0
  %2293 = vmatprep.subr.bf16.mxu0 0
  %2294 = vmatpush1.bf16.msra.mxu0 0
  %2295 = vmatprep.subr.bf16.mxu0 0
  %2296 = vmatpush1.bf16.msra.mxu0 0
  %2297 = vmatprep.subr.bf16.mxu0 0
  %2298 = vmatpush1.bf16.msra.mxu0 0
  %2299 = vmatprep.subr.bf16.mxu0 0
  %2300 = vmatpush1.bf16.msra.mxu0 0
  %2301 = vmatprep.subr.bf16.mxu0 0
  %2302 = vmatpush1.bf16.msra.mxu0 0
  %2303 = vmatprep.subr.bf16.mxu0 0
  %2304 = vmatpush1.bf16.msra.mxu0 0
  %2305 = vmatprep.subr.bf16.mxu0 0
  %2306 = vmatpush1.bf16.msra.mxu0 %v2200
  %2307 = vmatprep.subr.bf16.mxu0 0
  %2308 = vmatpush1.bf16.msra.mxu0 %v2199
  %2309 = vmatprep.subr.bf16.mxu0 0
  %2310 = vmatpush2.bf16.msra.mxu0 0
  %2311 = vmatprep.subr.bf16.mxu0 0
  %2312 = vmatpush2.bf16.msra.mxu0 0
  %2313 = vmatprep.subr.bf16.mxu0 0
  %2314 = vmatpush2.bf16.msra.mxu0 0
  %2315 = vmatprep.subr.bf16.mxu0 0
  %2316 = vmatpush2.bf16.msra.mxu0 0
  %2317 = vmatprep.subr.bf16.mxu0 0
  %2318 = vmatpush2.bf16.msra.mxu0 0
  %2319 = vmatprep.subr.bf16.mxu0 0
  %2320 = vmatpush2.bf16.msra.mxu0 0
  %2321 = vmatprep.subr.bf16.mxu0 0
  %2322 = vmatpush2.bf16.msra.mxu0 0
  %2323 = vmatprep.subr.bf16.mxu0 0
  %2324 = vmatpush2.bf16.msra.mxu0 0
  %2325 = vmatprep.mubr.bf16.mxu0 0
  %2326 = vmatmul.mubr.bf16.gmra.mxu0 %v2291
  %v2327 = vpop.f32.mrf.mxu0
  %v2328 = vadd.f32 0.0, %v2327
  %v2329 = vpop.f32.mrf.mxu0
  %v2330 = vpop.f32.mrf.mxu0
  %v2331 = vpop.f32.mrf.mxu0
  %2332 = vdwg.mxu0
  %v2333 = vadd.f32 %v2288, %v2328
  %v2334 = vxor.u32 %v2333, 2147483648
  %v2335 = vmul.f32 %v2334, 1.442695
  %v2336 = vpow.pop %v2335
  %v2337 = vadd.f32 %v2336, 1.0
  %v2338 = vrcp.pop %v2337
  %v2339 = vmul.f32 1.0, %v2338
  %v2340 = vtanh.pop %v2333
  %v2341 = vld [vmem:[#allocation6] sm:$0x3]
  %2343 = vrot.lane.b32.xlu0 %v2341, 32
  %v2344 = vpop.permute.xlu0 %2343
  %v2346 = vmul.f32 %v2339, %v2344
  %2348 = vrot.lane.b32.xlu0 %v2340, 64
  %v2349 = vpop.permute.xlu0 %2348
  %v2351 = vmul.f32 %v2339, %v2349
  %2353 = vrot.lane.b32.xlu0 %v2351, 32
  %v2354 = vpop.permute.xlu0 %2353
  %v2356 = vadd.f32 %v2346, %v2354
  %v2357 = vtanh.pop %v2356
  %2359 = vrot.lane.b32.xlu0 %v2357, 64
  %v2360 = vpop.permute.xlu0 %2359
  %v2362 = vmul.f32 %v2339, %v2360
  %2364 = vrot.lane.b32.xlu0 %v2356, 96
  %v2365 = vpop.permute.xlu0 %2364
  %2367 = vst.msk [vmem:[#allocation6] sm:$0x3] %vm171, %v2365
  %2369 = vrot.lane.b32.xlu0 %v2362, 32
  %v2370 = vpop.permute.xlu0 %2369
  %2372 = vst.msk [vmem:[#allocation5] sm:$0x3] %vm171, %v2370
  %2373 = vst.msk [vmem:[#allocation3 + $0x2] sm:$0x3] %vm171, %v2370
  %v2374 = vld [vmem:[#allocation5] sm:$0x3]
  %v2375 = vld [vmem:[#allocation2 + $0x4] sm:$0x3]
  %v2376 = vpack.c.bf16 %v2374, %v2374
  %v2378 = vsel %vm124, %v2376, 0
  %2380 = vmatprep.subr.bf16.mxu0 0
  %2381 = vmatpush1.bf16.msra.mxu0 0
  %2382 = vmatprep.subr.bf16.mxu0 0
  %2383 = vmatpush1.bf16.msra.mxu0 0
  %2384 = vmatprep.subr.bf16.mxu0 0
  %2385 = vmatpush1.bf16.msra.mxu0 0
  %2386 = vmatprep.subr.bf16.mxu0 0
  %2387 = vmatpush1.bf16.msra.mxu0 0
  %2388 = vmatprep.subr.bf16.mxu0 0
  %2389 = vmatpush1.bf16.msra.mxu0 0
  %2390 = vmatprep.subr.bf16.mxu0 0
  %2391 = vmatpush1.bf16.msra.mxu0 0
  %2392 = vmatprep.subr.bf16.mxu0 0
  %2393 = vmatpush1.bf16.msra.mxu0 %v2200
  %2394 = vmatprep.subr.bf16.mxu0 0
  %2395 = vmatpush1.bf16.msra.mxu0 %v2199
  %2396 = vmatprep.subr.bf16.mxu0 0
  %2397 = vmatpush2.bf16.msra.mxu0 0
  %2398 = vmatprep.subr.bf16.mxu0 0
  %2399 = vmatpush2.bf16.msra.mxu0 0
  %2400 = vmatprep.subr.bf16.mxu0 0
  %2401 = vmatpush2.bf16.msra.mxu0 0
  %2402 = vmatprep.subr.bf16.mxu0 0
  %2403 = vmatpush2.bf16.msra.mxu0 0
  %2404 = vmatprep.subr.bf16.mxu0 0
  %2405 = vmatpush2.bf16.msra.mxu0 0
  %2406 = vmatprep.subr.bf16.mxu0 0
  %2407 = vmatpush2.bf16.msra.mxu0 0
  %2408 = vmatprep.subr.bf16.mxu0 0
  %2409 = vmatpush2.bf16.msra.mxu0 0
  %2410 = vmatprep.subr.bf16.mxu0 0
  %2411 = vmatpush2.bf16.msra.mxu0 0
  %2412 = vmatprep.mubr.bf16.mxu0 0
  %2413 = vmatmul.mubr.bf16.gmra.mxu0 %v2378
  %v2414 = vpop.f32.mrf.mxu0
  %v2415 = vadd.f32 0.0, %v2414
  %v2416 = vpop.f32.mrf.mxu0
  %v2417 = vpop.f32.mrf.mxu0
  %v2418 = vpop.f32.mrf.mxu0
  %2419 = vdwg.mxu0
  %v2420 = vadd.f32 %v2375, %v2415
  %v2421 = vxor.u32 %v2420, 2147483648
  %v2422 = vmul.f32 %v2421, 1.442695
  %v2423 = vpow.pop %v2422
  %v2424 = vadd.f32 %v2423, 1.0
  %v2425 = vrcp.pop %v2424
  %v2426 = vmul.f32 1.0, %v2425
  %v2427 = vtanh.pop %v2420
  %v2428 = vld [vmem:[#allocation6] sm:$0x3]
  %2430 = vrot.lane.b32.xlu0 %v2428, 32
  %v2431 = vpop.permute.xlu0 %2430
  %v2433 = vmul.f32 %v2426, %v2431
  %2435 = vrot.lane.b32.xlu0 %v2427, 64
  %v2436 = vpop.permute.xlu0 %2435
  %v2438 = vmul.f32 %v2426, %v2436
  %2440 = vrot.lane.b32.xlu0 %v2438, 32
  %v2441 = vpop.permute.xlu0 %2440
  %v2443 = vadd.f32 %v2433, %v2441
  %v2444 = vtanh.pop %v2443
  %2446 = vrot.lane.b32.xlu0 %v2444, 64
  %v2447 = vpop.permute.xlu0 %2446
  %v2449 = vmul.f32 %v2426, %v2447
  %2451 = vrot.lane.b32.xlu0 %v2443, 96
  %v2452 = vpop.permute.xlu0 %2451
  %2454 = vst.msk [vmem:[#allocation6] sm:$0x3] %vm171, %v2452
  %2456 = vrot.lane.b32.xlu0 %v2449, 32
  %v2457 = vpop.permute.xlu0 %2456
  %2459 = vst.msk [vmem:[#allocation5] sm:$0x3] %vm171, %v2457
  %2460 = vst.msk [vmem:[#allocation3 + $0x4] sm:$0x3] %vm171, %v2457
  %v2461 = vld [vmem:[#allocation5] sm:$0x3]
  %v2462 = vld [vmem:[#allocation2 + $0x6] sm:$0x3]
  %v2463 = vpack.c.bf16 %v2461, %v2461
  %v2465 = vsel %vm124, %v2463, 0
  %2467 = vmatprep.subr.bf16.mxu0 0
  %2468 = vmatpush1.bf16.msra.mxu0 0
  %2469 = vmatprep.subr.bf16.mxu0 0
  %2470 = vmatpush1.bf16.msra.mxu0 0
  %2471 = vmatprep.subr.bf16.mxu0 0
  %2472 = vmatpush1.bf16.msra.mxu0 0
  %2473 = vmatprep.subr.bf16.mxu0 0
  %2474 = vmatpush1.bf16.msra.mxu0 0
  %2475 = vmatprep.subr.bf16.mxu0 0
  %2476 = vmatpush1.bf16.msra.mxu0 0
  %2477 = vmatprep.subr.bf16.mxu0 0
  %2478 = vmatpush1.bf16.msra.mxu0 0
  %2479 = vmatprep.subr.bf16.mxu0 0
  %2480 = vmatpush1.bf16.msra.mxu0 %v2200
  %2481 = vmatprep.subr.bf16.mxu0 0
  %2482 = vmatpush1.bf16.msra.mxu0 %v2199
  %2483 = vmatprep.subr.bf16.mxu0 0
  %2484 = vmatpush2.bf16.msra.mxu0 0
  %2485 = vmatprep.subr.bf16.mxu0 0
  %2486 = vmatpush2.bf16.msra.mxu0 0
  %2487 = vmatprep.subr.bf16.mxu0 0
  %2488 = vmatpush2.bf16.msra.mxu0 0
  %2489 = vmatprep.subr.bf16.mxu0 0
  %2490 = vmatpush2.bf16.msra.mxu0 0
  %2491 = vmatprep.subr.bf16.mxu0 0
  %2492 = vmatpush2.bf16.msra.mxu0 0
  %2493 = vmatprep.subr.bf16.mxu0 0
  %2494 = vmatpush2.bf16.msra.mxu0 0
  %2495 = vmatprep.subr.bf16.mxu0 0
  %2496 = vmatpush2.bf16.msra.mxu0 0
  %2497 = vmatprep.subr.bf16.mxu0 0
  %2498 = vmatpush2.bf16.msra.mxu0 0
  %2499 = vmatprep.mubr.bf16.mxu0 0
  %2500 = vmatmul.mubr.bf16.gmra.mxu0 %v2465
  %v2501 = vpop.f32.mrf.mxu0
  %v2502 = vadd.f32 0.0, %v2501
  %v2503 = vpop.f32.mrf.mxu0
  %v2504 = vpop.f32.mrf.mxu0
  %v2505 = vpop.f32.mrf.mxu0
  %2506 = vdwg.mxu0
  %v2507 = vadd.f32 %v2462, %v2502
  %v2508 = vxor.u32 %v2507, 2147483648
  %v2509 = vmul.f32 %v2508, 1.442695
  %v2510 = vpow.pop %v2509
  %v2511 = vadd.f32 %v2510, 1.0
  %v2512 = vrcp.pop %v2511
  %v2513 = vmul.f32 1.0, %v2512
  %v2514 = vtanh.pop %v2507
  %v2515 = vld [vmem:[#allocation6] sm:$0x3]
  %2517 = vrot.lane.b32.xlu0 %v2515, 32
  %v2518 = vpop.permute.xlu0 %2517
  %v2520 = vmul.f32 %v2513, %v2518
  %2522 = vrot.lane.b32.xlu0 %v2514, 64
  %v2523 = vpop.permute.xlu0 %2522
  %v2525 = vmul.f32 %v2513, %v2523
  %2527 = vrot.lane.b32.xlu0 %v2525, 32
  %v2528 = vpop.permute.xlu0 %2527
  %v2530 = vadd.f32 %v2520, %v2528
  %v2531 = vtanh.pop %v2530
  %2533 = vrot.lane.b32.xlu0 %v2531, 64
  %v2534 = vpop.permute.xlu0 %2533
  %v2536 = vmul.f32 %v2513, %v2534
  %2538 = vrot.lane.b32.xlu0 %v2530, 96
  %v2539 = vpop.permute.xlu0 %2538
  %2541 = vst.msk [vmem:[#allocation6] sm:$0x3] %vm171, %v2539
  %2543 = vrot.lane.b32.xlu0 %v2536, 32
  %v2544 = vpop.permute.xlu0 %2543
  %2546 = vst.msk [vmem:[#allocation5] sm:$0x3] %vm171, %v2544
  %2547 = vst.msk [vmem:[#allocation3 + $0x6] sm:$0x3] %vm171, %v2544
  %v2548 = vld [vmem:[#allocation5] sm:$0x3]
  %v2549 = vld [vmem:[#allocation2 + $0x8] sm:$0x3]
  %v2550 = vpack.c.bf16 %v2548, %v2548
  %v2552 = vsel %vm124, %v2550, 0
  %2554 = vmatprep.subr.bf16.mxu0 0
  %2555 = vmatpush1.bf16.msra.mxu0 0
  %2556 = vmatprep.subr.bf16.mxu0 0
  %2557 = vmatpush1.bf16.msra.mxu0 0
  %2558 = vmatprep.subr.bf16.mxu0 0
  %2559 = vmatpush1.bf16.msra.mxu0 0
  %2560 = vmatprep.subr.bf16.mxu0 0
  %2561 = vmatpush1.bf16.msra.mxu0 0
  %2562 = vmatprep.subr.bf16.mxu0 0
  %2563 = vmatpush1.bf16.msra.mxu0 0
  %2564 = vmatprep.subr.bf16.mxu0 0
  %2565 = vmatpush1.bf16.msra.mxu0 0
  %2566 = vmatprep.subr.bf16.mxu0 0
  %2567 = vmatpush1.bf16.msra.mxu0 %v2200
  %2568 = vmatprep.subr.bf16.mxu0 0
  %2569 = vmatpush1.bf16.msra.mxu0 %v2199
  %2570 = vmatprep.subr.bf16.mxu0 0
  %2571 = vmatpush2.bf16.msra.mxu0 0
  %2572 = vmatprep.subr.bf16.mxu0 0
  %2573 = vmatpush2.bf16.msra.mxu0 0
  %2574 = vmatprep.subr.bf16.mxu0 0
  %2575 = vmatpush2.bf16.msra.mxu0 0
  %2576 = vmatprep.subr.bf16.mxu0 0
  %2577 = vmatpush2.bf16.msra.mxu0 0
  %2578 = vmatprep.subr.bf16.mxu0 0
  %2579 = vmatpush2.bf16.msra.mxu0 0
  %2580 = vmatprep.subr.bf16.mxu0 0
  %2581 = vmatpush2.bf16.msra.mxu0 0
  %2582 = vmatprep.subr.bf16.mxu0 0
  %2583 = vmatpush2.bf16.msra.mxu0 0
  %2584 = vmatprep.subr.bf16.mxu0 0
  %2585 = vmatpush2.bf16.msra.mxu0 0
  %2586 = vmatprep.mubr.bf16.mxu0 0
  %2587 = vmatmul.mubr.bf16.gmra.mxu0 %v2552
  %v2588 = vpop.f32.mrf.mxu0
  %v2589 = vadd.f32 0.0, %v2588
  %v2590 = vpop.f32.mrf.mxu0
  %v2591 = vpop.f32.mrf.mxu0
  %v2592 = vpop.f32.mrf.mxu0
  %2593 = vdwg.mxu0
  %v2594 = vadd.f32 %v2549, %v2589
  %v2595 = vxor.u32 %v2594, 2147483648
  %v2596 = vmul.f32 %v2595, 1.442695
  %v2597 = vpow.pop %v2596
  %v2598 = vadd.f32 %v2597, 1.0
  %v2599 = vrcp.pop %v2598
  %v2600 = vmul.f32 1.0, %v2599
  %v2601 = vtanh.pop %v2594
  %v2602 = vld [vmem:[#allocation6] sm:$0x3]
  %2604 = vrot.lane.b32.xlu0 %v2602, 32
  %v2605 = vpop.permute.xlu0 %2604
  %v2607 = vmul.f32 %v2600, %v2605
  %2609 = vrot.lane.b32.xlu0 %v2601, 64
  %v2610 = vpop.permute.xlu0 %2609
  %v2612 = vmul.f32 %v2600, %v2610
  %2614 = vrot.lane.b32.xlu0 %v2612, 32
  %v2615 = vpop.permute.xlu0 %2614
  %v2617 = vadd.f32 %v2607, %v2615
  %v2618 = vtanh.pop %v2617
  %2620 = vrot.lane.b32.xlu0 %v2618, 64
  %v2621 = vpop.permute.xlu0 %2620
  %v2623 = vmul.f32 %v2600, %v2621
  %2625 = vrot.lane.b32.xlu0 %v2617, 96
  %v2626 = vpop.permute.xlu0 %2625
  %2628 = vst.msk [vmem:[#allocation6] sm:$0x3] %vm171, %v2626
  %2630 = vrot.lane.b32.xlu0 %v2623, 32
  %v2631 = vpop.permute.xlu0 %2630
  %2633 = vst.msk [vmem:[#allocation5] sm:$0x3] %vm171, %v2631
  %2634 = vst.msk [vmem:[#allocation3 + $0x8] sm:$0x3] %vm171, %v2631
  %v2635 = vld [vmem:[#allocation5] sm:$0x3]
  %v2636 = vld [vmem:[#allocation2 + $0xa] sm:$0x3]
  %v2637 = vpack.c.bf16 %v2635, %v2635
  %v2639 = vsel %vm124, %v2637, 0
  %2641 = vmatprep.subr.bf16.mxu0 0
  %2642 = vmatpush1.bf16.msra.mxu0 0
  %2643 = vmatprep.subr.bf16.mxu0 0
  %2644 = vmatpush1.bf16.msra.mxu0 0
  %2645 = vmatprep.subr.bf16.mxu0 0
  %2646 = vmatpush1.bf16.msra.mxu0 0
  %2647 = vmatprep.subr.bf16.mxu0 0
  %2648 = vmatpush1.bf16.msra.mxu0 0
  %2649 = vmatprep.subr.bf16.mxu0 0
  %2650 = vmatpush1.bf16.msra.mxu0 0
  %2651 = vmatprep.subr.bf16.mxu0 0
  %2652 = vmatpush1.bf16.msra.mxu0 0
  %2653 = vmatprep.subr.bf16.mxu0 0
  %2654 = vmatpush1.bf16.msra.mxu0 %v2200
  %2655 = vmatprep.subr.bf16.mxu0 0
  %2656 = vmatpush1.bf16.msra.mxu0 %v2199
  %2657 = vmatprep.subr.bf16.mxu0 0
  %2658 = vmatpush2.bf16.msra.mxu0 0
  %2659 = vmatprep.subr.bf16.mxu0 0
  %2660 = vmatpush2.bf16.msra.mxu0 0
  %2661 = vmatprep.subr.bf16.mxu0 0
  %2662 = vmatpush2.bf16.msra.mxu0 0
  %2663 = vmatprep.subr.bf16.mxu0 0
  %2664 = vmatpush2.bf16.msra.mxu0 0
  %2665 = vmatprep.subr.bf16.mxu0 0
  %2666 = vmatpush2.bf16.msra.mxu0 0
  %2667 = vmatprep.subr.bf16.mxu0 0
  %2668 = vmatpush2.bf16.msra.mxu0 0
  %2669 = vmatprep.subr.bf16.mxu0 0
  %2670 = vmatpush2.bf16.msra.mxu0 0
  %2671 = vmatprep.subr.bf16.mxu0 0
  %2672 = vmatpush2.bf16.msra.mxu0 0
  %2673 = vmatprep.mubr.bf16.mxu0 0
  %2674 = vmatmul.mubr.bf16.gmra.mxu0 %v2639
  %v2675 = vpop.f32.mrf.mxu0
  %v2676 = vadd.f32 0.0, %v2675
  %v2677 = vpop.f32.mrf.mxu0
  %v2678 = vpop.f32.mrf.mxu0
  %v2679 = vpop.f32.mrf.mxu0
  %2680 = vdwg.mxu0
  %v2681 = vadd.f32 %v2636, %v2676
  %v2682 = vxor.u32 %v2681, 2147483648
  %v2683 = vmul.f32 %v2682, 1.442695
  %v2684 = vpow.pop %v2683
  %v2685 = vadd.f32 %v2684, 1.0
  %v2686 = vrcp.pop %v2685
  %v2687 = vmul.f32 1.0, %v2686
  %v2688 = vtanh.pop %v2681
  %v2689 = vld [vmem:[#allocation6] sm:$0x3]
  %2691 = vrot.lane.b32.xlu0 %v2689, 32
  %v2692 = vpop.permute.xlu0 %2691
  %v2694 = vmul.f32 %v2687, %v2692
  %2696 = vrot.lane.b32.xlu0 %v2688, 64
  %v2697 = vpop.permute.xlu0 %2696
  %v2699 = vmul.f32 %v2687, %v2697
  %2701 = vrot.lane.b32.xlu0 %v2699, 32
  %v2702 = vpop.permute.xlu0 %2701
  %v2704 = vadd.f32 %v2694, %v2702
  %v2705 = vtanh.pop %v2704
  %2707 = vrot.lane.b32.xlu0 %v2705, 64
  %v2708 = vpop.permute.xlu0 %2707
  %v2710 = vmul.f32 %v2687, %v2708
  %2712 = vrot.lane.b32.xlu0 %v2704, 96
  %v2713 = vpop.permute.xlu0 %2712
  %2715 = vst.msk [vmem:[#allocation6] sm:$0x3] %vm171, %v2713
  %2717 = vrot.lane.b32.xlu0 %v2710, 32
  %v2718 = vpop.permute.xlu0 %2717
  %2720 = vst.msk [vmem:[#allocation5] sm:$0x3] %vm171, %v2718
  %2721 = vst.msk [vmem:[#allocation3 + $0xa] sm:$0x3] %vm171, %v2718
  %v2722 = vld [vmem:[#allocation5] sm:$0x3]
  %v2723 = vld [vmem:[#allocation2 + $0xc] sm:$0x3]
  %v2724 = vpack.c.bf16 %v2722, %v2722
  %v2726 = vsel %vm124, %v2724, 0
  %2728 = vmatprep.subr.bf16.mxu0 0
  %2729 = vmatpush1.bf16.msra.mxu0 0
  %2730 = vmatprep.subr.bf16.mxu0 0
  %2731 = vmatpush1.bf16.msra.mxu0 0
  %2732 = vmatprep.subr.bf16.mxu0 0
  %2733 = vmatpush1.bf16.msra.mxu0 0
  %2734 = vmatprep.subr.bf16.mxu0 0
  %2735 = vmatpush1.bf16.msra.mxu0 0
  %2736 = vmatprep.subr.bf16.mxu0 0
  %2737 = vmatpush1.bf16.msra.mxu0 0
  %2738 = vmatprep.subr.bf16.mxu0 0
  %2739 = vmatpush1.bf16.msra.mxu0 0
  %2740 = vmatprep.subr.bf16.mxu0 0
  %2741 = vmatpush1.bf16.msra.mxu0 %v2200
  %2742 = vmatprep.subr.bf16.mxu0 0
  %2743 = vmatpush1.bf16.msra.mxu0 %v2199
  %2744 = vmatprep.subr.bf16.mxu0 0
  %2745 = vmatpush2.bf16.msra.mxu0 0
  %2746 = vmatprep.subr.bf16.mxu0 0
  %2747 = vmatpush2.bf16.msra.mxu0 0
  %2748 = vmatprep.subr.bf16.mxu0 0
  %2749 = vmatpush2.bf16.msra.mxu0 0
  %2750 = vmatprep.subr.bf16.mxu0 0
  %2751 = vmatpush2.bf16.msra.mxu0 0
  %2752 = vmatprep.subr.bf16.mxu0 0
  %2753 = vmatpush2.bf16.msra.mxu0 0
  %2754 = vmatprep.subr.bf16.mxu0 0
  %2755 = vmatpush2.bf16.msra.mxu0 0
  %2756 = vmatprep.subr.bf16.mxu0 0
  %2757 = vmatpush2.bf16.msra.mxu0 0
  %2758 = vmatprep.subr.bf16.mxu0 0
  %2759 = vmatpush2.bf16.msra.mxu0 0
  %2760 = vmatprep.mubr.bf16.mxu0 0
  %2761 = vmatmul.mubr.bf16.gmra.mxu0 %v2726
  %v2762 = vpop.f32.mrf.mxu0
  %v2763 = vadd.f32 0.0, %v2762
  %v2764 = vpop.f32.mrf.mxu0
  %v2765 = vpop.f32.mrf.mxu0
  %v2766 = vpop.f32.mrf.mxu0
  %2767 = vdwg.mxu0
  %v2768 = vadd.f32 %v2723, %v2763
  %v2769 = vxor.u32 %v2768, 2147483648
  %v2770 = vmul.f32 %v2769, 1.442695
  %v2771 = vpow.pop %v2770
  %v2772 = vadd.f32 %v2771, 1.0
  %v2773 = vrcp.pop %v2772
  %v2774 = vmul.f32 1.0, %v2773
  %v2775 = vtanh.pop %v2768
  %v2776 = vld [vmem:[#allocation6] sm:$0x3]
  %2778 = vrot.lane.b32.xlu0 %v2776, 32
  %v2779 = vpop.permute.xlu0 %2778
  %v2781 = vmul.f32 %v2774, %v2779
  %2783 = vrot.lane.b32.xlu0 %v2775, 64
  %v2784 = vpop.permute.xlu0 %2783
  %v2786 = vmul.f32 %v2774, %v2784
  %2788 = vrot.lane.b32.xlu0 %v2786, 32
  %v2789 = vpop.permute.xlu0 %2788
  %v2791 = vadd.f32 %v2781, %v2789
  %v2792 = vtanh.pop %v2791
  %2794 = vrot.lane.b32.xlu0 %v2792, 64
  %v2795 = vpop.permute.xlu0 %2794
  %v2797 = vmul.f32 %v2774, %v2795
  %2799 = vrot.lane.b32.xlu0 %v2791, 96
  %v2800 = vpop.permute.xlu0 %2799
  %2802 = vst.msk [vmem:[#allocation6] sm:$0x3] %vm171, %v2800
  %2804 = vrot.lane.b32.xlu0 %v2797, 32
  %v2805 = vpop.permute.xlu0 %2804
  %2807 = vst.msk [vmem:[#allocation5] sm:$0x3] %vm171, %v2805
  %2808 = vst.msk [vmem:[#allocation3 + $0xc] sm:$0x3] %vm171, %v2805
  %v2809 = vld [vmem:[#allocation5] sm:$0x3]
  %v2810 = vld [vmem:[#allocation2 + $0xe] sm:$0x3]
  %v2811 = vpack.c.bf16 %v2809, %v2809
  %v2813 = vsel %vm124, %v2811, 0
  %2815 = vmatprep.subr.bf16.mxu0 0
  %2816 = vmatpush1.bf16.msra.mxu0 0
  %2817 = vmatprep.subr.bf16.mxu0 0
  %2818 = vmatpush1.bf16.msra.mxu0 0
  %2819 = vmatprep.subr.bf16.mxu0 0
  %2820 = vmatpush1.bf16.msra.mxu0 0
  %2821 = vmatprep.subr.bf16.mxu0 0
  %2822 = vmatpush1.bf16.msra.mxu0 0
  %2823 = vmatprep.subr.bf16.mxu0 0
  %2824 = vmatpush1.bf16.msra.mxu0 0
  %2825 = vmatprep.subr.bf16.mxu0 0
  %2826 = vmatpush1.bf16.msra.mxu0 0
  %2827 = vmatprep.subr.bf16.mxu0 0
  %2828 = vmatpush1.bf16.msra.mxu0 %v2200
  %2829 = vmatprep.subr.bf16.mxu0 0
  %2830 = vmatpush1.bf16.msra.mxu0 %v2199
  %2831 = vmatprep.subr.bf16.mxu0 0
  %2832 = vmatpush2.bf16.msra.mxu0 0
  %2833 = vmatprep.subr.bf16.mxu0 0
  %2834 = vmatpush2.bf16.msra.mxu0 0
  %2835 = vmatprep.subr.bf16.mxu0 0
  %2836 = vmatpush2.bf16.msra.mxu0 0
  %2837 = vmatprep.subr.bf16.mxu0 0
  %2838 = vmatpush2.bf16.msra.mxu0 0
  %2839 = vmatprep.subr.bf16.mxu0 0
  %2840 = vmatpush2.bf16.msra.mxu0 0
  %2841 = vmatprep.subr.bf16.mxu0 0
  %2842 = vmatpush2.bf16.msra.mxu0 0
  %2843 = vmatprep.subr.bf16.mxu0 0
  %2844 = vmatpush2.bf16.msra.mxu0 0
  %2845 = vmatprep.subr.bf16.mxu0 0
  %2846 = vmatpush2.bf16.msra.mxu0 0
  %2847 = vmatprep.mubr.bf16.mxu0 0
  %2848 = vmatmul.mubr.bf16.gmra.mxu0 %v2813
  %v2849 = vpop.f32.mrf.mxu0
  %v2850 = vadd.f32 0.0, %v2849
  %v2851 = vpop.f32.mrf.mxu0
  %v2852 = vpop.f32.mrf.mxu0
  %v2853 = vpop.f32.mrf.mxu0
  %2854 = vdwg.mxu0
  %v2855 = vadd.f32 %v2810, %v2850
  %v2856 = vxor.u32 %v2855, 2147483648
  %v2857 = vmul.f32 %v2856, 1.442695
  %v2858 = vpow.pop %v2857
  %v2859 = vadd.f32 %v2858, 1.0
  %v2860 = vrcp.pop %v2859
  %v2861 = vmul.f32 1.0, %v2860
  %v2862 = vtanh.pop %v2855
  %v2863 = vld [vmem:[#allocation6] sm:$0x3]
  %2865 = vrot.lane.b32.xlu0 %v2863, 32
  %v2866 = vpop.permute.xlu0 %2865
  %v2868 = vmul.f32 %v2861, %v2866
  %2870 = vrot.lane.b32.xlu0 %v2862, 64
  %v2871 = vpop.permute.xlu0 %2870
  %v2873 = vmul.f32 %v2861, %v2871
  %2875 = vrot.lane.b32.xlu0 %v2873, 32
  %v2876 = vpop.permute.xlu0 %2875
  %v2878 = vadd.f32 %v2868, %v2876
  %v2879 = vtanh.pop %v2878
  %2881 = vrot.lane.b32.xlu0 %v2879, 64
  %v2882 = vpop.permute.xlu0 %2881
  %v2884 = vmul.f32 %v2861, %v2882
  %2886 = vrot.lane.b32.xlu0 %v2878, 96
  %v2887 = vpop.permute.xlu0 %2886
  %2889 = vst.msk [vmem:[#allocation6] sm:$0x3] %vm171, %v2887
  %2891 = vrot.lane.b32.xlu0 %v2884, 32
  %v2892 = vpop.permute.xlu0 %2891
  %2894 = vst.msk [vmem:[#allocation5] sm:$0x3] %vm171, %v2892
  %2895 = vst.msk [vmem:[#allocation3 + $0xe] sm:$0x3] %vm171, %v2892
  %v2896 = vld [vmem:[#allocation3] sm:$0xff]
  %v2897 = vld [vmem:[#allocation3 + $0x8] sm:$0xff]
  %2898 = vst.msk [vmem:[%s11] sm:$0xff] %vm124, %v2896
  %2899 = vst.msk [vmem:[%s11 + $0x8] sm:$0xff] %vm124, %v2897
  // Predicated region
  $region76: #{speaker_encoder_forward.1} parent=0 // pred_check
    _
  $region77: #{speaker_encoder_forward.1} parent=0 // pred_check_branch
    %2901 = sbr.rel (0) target = $region79
  $region78: #{speaker_encoder_forward.1} parent=0 // pred_region
    _
  $region79: #{speaker_encoder_forward.1} parent=0 // pred_fallthru
    _
  // Predicated region
  $region80: #{speaker_encoder_forward.1} parent=0 // pred_check
    _
  $region81: #{speaker_encoder_forward.1} parent=0 // pred_check_branch
    %2903 = sbr.rel (0) target = $region83
  $region82: #{speaker_encoder_forward.1} parent=0 // pred_region
    _
  $region83: #{speaker_encoder_forward.1} parent=0 // pred_fallthru
    _
  %2904 = vsyncmov [#allocation7]
  %s2905 = vpop.sfrf %2904
  %p2906 = scmp.eq.s32.totalorder %s2905, 0
  %p2907 = pneg %p2906
  %2909 = shalt.err (%p2907)

</llo_original>
